<compile_context>
chip_gen: v7x
topology: tpu7x:2x2x1
jax: 0.10.0
libtpu: 0.0.40
codegen_flags: <defaults>
</compile_context>

<pallas_src>
import functools

import jax
import jax.numpy as jnp
from jax.experimental import pallas as pl
from jax.experimental.pallas import tpu as pltpu

EPS = 1e-5  # PyTorch InstanceNorm2d default (affine=False, biased variance)


def _resblock_kernel(x_ref, w1_ref, w2_ref, o_ref, pad_ref, *, matmul_dtype):
    """Fused residual block for one batch element.

    x_ref   : (H, W, C)        input tile (also the residual)
    w1_ref  : (9*C, C)         conv1 weights, rows ordered (dy, dx, c_in)
    w2_ref  : (9*C, C)         conv2 weights
    o_ref   : (H, W, C)        output tile
    pad_ref : (H+2, W+2, C)    VMEM scratch, reused for both reflect-pads
    """
    H, W, C = o_ref.shape
    inv_hw = 1.0 / (H * W)

    def reflect_pad_store(v):
        # v: (H, W, C) f32 value -> reflect-padded (H+2, W+2, C) into pad_ref.
        rows = jnp.concatenate([v[1:2], v, v[H - 2:H - 1]], axis=0)
        full = jnp.concatenate([rows[:, 1:2], rows, rows[:, W - 2:W - 1]],
                               axis=1)
        pad_ref[...] = full

    def conv3x3(w_ref):
        # im2col: nine statically-sliced windows of the padded ref, concatenated
        # along channels -> one fat (H*W, 9C) x (9C, C) MXU matmul.
        windows = [pad_ref[dy:dy + H, dx:dx + W, :]
                   for dy in range(3) for dx in range(3)]
        patches = jnp.concatenate(windows, axis=-1).reshape(H * W, 9 * C)
        return jnp.dot(patches.astype(matmul_dtype),
                       w_ref[...].astype(matmul_dtype),
                       preferred_element_type=jnp.float32)

    def instance_norm_coeffs(acc):
        # Single pass: sum and sum-of-squares; var = E[x^2] - mean^2.
        s = jnp.sum(acc, axis=0, keepdims=True)
        ss = jnp.sum(acc * acc, axis=0, keepdims=True)
        mean = s * inv_hw
        var = ss * inv_hw - mean * mean
        scale = jax.lax.rsqrt(var + EPS)
        return scale, -mean * scale

    x = x_ref[...].astype(jnp.float32)                      # (H, W, C)

    # ---- stage 1: reflect-pad -> conv -> instance-norm -> ReLU (all in VMEM)
    reflect_pad_store(x)
    acc1 = conv3x3(w1_ref)                                  # (H*W, C) f32
    sc1, sh1 = instance_norm_coeffs(acc1)
    h = jnp.maximum(acc1 * sc1 + sh1, 0.0).reshape(H, W, C)

    # ---- stage 2: reflect-pad(h) -> conv -> instance-norm -> + residual
    reflect_pad_store(h)
    acc2 = conv3x3(w2_ref)
    sc2, sh2 = instance_norm_coeffs(acc2)
    y = acc2 * sc2 + sh2 + x.reshape(H * W, C)

    o_ref[...] = y.reshape(H, W, C).astype(o_ref.dtype)


def _vmem_limit_bytes(H, W, C):
    """Per-grid-step VMEM footprint estimate (f32), with headroom."""
    f32 = 4
    tile = H * W * C * f32
    est = (
        2 * tile                              # x input, double-buffered
        + 2 * tile                            # output, double-buffered
        + 2 * 2 * 9 * C * C * f32             # two weight slabs, double-buffered
        + (H + 2) * (W + 2) * C * f32         # padded scratch
        + 2 * H * W * 9 * C * f32             # im2col patches + temp
        + 4 * tile                            # acc / h / misc temporaries
    )
    return int(min(128 * 1024 * 1024, max(16 * 1024 * 1024, 2 * est)))


def residual_block(x_nchw, params, *, matmul_dtype=jnp.float32):
    """Pallas implementation of ResidualBlock.forward (NCHW in/out, fp32).

    Use matmul_dtype=jnp.bfloat16 on v6e/v7x to hit the bf16 MXU peak
    (accumulation and all norm math stay in f32).
    """
    w1, b1, w2, b2 = params          # biases exactly cancelled by InstanceNorm
    del b1, b2                       # (affine=False) -> not fed to the kernel
    N, C, H, W = x_nchw.shape
    assert H >= 2 and W >= 2, "ReflectionPad2d(1) requires H >= 2 and W >= 2"

    x = jnp.transpose(x_nchw, (0, 2, 3, 1)).astype(jnp.float32)   # -> NHWC
    # HWIO (3,3,Cin,Cout) -> (9*Cin, Cout), rows in (dy, dx, c_in) order to
    # match the im2col channel-concatenation order inside the kernel.
    w1f = w1.reshape(9 * C, C)
    w2f = w2.reshape(9 * C, C)

    kernel = functools.partial(_resblock_kernel, matmul_dtype=matmul_dtype)
    y = pl.pallas_call(
        kernel,
        out_shape=jax.ShapeDtypeStruct((N, H, W, C), jnp.float32),
        grid=(N,),
        in_specs=[
            pl.BlockSpec((pl.Squeezed(), H, W, C), lambda n: (n, 0, 0, 0)),
            pl.BlockSpec((9 * C, C), lambda n: (0, 0)),
            pl.BlockSpec((9 * C, C), lambda n: (0, 0)),
        ],
        out_specs=pl.BlockSpec((pl.Squeezed(), H, W, C),
                               lambda n: (n, 0, 0, 0)),
        scratch_shapes=[pltpu.VMEM((H + 2, W + 2, C), jnp.float32)],
        compiler_params=pltpu.CompilerParams(
            dimension_semantics=("parallel",),
            vmem_limit_bytes=_vmem_limit_bytes(H, W, C),
        ),
    )(x, w1f, w2f)
    return jnp.transpose(y, (0, 3, 1, 2))                          # -> NCHW


def init_params(key, in_features):
    """Deterministic init matching nn.Conv2d(C, C, 3) x2.

    PyTorch stores conv weights as (Cout, Cin, 3, 3); here they are HWIO
    (3, 3, Cin, Cout) for the matmul formulation. Biases are kept for spec
    fidelity (the kernel provably does not need them).
    """
    C = in_features
    bound = jnp.sqrt(1.0 / (C * 3 * 3))
    ks = jax.random.split(key, 4)
    w1 = jax.random.uniform(ks[0], (3, 3, C, C), jnp.float32, -bound, bound)
    b1 = jax.random.uniform(ks[1], (1, C), jnp.float32, -bound, bound)
    w2 = jax.random.uniform(ks[2], (3, 3, C, C), jnp.float32, -bound, bound)
    b2 = jax.random.uniform(ks[3], (1, C), jnp.float32, -bound, bound)
    return w1, b1, w2, b2


def _reference_forward(x_nchw, params):
    """Pure-JAX reference of the PyTorch forward (bias included)."""
    w1, b1, w2, b2 = params

    def conv(x_nhwc, w, b):
        xp = jnp.pad(x_nhwc, ((0, 0), (1, 1), (1, 1), (0, 0)), mode="reflect")
        y = jax.lax.conv_general_dilated(
            xp, w, (1, 1), "VALID",
            dimension_numbers=("NHWC", "HWIO", "NHWC"))
        return y + b.reshape(1, 1, 1, -1)

    def inorm(y):
        m = jnp.mean(y, axis=(1, 2), keepdims=True)
        v = jnp.mean((y - m) ** 2, axis=(1, 2), keepdims=True)
        return (y - m) * jax.lax.rsqrt(v + EPS)

    x = jnp.transpose(x_nchw, (0, 2, 3, 1)).astype(jnp.float32)
    h = jnp.maximum(inorm(conv(x, w1, b1)), 0.0)
    y = inorm(conv(h, w2, b2)) + x
    return jnp.transpose(y, (0, 3, 1, 2))


if __name__ == "__main__":
    key = jax.random.PRNGKey(0)
    k_x, k_p = jax.random.split(key)

    N, C, H, W = 2, 4, 16, 16
    x = jax.random.normal(k_x, (N, C, H, W), jnp.float32)   # NCHW like PyTorch
    params = init_params(k_p, C)

    ref = jax.block_until_ready(_reference_forward(x, params))

    # f32 MXU operands (exact path)
    out = jax.block_until_ready(residual_block(x, params))
    assert out.shape == (N, C, H, W)
    assert jnp.allclose(out, ref, atol=1e-3, rtol=1e-3), "f32 mismatch vs reference"

    # bf16 MXU operands / f32 accumulate (recommended on v6e/v7x); loose bound
    # only guards against structural bugs, not rounding.
    out_bf16 = jax.block_until_ready(
        residual_block(x, params, matmul_dtype=jnp.bfloat16))
    assert jnp.allclose(out_bf16, ref, atol=2e-1, rtol=5e-2), "bf16 mismatch vs reference"

    print("KERNEL_OK")
</pallas_src>

<mosaic_0001>
module attributes {stable_mosaic.version = 11 : i64} {
  func.func @_resblock_kernel(%arg0: i32, %arg1: memref<1x16x16x4xf32, #tpu.memory_space<vmem>>, %arg2: memref<36x4xf32, #tpu.memory_space<vmem>>, %arg3: memref<36x4xf32, #tpu.memory_space<vmem>>, %arg4: memref<1x16x16x4xf32, #tpu.memory_space<vmem>>, %arg5: memref<18x18x4xf32, #tpu.memory_space<vmem>>) attributes {dimension_semantics = [#tpu.dimension_semantics<parallel>], iteration_bounds = array<i64: 2>, scalar_prefetch = 0 : i64, scratch_operands = 1 : i64, tpu.core_type = #tpu.core_type<tc>, window_params = [{transform_indices = @transform_0, window_bounds = array<i64: 1, 16, 16, 4>}, {pipeline_mode = #tpu.pipeline_mode<synchronous>, transform_indices = @transform_1, window_bounds = array<i64: 36, 4>}, {pipeline_mode = #tpu.pipeline_mode<synchronous>, transform_indices = @transform_2, window_bounds = array<i64: 36, 4>}, {transform_indices = @transform_3, window_bounds = array<i64: 1, 16, 16, 4>}]} {
    %c0 = arith.constant 0 : index
    %c0_0 = arith.constant 0 : index
    %c0_1 = arith.constant 0 : index
    %c0_2 = arith.constant 0 : index
    %0 = vector.load %arg1[%c0, %c0_0, %c0_1, %c0_2] : memref<1x16x16x4xf32, #tpu.memory_space<vmem>>, vector<1x16x16x4xf32>
    %1 = vector.shape_cast %0 : vector<1x16x16x4xf32> to vector<16x16x4xf32>
    %2 = vector.extract_strided_slice %1 {offsets = [1, 0, 0], sizes = [1, 16, 4], strides = [1, 1, 1]} : vector<16x16x4xf32> to vector<1x16x4xf32>
    %3 = vector.extract_strided_slice %1 {offsets = [14, 0, 0], sizes = [1, 16, 4], strides = [1, 1, 1]} : vector<16x16x4xf32> to vector<1x16x4xf32>
    %4 = tpu.concatenate %2, %1, %3 in 0 : vector<1x16x4xf32>, vector<16x16x4xf32>, vector<1x16x4xf32> -> vector<18x16x4xf32>
    %5 = vector.extract_strided_slice %4 {offsets = [0, 1, 0], sizes = [18, 1, 4], strides = [1, 1, 1]} : vector<18x16x4xf32> to vector<18x1x4xf32>
    %6 = vector.extract_strided_slice %4 {offsets = [0, 14, 0], sizes = [18, 1, 4], strides = [1, 1, 1]} : vector<18x16x4xf32> to vector<18x1x4xf32>
    %7 = tpu.concatenate %5, %4, %6 in 1 : vector<18x1x4xf32>, vector<18x16x4xf32>, vector<18x1x4xf32> -> vector<18x18x4xf32>
    %c0_3 = arith.constant 0 : index
    %c0_4 = arith.constant 0 : index
    %c0_5 = arith.constant 0 : index
    %8 = vector.load %arg5[%c0_3, %c0_4, %c0_5] : memref<18x18x4xf32, #tpu.memory_space<vmem>>, vector<18x18x4xf32>
    tpu.vector_store %arg5[%c0_3, %c0_4, %c0_5], %7 {strides = array<i32>} : memref<18x18x4xf32, #tpu.memory_space<vmem>>, vector<18x18x4xf32>,
    %c0_6 = arith.constant 0 : index
    %c0_7 = arith.constant 0 : index
    %c0_8 = arith.constant 0 : index
    %9 = vector.load %arg5[%c0_6, %c0_7, %c0_8] : memref<18x18x4xf32, #tpu.memory_space<vmem>>, vector<16x16x4xf32>
    %c0_9 = arith.constant 0 : index
    %c1 = arith.constant 1 : index
    %c0_10 = arith.constant 0 : index
    %10 = vector.load %arg5[%c0_9, %c1, %c0_10] : memref<18x18x4xf32, #tpu.memory_space<vmem>>, vector<16x16x4xf32>
    %c0_11 = arith.constant 0 : index
    %c2 = arith.constant 2 : index
    %c0_12 = arith.constant 0 : index
    %11 = vector.load %arg5[%c0_11, %c2, %c0_12] : memref<18x18x4xf32, #tpu.memory_space<vmem>>, vector<16x16x4xf32>
    %c1_13 = arith.constant 1 : index
    %c0_14 = arith.constant 0 : index
    %c0_15 = arith.constant 0 : index
    %12 = vector.load %arg5[%c1_13, %c0_14, %c0_15] : memref<18x18x4xf32, #tpu.memory_space<vmem>>, vector<16x16x4xf32>
    %c1_16 = arith.constant 1 : index
    %c1_17 = arith.constant 1 : index
    %c0_18 = arith.constant 0 : index
    %13 = vector.load %arg5[%c1_16, %c1_17, %c0_18] : memref<18x18x4xf32, #tpu.memory_space<vmem>>, vector<16x16x4xf32>
    %c1_19 = arith.constant 1 : index
    %c2_20 = arith.constant 2 : index
    %c0_21 = arith.constant 0 : index
    %14 = vector.load %arg5[%c1_19, %c2_20, %c0_21] : memref<18x18x4xf32, #tpu.memory_space<vmem>>, vector<16x16x4xf32>
    %c2_22 = arith.constant 2 : index
    %c0_23 = arith.constant 0 : index
    %c0_24 = arith.constant 0 : index
    %15 = vector.load %arg5[%c2_22, %c0_23, %c0_24] : memref<18x18x4xf32, #tpu.memory_space<vmem>>, vector<16x16x4xf32>
    %c2_25 = arith.constant 2 : index
    %c1_26 = arith.constant 1 : index
    %c0_27 = arith.constant 0 : index
    %16 = vector.load %arg5[%c2_25, %c1_26, %c0_27] : memref<18x18x4xf32, #tpu.memory_space<vmem>>, vector<16x16x4xf32>
    %c2_28 = arith.constant 2 : index
    %c2_29 = arith.constant 2 : index
    %c0_30 = arith.constant 0 : index
    %17 = vector.load %arg5[%c2_28, %c2_29, %c0_30] : memref<18x18x4xf32, #tpu.memory_space<vmem>>, vector<16x16x4xf32>
    %18 = tpu.concatenate %9, %10, %11, %12, %13, %14, %15, %16, %17 in 2 : vector<16x16x4xf32>, vector<16x16x4xf32>, vector<16x16x4xf32>, vector<16x16x4xf32>, vector<16x16x4xf32>, vector<16x16x4xf32>, vector<16x16x4xf32>, vector<16x16x4xf32>, vector<16x16x4xf32> -> vector<16x16x36xf32>
    %19 = vector.shape_cast %18 : vector<16x16x36xf32> to vector<256x36xf32>
    %c0_31 = arith.constant 0 : index
    %c0_32 = arith.constant 0 : index
    %20 = vector.load %arg2[%c0_31, %c0_32] : memref<36x4xf32, #tpu.memory_space<vmem>>, vector<36x4xf32>
    %cst = arith.constant dense<0.000000e+00> : vector<256x4xf32>
    %21 = tpu.matmul %19, %20, %cst {dimension_numbers = #tpu.dot_dimension_numbers<[1], [0], [0], [1], [0, 0, 1, 1], [], []>} : vector<256x36xf32>, vector<36x4xf32>, vector<256x4xf32> -> vector<256x4xf32>
    %cst_33 = arith.constant dense<0.000000e+00> : vector<4xf32>
    %22 = vector.multi_reduction <add>, %21, %cst_33 [0] : vector<256x4xf32> to vector<4xf32>
    %23 = vector.shape_cast %22 : vector<4xf32> to vector<1x4xf32>
    %24 = arith.mulf %21, %21 : vector<256x4xf32>
    %cst_34 = arith.constant dense<0.000000e+00> : vector<4xf32>
    %25 = vector.multi_reduction <add>, %24, %cst_34 [0] : vector<256x4xf32> to vector<4xf32>
    %26 = vector.shape_cast %25 : vector<4xf32> to vector<1x4xf32>
    %cst_35 = arith.constant 3.906250e-03 : f32
    %27 = vector.broadcast %cst_35 : f32 to vector<1x4xf32>
    %28 = arith.mulf %23, %27 : vector<1x4xf32>
    %cst_36 = arith.constant 3.906250e-03 : f32
    %29 = vector.broadcast %cst_36 : f32 to vector<1x4xf32>
    %30 = arith.mulf %26, %29 : vector<1x4xf32>
    %31 = arith.mulf %28, %28 : vector<1x4xf32>
    %32 = arith.subf %30, %31 : vector<1x4xf32>
    %cst_37 = arith.constant 9.99999974E-6 : f32
    %33 = vector.broadcast %cst_37 : f32 to vector<1x4xf32>
    %34 = arith.addf %32, %33 : vector<1x4xf32>
    %35 = math.rsqrt %34 : vector<1x4xf32>
    %cst_38 = arith.constant 0.000000e+00 : f32
    %36 = vector.broadcast %cst_38 : f32 to vector<1x4xf32>
    %37 = arith.subf %36, %28 : vector<1x4xf32>
    %38 = arith.mulf %37, %35 : vector<1x4xf32>
    %39 = vector.broadcast %35 : vector<1x4xf32> to vector<256x4xf32>
    %40 = arith.mulf %21, %39 : vector<256x4xf32>
    %41 = vector.broadcast %38 : vector<1x4xf32> to vector<256x4xf32>
    %42 = arith.addf %40, %41 : vector<256x4xf32>
    %cst_39 = arith.constant 0.000000e+00 : f32
    %43 = vector.broadcast %cst_39 : f32 to vector<256x4xf32>
    %44 = arith.maximumf %42, %43 : vector<256x4xf32>
    %45 = vector.shape_cast %44 : vector<256x4xf32> to vector<16x16x4xf32>
    %46 = vector.extract_strided_slice %45 {offsets = [1, 0, 0], sizes = [1, 16, 4], strides = [1, 1, 1]} : vector<16x16x4xf32> to vector<1x16x4xf32>
    %47 = vector.extract_strided_slice %45 {offsets = [14, 0, 0], sizes = [1, 16, 4], strides = [1, 1, 1]} : vector<16x16x4xf32> to vector<1x16x4xf32>
    %48 = tpu.concatenate %46, %45, %47 in 0 : vector<1x16x4xf32>, vector<16x16x4xf32>, vector<1x16x4xf32> -> vector<18x16x4xf32>
    %49 = vector.extract_strided_slice %48 {offsets = [0, 1, 0], sizes = [18, 1, 4], strides = [1, 1, 1]} : vector<18x16x4xf32> to vector<18x1x4xf32>
    %50 = vector.extract_strided_slice %48 {offsets = [0, 14, 0], sizes = [18, 1, 4], strides = [1, 1, 1]} : vector<18x16x4xf32> to vector<18x1x4xf32>
    %51 = tpu.concatenate %49, %48, %50 in 1 : vector<18x1x4xf32>, vector<18x16x4xf32>, vector<18x1x4xf32> -> vector<18x18x4xf32>
    %c0_40 = arith.constant 0 : index
    %c0_41 = arith.constant 0 : index
    %c0_42 = arith.constant 0 : index
    %52 = vector.load %arg5[%c0_40, %c0_41, %c0_42] : memref<18x18x4xf32, #tpu.memory_space<vmem>>, vector<18x18x4xf32>
    tpu.vector_store %arg5[%c0_40, %c0_41, %c0_42], %51 {strides = array<i32>} : memref<18x18x4xf32, #tpu.memory_space<vmem>>, vector<18x18x4xf32>,
    %c0_43 = arith.constant 0 : index
    %c0_44 = arith.constant 0 : index
    %c0_45 = arith.constant 0 : index
    %53 = vector.load %arg5[%c0_43, %c0_44, %c0_45] : memref<18x18x4xf32, #tpu.memory_space<vmem>>, vector<16x16x4xf32>
    %c0_46 = arith.constant 0 : index
    %c1_47 = arith.constant 1 : index
    %c0_48 = arith.constant 0 : index
    %54 = vector.load %arg5[%c0_46, %c1_47, %c0_48] : memref<18x18x4xf32, #tpu.memory_space<vmem>>, vector<16x16x4xf32>
    %c0_49 = arith.constant 0 : index
    %c2_50 = arith.constant 2 : index
    %c0_51 = arith.constant 0 : index
    %55 = vector.load %arg5[%c0_49, %c2_50, %c0_51] : memref<18x18x4xf32, #tpu.memory_space<vmem>>, vector<16x16x4xf32>
    %c1_52 = arith.constant 1 : index
    %c0_53 = arith.constant 0 : index
    %c0_54 = arith.constant 0 : index
    %56 = vector.load %arg5[%c1_52, %c0_53, %c0_54] : memref<18x18x4xf32, #tpu.memory_space<vmem>>, vector<16x16x4xf32>
    %c1_55 = arith.constant 1 : index
    %c1_56 = arith.constant 1 : index
    %c0_57 = arith.constant 0 : index
    %57 = vector.load %arg5[%c1_55, %c1_56, %c0_57] : memref<18x18x4xf32, #tpu.memory_space<vmem>>, vector<16x16x4xf32>
    %c1_58 = arith.constant 1 : index
    %c2_59 = arith.constant 2 : index
    %c0_60 = arith.constant 0 : index
    %58 = vector.load %arg5[%c1_58, %c2_59, %c0_60] : memref<18x18x4xf32, #tpu.memory_space<vmem>>, vector<16x16x4xf32>
    %c2_61 = arith.constant 2 : index
    %c0_62 = arith.constant 0 : index
    %c0_63 = arith.constant 0 : index
    %59 = vector.load %arg5[%c2_61, %c0_62, %c0_63] : memref<18x18x4xf32, #tpu.memory_space<vmem>>, vector<16x16x4xf32>
    %c2_64 = arith.constant 2 : index
    %c1_65 = arith.constant 1 : index
    %c0_66 = arith.constant 0 : index
    %60 = vector.load %arg5[%c2_64, %c1_65, %c0_66] : memref<18x18x4xf32, #tpu.memory_space<vmem>>, vector<16x16x4xf32>
    %c2_67 = arith.constant 2 : index
    %c2_68 = arith.constant 2 : index
    %c0_69 = arith.constant 0 : index
    %61 = vector.load %arg5[%c2_67, %c2_68, %c0_69] : memref<18x18x4xf32, #tpu.memory_space<vmem>>, vector<16x16x4xf32>
    %62 = tpu.concatenate %53, %54, %55, %56, %57, %58, %59, %60, %61 in 2 : vector<16x16x4xf32>, vector<16x16x4xf32>, vector<16x16x4xf32>, vector<16x16x4xf32>, vector<16x16x4xf32>, vector<16x16x4xf32>, vector<16x16x4xf32>, vector<16x16x4xf32>, vector<16x16x4xf32> -> vector<16x16x36xf32>
    %63 = vector.shape_cast %62 : vector<16x16x36xf32> to vector<256x36xf32>
    %c0_70 = arith.constant 0 : index
    %c0_71 = arith.constant 0 : index
    %64 = vector.load %arg3[%c0_70, %c0_71] : memref<36x4xf32, #tpu.memory_space<vmem>>, vector<36x4xf32>
    %cst_72 = arith.constant dense<0.000000e+00> : vector<256x4xf32>
    %65 = tpu.matmul %63, %64, %cst_72 {dimension_numbers = #tpu.dot_dimension_numbers<[1], [0], [0], [1], [0, 0, 1, 1], [], []>} : vector<256x36xf32>, vector<36x4xf32>, vector<256x4xf32> -> vector<256x4xf32>
    %cst_73 = arith.constant dense<0.000000e+00> : vector<4xf32>
    %66 = vector.multi_reduction <add>, %65, %cst_73 [0] : vector<256x4xf32> to vector<4xf32>
    %67 = vector.shape_cast %66 : vector<4xf32> to vector<1x4xf32>
    %68 = arith.mulf %65, %65 : vector<256x4xf32>
    %cst_74 = arith.constant dense<0.000000e+00> : vector<4xf32>
    %69 = vector.multi_reduction <add>, %68, %cst_74 [0] : vector<256x4xf32> to vector<4xf32>
    %70 = vector.shape_cast %69 : vector<4xf32> to vector<1x4xf32>
    %cst_75 = arith.constant 3.906250e-03 : f32
    %71 = vector.broadcast %cst_75 : f32 to vector<1x4xf32>
    %72 = arith.mulf %67, %71 : vector<1x4xf32>
    %cst_76 = arith.constant 3.906250e-03 : f32
    %73 = vector.broadcast %cst_76 : f32 to vector<1x4xf32>
    %74 = arith.mulf %70, %73 : vector<1x4xf32>
    %75 = arith.mulf %72, %72 : vector<1x4xf32>
    %76 = arith.subf %74, %75 : vector<1x4xf32>
    %cst_77 = arith.constant 9.99999974E-6 : f32
    %77 = vector.broadcast %cst_77 : f32 to vector<1x4xf32>
    %78 = arith.addf %76, %77 : vector<1x4xf32>
    %79 = math.rsqrt %78 : vector<1x4xf32>
    %cst_78 = arith.constant 0.000000e+00 : f32
    %80 = vector.broadcast %cst_78 : f32 to vector<1x4xf32>
    %81 = arith.subf %80, %72 : vector<1x4xf32>
    %82 = arith.mulf %81, %79 : vector<1x4xf32>
    %83 = vector.broadcast %79 : vector<1x4xf32> to vector<256x4xf32>
    %84 = arith.mulf %65, %83 : vector<256x4xf32>
    %85 = vector.broadcast %82 : vector<1x4xf32> to vector<256x4xf32>
    %86 = arith.addf %84, %85 : vector<256x4xf32>
    %87 = vector.shape_cast %1 : vector<16x16x4xf32> to vector<256x4xf32>
    %88 = arith.addf %86, %87 : vector<256x4xf32>
    %89 = vector.shape_cast %88 : vector<256x4xf32> to vector<16x16x4xf32>
    %c0_79 = arith.constant 0 : index
    %c0_80 = arith.constant 0 : index
    %c0_81 = arith.constant 0 : index
    %c0_82 = arith.constant 0 : index
    %90 = vector.load %arg4[%c0_79, %c0_80, %c0_81, %c0_82] : memref<1x16x16x4xf32, #tpu.memory_space<vmem>>, vector<1x16x16x4xf32>
    %91 = vector.shape_cast %90 : vector<1x16x16x4xf32> to vector<16x16x4xf32>
    %92 = vector.shape_cast %89 : vector<16x16x4xf32> to vector<1x16x16x4xf32>
    tpu.vector_store %arg4[%c0_79, %c0_80, %c0_81, %c0_82], %92 {strides = array<i32>} : memref<1x16x16x4xf32, #tpu.memory_space<vmem>>, vector<1x16x16x4xf32>,
    return
  }
  func.func @transform_0(%arg0: i32) -> (i32, i32, i32, i32) {
    %c0_i32 = arith.constant 0 : i32
    %c0_i32_0 = arith.constant 0 : i32
    %c0_i32_1 = arith.constant 0 : i32
    %c0_i32_2 = arith.constant 0 : i32
    return %arg0, %c0_i32, %c0_i32_0, %c0_i32_1 : i32, i32, i32, i32
  }
  func.func @transform_1(%arg0: i32) -> (i32, i32) {
    %c0_i32 = arith.constant 0 : i32
    %c0_i32_0 = arith.constant 0 : i32
    %c0_i32_1 = arith.constant 0 : i32
    return %c0_i32, %c0_i32_0 : i32, i32
  }
  func.func @transform_2(%arg0: i32) -> (i32, i32) {
    %c0_i32 = arith.constant 0 : i32
    %c0_i32_0 = arith.constant 0 : i32
    %c0_i32_1 = arith.constant 0 : i32
    return %c0_i32, %c0_i32_0 : i32, i32
  }
  func.func @transform_3(%arg0: i32) -> (i32, i32, i32, i32) {
    %c0_i32 = arith.constant 0 : i32
    %c0_i32_0 = arith.constant 0 : i32
    %c0_i32_1 = arith.constant 0 : i32
    %c0_i32_2 = arith.constant 0 : i32
    return %arg0, %c0_i32, %c0_i32_0, %c0_i32_1 : i32, i32, i32, i32
  }
}

</mosaic_0001>

<llo_original>
// kernel: tpu_custom_call.1
$region0: #{tpu_custom_call.1}
  #allocation0 [shape = 'u32[]', space=smem, size = 0x4, offset = 0x4, fixed_abs, tag = 'smem constant byte address 0x4 - core index']
  #allocation1 [shape = 'u32[144,128]{1,0:T(1,128)}', space=vmem, size = 0x12000, scoped, tag = 'internal scratch']
  #allocation2 [shape = 'f32[18,18,4]{2,1,0:T(8,128)}', space=vmem, size = 0x36000, scoped, tag = 'scratch operand']
  %s0 = inlined_call_operand.vmem [shape: f32[2,16,16,4], index: 0, kind: input, shape index: {}]
  %s1 = inlined_call_operand.vmem [shape: f32[36,4], index: 1, kind: input, shape index: {}]
  %s2 = inlined_call_operand.vmem [shape: f32[36,4], index: 2, kind: input, shape index: {}]
  %s3 = inlined_call_operand.vmem [shape: f32[2,16,16,4], index: 3, kind: output, shape index: {}]
  %s4 = sld [smem:[#allocation0]]
  $region45: #{tpu_custom_call.1} parent=0
    _
  %s6 = ssub.s32 1, %s4
  %s7 = scalar_select 0, %s6, %s4
  loop: start=0, step=1, limit=4
  $region2: #{tpu_custom_call.1} parent=0 // loop_pre_header
    _
  $region3: #{tpu_custom_call.1} parent=0 // loop_header
    %s9 = sphi 0, %s13
    %p10 = scmp.ge.s32.totalorder %s9, 4
    %s19 = sphi 0, %s21
    %s22 = sphi 0, %s19
    %s23 = sphi 0, %s22
    %s39 = sphi 0, %s23
    %s43 = sphi 0, %s43
    %s45 = sphi 0, %s43
    %s46 = sphi 0, %s45
    %s60 = sphi 0, %s46
    %s64 = sphi 0, %s64
    %s66 = sphi 0, %s64
    %s67 = sphi 0, %s66
    %s81 = sphi 0, %s67
    %s87 = sphi 0, %s89
    %s90 = sphi 0, %s87
    %s91 = sphi 0, %s90
    %s107 = sphi 0, %s91
  $region4: #{tpu_custom_call.1} parent=0 // loop_header_branch
    %12 = sbr.rel (%p10) target = $region8
  $region5: #{tpu_custom_call.1} parent=0 // loop_body
    %s14 = ssub.s32 %s9, 1
    %s15 = ssub.s32 %s9, 2
    %s16 = sadd.s32 %s9, 1
    %s17 = ssub.s32 %s9, %s16
    %p18 = scmp.eq.s32.totalorder %s17, 0
    %s20 = sadd.s32 %s19, 1
    %s21 = scalar_select %p18, %s19, %s20
    %p24 = pneg %p18
    %p25 = scmp.eq.s32.totalorder %s9, 1
    %p26 = por %p24, %p25
    %p27 = scmp.ne.s32.totalorder %s19, %s22
    %p28 = scmp.eq.s32.totalorder %s9, 0
    %p29 = por %p27, %p28
    %p30 = scmp.ne.s32.totalorder %s19, %s22
    %p31 = scmp.eq.s32.totalorder %s14, 1
    %p32 = por %p30, %p31
    %p33 = scmp.ne.s32.totalorder %s22, %s23
    %p34 = scmp.eq.s32.totalorder %s14, 0
    %p35 = por %p33, %p34
    %p36 = scmp.ne.s32.totalorder %s22, %s23
    %p37 = scmp.eq.s32.totalorder %s15, 1
    %p38 = por %p36, %p37
    %p40 = scmp.ne.s32.totalorder %s23, %s39
    %p41 = scmp.eq.s32.totalorder %s15, 0
    %p42 = por %p40, %p41
    %s44 = sadd.s32 %s43, 1
    %p47 = scmp.eq.s32.totalorder %s9, 1
    %p48 = scmp.ne.s32.totalorder %s43, %s45
    %p49 = scmp.eq.s32.totalorder %s9, 0
    %p50 = por %p48, %p49
    %p51 = scmp.ne.s32.totalorder %s43, %s45
    %p52 = scmp.eq.s32.totalorder %s14, 1
    %p53 = por %p51, %p52
    %p54 = scmp.ne.s32.totalorder %s45, %s46
    %p55 = scmp.eq.s32.totalorder %s14, 0
    %p56 = por %p54, %p55
    %p57 = scmp.ne.s32.totalorder %s45, %s46
    %p58 = scmp.eq.s32.totalorder %s15, 1
    %p59 = por %p57, %p58
    %p61 = scmp.ne.s32.totalorder %s46, %s60
    %p62 = scmp.eq.s32.totalorder %s15, 0
    %p63 = por %p61, %p62
    %s65 = sadd.s32 %s64, 1
    %p68 = scmp.eq.s32.totalorder %s9, 1
    %p69 = scmp.ne.s32.totalorder %s64, %s66
    %p70 = scmp.eq.s32.totalorder %s9, 0
    %p71 = por %p69, %p70
    %p72 = scmp.ne.s32.totalorder %s64, %s66
    %p73 = scmp.eq.s32.totalorder %s14, 1
    %p74 = por %p72, %p73
    %p75 = scmp.ne.s32.totalorder %s66, %s67
    %p76 = scmp.eq.s32.totalorder %s14, 0
    %p77 = por %p75, %p76
    %p78 = scmp.ne.s32.totalorder %s66, %s67
    %p79 = scmp.eq.s32.totalorder %s15, 1
    %p80 = por %p78, %p79
    %p82 = scmp.ne.s32.totalorder %s67, %s81
    %p83 = scmp.eq.s32.totalorder %s15, 0
    %p84 = por %p82, %p83
    %s85 = ssub.s32 %s9, %s16
    %p86 = scmp.eq.s32.totalorder %s85, 0
    %s88 = sadd.s32 %s87, 1
    %s89 = scalar_select %p86, %s87, %s88
    %p92 = pneg %p86
    %p93 = scmp.eq.s32.totalorder %s9, 1
    %p94 = por %p92, %p93
    %p95 = scmp.ne.s32.totalorder %s87, %s90
    %p96 = scmp.eq.s32.totalorder %s9, 0
    %p97 = por %p95, %p96
    %p98 = scmp.ne.s32.totalorder %s87, %s90
    %p99 = scmp.eq.s32.totalorder %s14, 1
    %p100 = por %p98, %p99
    %p101 = scmp.ne.s32.totalorder %s90, %s91
    %p102 = scmp.eq.s32.totalorder %s14, 0
    %p103 = por %p101, %p102
    %p104 = scmp.ne.s32.totalorder %s90, %s91
    %p105 = scmp.eq.s32.totalorder %s15, 1
    %p106 = por %p104, %p105
    %p108 = scmp.ne.s32.totalorder %s91, %s107
    %p109 = scmp.eq.s32.totalorder %s15, 0
    %p110 = por %p108, %p109
    %p111 = scmp.le.s32.totalorder 1, %s9
    %p112 = scmp.lt.s32.totalorder %s9, 3
    %p113 = pnand %p111, %p112
    %p114 = pneg %p113
    // Predicated region
    $region9: #{tpu_custom_call.1} parent=5 // pred_check
      _
    $region10: #{tpu_custom_call.1} parent=5 // pred_check_branch
      %116 = sbr.rel (%p113) target = $region12
    $region11: #{tpu_custom_call.1} parent=5 // pred_region
      %s117 = ssub.s32 %s9, 1
      // Predicated region
      $region13: #{tpu_custom_call.1} parent=11 // pred_check
        %p118 = pneg %p56
      $region14: #{tpu_custom_call.1} parent=11 // pred_check_branch
        %120 = sbr.rel (%p118) target = $region16
      $region15: #{tpu_custom_call.1} parent=11 // pred_region
        _
      $region16: #{tpu_custom_call.1} parent=11 // pred_fallthru
        _
      // Predicated region
      $region17: #{tpu_custom_call.1} parent=11 // pred_check
        %p121 = pneg %p77
      $region18: #{tpu_custom_call.1} parent=11 // pred_check_branch
        %123 = sbr.rel (%p121) target = $region20
      $region19: #{tpu_custom_call.1} parent=11 // pred_region
        _
      $region20: #{tpu_custom_call.1} parent=11 // pred_fallthru
        _
    $region12: #{tpu_custom_call.1} parent=5 // pred_fallthru
      _
    %p124 = scmp.lt.s32.totalorder %s9, 2
    // Predicated region
    $region21: #{tpu_custom_call.1} parent=5 // pred_check
      %p125 = pneg %p124
    $region22: #{tpu_custom_call.1} parent=5 // pred_check_branch
      %127 = sbr.rel (%p125) target = $region24
    $region23: #{tpu_custom_call.1} parent=5 // pred_region
      // Predicated region
      $region25: #{tpu_custom_call.1} parent=23 // pred_check
        %p128 = pneg %p29
      $region26: #{tpu_custom_call.1} parent=23 // pred_check_branch
        %130 = sbr.rel (%p128) target = $region28
      $region27: #{tpu_custom_call.1} parent=23 // pred_region
        %p131 = scmp.lt.s32.totalorder %s9, 1
        %s132 = scalar_select %p131, %s9, 1
        %s133 = smul.addr %s132, 32
        %s134 = smul.addr %s133, 8
        %s135 = scalar_lea.vmem %s0, %s134
      $region28: #{tpu_custom_call.1} parent=23 // pred_fallthru
        _
    $region24: #{tpu_custom_call.1} parent=5 // pred_fallthru
      _
    %p136 = scmp.le.s32.totalorder 1, %s9
    %p137 = scmp.lt.s32.totalorder %s9, 3
    %p138 = pnand %p136, %p137
    %p139 = pneg %p138
    // Predicated region
    $region29: #{tpu_custom_call.1} parent=5 // pred_check
      _
    $region30: #{tpu_custom_call.1} parent=5 // pred_check_branch
      %141 = sbr.rel (%p138) target = $region32
    $region31: #{tpu_custom_call.1} parent=5 // pred_region
      %s142 = ssub.s32 %s9, 1
      %p143 = scmp.lt.s32.totalorder %s14, 1
      %s144 = scalar_select %p143, %s14, 1
      %s145 = smul.addr %s144, 32
      %s146 = smul.addr %s145, 8
      %s147 = scalar_lea.vmem %s0, %s146
      %p148 = pneg %p35
      %p149 = pneg %p32
      %p150 = pneg %p56
      %p151 = pneg %p53
      %p152 = pneg %p77
      %p153 = pneg %p74
      %p154 = pneg %p103
      %p155 = pneg %p100
      %p156 = scmp.lt.s32.totalorder %s14, 1
      %s157 = scalar_select %p156, %s14, 1
      %s158 = smul.addr %s157, 32
      %s159 = smul.addr %s158, 8
      %s160 = scalar_lea.vmem %s3, %s159
      %p161 = scmp.lt.s32.totalorder %s14, 1
      %s162 = scalar_select %p161, %s14, 1
      %s163 = smul.addr %s162, 32
      %s164 = smul.addr %s163, 8
      %s165 = scalar_lea.vmem %s0, %s164
      %p166 = scmp.lt.s32.totalorder %s14, 1
      %s167 = scalar_select %p166, %s14, 1
      %s168 = smul.addr %s167, 32
      %s169 = smul.addr %s168, 8
      %s170 = scalar_lea.vmem %s3, %s169
      %v171 = vld [vmem:[%s165] sm:$0xff]
      %v172 = vld [vmem:[%s165 + $0x8] sm:$0xff]
      %v173 = vld [vmem:[%s165 + $0x10] sm:$0xff]
      %v174 = vld [vmem:[%s165 + $0x18] sm:$0xff]
      %v175 = vld [vmem:[%s165 + $0x20] sm:$0xff]
      %v176 = vld [vmem:[%s165 + $0x28] sm:$0xff]
      %v177 = vld [vmem:[%s165 + $0x30] sm:$0xff]
      %v178 = vld [vmem:[%s165 + $0x38] sm:$0xff]
      %v179 = vld [vmem:[%s165 + $0x40] sm:$0xff]
      %v180 = vld [vmem:[%s165 + $0x48] sm:$0xff]
      %v181 = vld [vmem:[%s165 + $0x50] sm:$0xff]
      %v182 = vld [vmem:[%s165 + $0x58] sm:$0xff]
      %v183 = vld [vmem:[%s165 + $0x60] sm:$0xff]
      %v184 = vld [vmem:[%s165 + $0x68] sm:$0xff]
      %v185 = vld [vmem:[%s165 + $0x70] sm:$0xff]
      %v186 = vld [vmem:[%s165 + $0x78] sm:$0xff]
      %v187 = vld [vmem:[%s165 + $0x80] sm:$0xff]
      %v188 = vld [vmem:[%s165 + $0x88] sm:$0xff]
      %v189 = vld [vmem:[%s165 + $0x90] sm:$0xff]
      %v190 = vld [vmem:[%s165 + $0x98] sm:$0xff]
      %v191 = vld [vmem:[%s165 + $0xa0] sm:$0xff]
      %v192 = vld [vmem:[%s165 + $0xa8] sm:$0xff]
      %v193 = vld [vmem:[%s165 + $0xb0] sm:$0xff]
      %v194 = vld [vmem:[%s165 + $0xb8] sm:$0xff]
      %v195 = vld [vmem:[%s165 + $0xc0] sm:$0xff]
      %v196 = vld [vmem:[%s165 + $0xc8] sm:$0xff]
      %v197 = vld [vmem:[%s165 + $0xd0] sm:$0xff]
      %v198 = vld [vmem:[%s165 + $0xd8] sm:$0xff]
      %v199 = vld [vmem:[%s165 + $0xe0] sm:$0xff]
      %v200 = vld [vmem:[%s165 + $0xe8] sm:$0xff]
      %v201 = vld [vmem:[%s165 + $0xf0] sm:$0xff]
      %v202 = vld [vmem:[%s165 + $0xf8] sm:$0xff]
      %v219 = vrot.slane %v173, 1
      %v220 = vrot.slane %v171, 1
      %v221 = vrot.slane %v175, 1
      %v222 = vrot.slane %v177, 1
      %v223 = vrot.slane %v179, 1
      %v224 = vrot.slane %v181, 1
      %v225 = vrot.slane %v183, 1
      %v226 = vrot.slane %v185, 1
      %v227 = vrot.slane %v187, 1
      %v228 = vrot.slane %v189, 1
      %v229 = vrot.slane %v191, 1
      %v230 = vrot.slane %v193, 1
      %v231 = vrot.slane %v195, 1
      %v232 = vrot.slane %v197, 1
      %v233 = vrot.slane %v199, 1
      %v234 = vrot.slane %v201, 1
      %vm267 = vcmask 1040384
      %v268 = vrot.slane %v173, 7
      %v269 = vrot.slane %v174, 7
      %v270 = vsel %vm267, %v268, %v269
      %v271 = vrot.slane %v171, 7
      %v272 = vrot.slane %v172, 7
      %v273 = vsel %vm267, %v271, %v272
      %v274 = vrot.slane %v175, 7
      %v275 = vrot.slane %v176, 7
      %v276 = vsel %vm267, %v274, %v275
      %v277 = vrot.slane %v177, 7
      %v278 = vrot.slane %v178, 7
      %v279 = vsel %vm267, %v277, %v278
      %v280 = vrot.slane %v179, 7
      %v281 = vrot.slane %v180, 7
      %v282 = vsel %vm267, %v280, %v281
      %v283 = vrot.slane %v181, 7
      %v284 = vrot.slane %v182, 7
      %v285 = vsel %vm267, %v283, %v284
      %v286 = vrot.slane %v183, 7
      %v287 = vrot.slane %v184, 7
      %v288 = vsel %vm267, %v286, %v287
      %v289 = vrot.slane %v185, 7
      %v290 = vrot.slane %v186, 7
      %v291 = vsel %vm267, %v289, %v290
      %v292 = vrot.slane %v187, 7
      %v293 = vrot.slane %v188, 7
      %v294 = vsel %vm267, %v292, %v293
      %v295 = vrot.slane %v189, 7
      %v296 = vrot.slane %v190, 7
      %v297 = vsel %vm267, %v295, %v296
      %v298 = vrot.slane %v191, 7
      %v299 = vrot.slane %v192, 7
      %v300 = vsel %vm267, %v298, %v299
      %v301 = vrot.slane %v193, 7
      %v302 = vrot.slane %v194, 7
      %v303 = vsel %vm267, %v301, %v302
      %v304 = vrot.slane %v195, 7
      %v305 = vrot.slane %v196, 7
      %v306 = vsel %vm267, %v304, %v305
      %v307 = vrot.slane %v197, 7
      %v308 = vrot.slane %v198, 7
      %v309 = vsel %vm267, %v307, %v308
      %v310 = vrot.slane %v199, 7
      %v311 = vrot.slane %v200, 7
      %v312 = vsel %vm267, %v310, %v311
      %v313 = vrot.slane %v201, 7
      %v314 = vrot.slane %v202, 7
      %v315 = vsel %vm267, %v313, %v314
      %v364 = vrot.slane %v174, 5
      %v365 = vrot.slane %v172, 5
      %v366 = vrot.slane %v176, 5
      %v367 = vrot.slane %v178, 5
      %v368 = vrot.slane %v180, 5
      %v369 = vrot.slane %v182, 5
      %v370 = vrot.slane %v184, 5
      %v371 = vrot.slane %v186, 5
      %v372 = vrot.slane %v188, 5
      %v373 = vrot.slane %v190, 5
      %v374 = vrot.slane %v192, 5
      %v375 = vrot.slane %v194, 5
      %v376 = vrot.slane %v196, 5
      %v377 = vrot.slane %v198, 5
      %v378 = vrot.slane %v200, 5
      %v379 = vrot.slane %v202, 5
      %v396 = vsel %vm267, %v219, %v268
      %v397 = vsel %vm267, %v220, %v271
      %v398 = vsel %vm267, %v221, %v274
      %v399 = vsel %vm267, %v222, %v277
      %v400 = vsel %vm267, %v223, %v280
      %v401 = vsel %vm267, %v224, %v283
      %v402 = vsel %vm267, %v225, %v286
      %v403 = vsel %vm267, %v226, %v289
      %v404 = vsel %vm267, %v227, %v292
      %v405 = vsel %vm267, %v228, %v295
      %v406 = vsel %vm267, %v229, %v298
      %v407 = vsel %vm267, %v230, %v301
      %v408 = vsel %vm267, %v231, %v304
      %v409 = vsel %vm267, %v232, %v307
      %v410 = vsel %vm267, %v233, %v310
      %v411 = vsel %vm267, %v234, %v313
      %v412 = vsel %vm267, %v269, %v364
      %v413 = vsel %vm267, %v272, %v365
      %v414 = vsel %vm267, %v275, %v366
      %v415 = vsel %vm267, %v278, %v367
      %v416 = vsel %vm267, %v281, %v368
      %v417 = vsel %vm267, %v284, %v369
      %v418 = vsel %vm267, %v287, %v370
      %v419 = vsel %vm267, %v290, %v371
      %v420 = vsel %vm267, %v293, %v372
      %v421 = vsel %vm267, %v296, %v373
      %v422 = vsel %vm267, %v299, %v374
      %v423 = vsel %vm267, %v302, %v375
      %v424 = vsel %vm267, %v305, %v376
      %v425 = vsel %vm267, %v308, %v377
      %v426 = vsel %vm267, %v311, %v378
      %v427 = vsel %vm267, %v314, %v379
      %vm428 = vcmask 31744
      %429 = vst.msk [vmem:[#allocation2] sm:$0xff] %vm428, %v396
      %430 = vst.msk [vmem:[#allocation2 + $0x8] sm:$0xff] %vm428, %v270
      %vm431 = vcmask 25600
      %432 = vst.msk [vmem:[#allocation2 + $0x10] sm:$0x3] %vm431, %v412
      %433 = vst.msk [vmem:[#allocation2 + $0x18] sm:$0xff] %vm428, %v397
      %434 = vst.msk [vmem:[#allocation2 + $0x20] sm:$0xff] %vm428, %v273
      %435 = vst.msk [vmem:[#allocation2 + $0x28] sm:$0x3] %vm431, %v413
      %436 = vst.msk [vmem:[#allocation2 + $0x30] sm:$0xff] %vm428, %v396
      %437 = vst.msk [vmem:[#allocation2 + $0x38] sm:$0xff] %vm428, %v270
      %438 = vst.msk [vmem:[#allocation2 + $0x40] sm:$0x3] %vm431, %v412
      %439 = vst.msk [vmem:[#allocation2 + $0x48] sm:$0xff] %vm428, %v398
      %440 = vst.msk [vmem:[#allocation2 + $0x50] sm:$0xff] %vm428, %v276
      %441 = vst.msk [vmem:[#allocation2 + $0x58] sm:$0x3] %vm431, %v414
      %442 = vst.msk [vmem:[#allocation2 + $0x60] sm:$0xff] %vm428, %v399
      %443 = vst.msk [vmem:[#allocation2 + $0x68] sm:$0xff] %vm428, %v279
      %444 = vst.msk [vmem:[#allocation2 + $0x70] sm:$0x3] %vm431, %v415
      %445 = vst.msk [vmem:[#allocation2 + $0x78] sm:$0xff] %vm428, %v400
      %446 = vst.msk [vmem:[#allocation2 + $0x80] sm:$0xff] %vm428, %v282
      %447 = vst.msk [vmem:[#allocation2 + $0x88] sm:$0x3] %vm431, %v416
      %448 = vst.msk [vmem:[#allocation2 + $0x90] sm:$0xff] %vm428, %v401
      %449 = vst.msk [vmem:[#allocation2 + $0x98] sm:$0xff] %vm428, %v285
      %450 = vst.msk [vmem:[#allocation2 + $0xa0] sm:$0x3] %vm431, %v417
      %451 = vst.msk [vmem:[#allocation2 + $0xa8] sm:$0xff] %vm428, %v402
      %452 = vst.msk [vmem:[#allocation2 + $0xb0] sm:$0xff] %vm428, %v288
      %453 = vst.msk [vmem:[#allocation2 + $0xb8] sm:$0x3] %vm431, %v418
      %454 = vst.msk [vmem:[#allocation2 + $0xc0] sm:$0xff] %vm428, %v403
      %455 = vst.msk [vmem:[#allocation2 + $0xc8] sm:$0xff] %vm428, %v291
      %456 = vst.msk [vmem:[#allocation2 + $0xd0] sm:$0x3] %vm431, %v419
      %457 = vst.msk [vmem:[#allocation2 + $0xd8] sm:$0xff] %vm428, %v404
      %458 = vst.msk [vmem:[#allocation2 + $0xe0] sm:$0xff] %vm428, %v294
      %459 = vst.msk [vmem:[#allocation2 + $0xe8] sm:$0x3] %vm431, %v420
      %460 = vst.msk [vmem:[#allocation2 + $0xf0] sm:$0xff] %vm428, %v405
      %461 = vst.msk [vmem:[#allocation2 + $0xf8] sm:$0xff] %vm428, %v297
      %462 = vst.msk [vmem:[#allocation2 + $0x100] sm:$0x3] %vm431, %v421
      %463 = vst.msk [vmem:[#allocation2 + $0x108] sm:$0xff] %vm428, %v406
      %464 = vst.msk [vmem:[#allocation2 + $0x110] sm:$0xff] %vm428, %v300
      %465 = vst.msk [vmem:[#allocation2 + $0x118] sm:$0x3] %vm431, %v422
      %466 = vst.msk [vmem:[#allocation2 + $0x120] sm:$0xff] %vm428, %v407
      %467 = vst.msk [vmem:[#allocation2 + $0x128] sm:$0xff] %vm428, %v303
      %468 = vst.msk [vmem:[#allocation2 + $0x130] sm:$0x3] %vm431, %v423
      %469 = vst.msk [vmem:[#allocation2 + $0x138] sm:$0xff] %vm428, %v408
      %470 = vst.msk [vmem:[#allocation2 + $0x140] sm:$0xff] %vm428, %v306
      %471 = vst.msk [vmem:[#allocation2 + $0x148] sm:$0x3] %vm431, %v424
      %472 = vst.msk [vmem:[#allocation2 + $0x150] sm:$0xff] %vm428, %v409
      %473 = vst.msk [vmem:[#allocation2 + $0x158] sm:$0xff] %vm428, %v309
      %474 = vst.msk [vmem:[#allocation2 + $0x160] sm:$0x3] %vm431, %v425
      %475 = vst.msk [vmem:[#allocation2 + $0x168] sm:$0xff] %vm428, %v410
      %476 = vst.msk [vmem:[#allocation2 + $0x170] sm:$0xff] %vm428, %v312
      %477 = vst.msk [vmem:[#allocation2 + $0x178] sm:$0x3] %vm431, %v426
      %478 = vst.msk [vmem:[#allocation2 + $0x180] sm:$0xff] %vm428, %v411
      %479 = vst.msk [vmem:[#allocation2 + $0x188] sm:$0xff] %vm428, %v315
      %480 = vst.msk [vmem:[#allocation2 + $0x190] sm:$0x3] %vm431, %v427
      %481 = vst.msk [vmem:[#allocation2 + $0x198] sm:$0xff] %vm428, %v410
      %482 = vst.msk [vmem:[#allocation2 + $0x1a0] sm:$0xff] %vm428, %v312
      %483 = vst.msk [vmem:[#allocation2 + $0x1a8] sm:$0x3] %vm431, %v426
      %v484 = vld [vmem:[#allocation2] sm:$0xff]
      %v485 = vld [vmem:[#allocation2 + $0x8] sm:$0xff]
      %v486 = vld [vmem:[#allocation2 + $0x18] sm:$0xff]
      %v487 = vld [vmem:[#allocation2 + $0x20] sm:$0xff]
      %v488 = vld [vmem:[#allocation2 + $0x30] sm:$0xff]
      %v489 = vld [vmem:[#allocation2 + $0x38] sm:$0xff]
      %v490 = vld [vmem:[#allocation2 + $0x48] sm:$0xff]
      %v491 = vld [vmem:[#allocation2 + $0x50] sm:$0xff]
      %v492 = vld [vmem:[#allocation2 + $0x60] sm:$0xff]
      %v493 = vld [vmem:[#allocation2 + $0x68] sm:$0xff]
      %v494 = vld [vmem:[#allocation2 + $0x78] sm:$0xff]
      %v495 = vld [vmem:[#allocation2 + $0x80] sm:$0xff]
      %v496 = vld [vmem:[#allocation2 + $0x90] sm:$0xff]
      %v497 = vld [vmem:[#allocation2 + $0x98] sm:$0xff]
      %v498 = vld [vmem:[#allocation2 + $0xa8] sm:$0xff]
      %v499 = vld [vmem:[#allocation2 + $0xb0] sm:$0xff]
      %v500 = vld [vmem:[#allocation2 + $0xc0] sm:$0xff]
      %v501 = vld [vmem:[#allocation2 + $0xc8] sm:$0xff]
      %v502 = vld [vmem:[#allocation2 + $0xd8] sm:$0xff]
      %v503 = vld [vmem:[#allocation2 + $0xe0] sm:$0xff]
      %v504 = vld [vmem:[#allocation2 + $0xf0] sm:$0xff]
      %v505 = vld [vmem:[#allocation2 + $0xf8] sm:$0xff]
      %v506 = vld [vmem:[#allocation2 + $0x108] sm:$0xff]
      %v507 = vld [vmem:[#allocation2 + $0x110] sm:$0xff]
      %v508 = vld [vmem:[#allocation2 + $0x120] sm:$0xff]
      %v509 = vld [vmem:[#allocation2 + $0x128] sm:$0xff]
      %v510 = vld [vmem:[#allocation2 + $0x138] sm:$0xff]
      %v511 = vld [vmem:[#allocation2 + $0x140] sm:$0xff]
      %v512 = vld [vmem:[#allocation2 + $0x150] sm:$0xff]
      %v513 = vld [vmem:[#allocation2 + $0x158] sm:$0xff]
      %v514 = vld [vmem:[#allocation2 + $0x168] sm:$0xff]
      %v515 = vld [vmem:[#allocation2 + $0x170] sm:$0xff]
      %v516 = vld [vmem:[#allocation2 + $0x1] sm:$0xff]
      %v517 = vld [vmem:[#allocation2 + $0x9] sm:$0xff]
      %v518 = vld [vmem:[#allocation2 + $0x19] sm:$0xff]
      %v519 = vld [vmem:[#allocation2 + $0x21] sm:$0xff]
      %v520 = vld [vmem:[#allocation2 + $0x31] sm:$0xff]
      %v521 = vld [vmem:[#allocation2 + $0x39] sm:$0xff]
      %v522 = vld [vmem:[#allocation2 + $0x49] sm:$0xff]
      %v523 = vld [vmem:[#allocation2 + $0x51] sm:$0xff]
      %v524 = vld [vmem:[#allocation2 + $0x61] sm:$0xff]
      %v525 = vld [vmem:[#allocation2 + $0x69] sm:$0xff]
      %v526 = vld [vmem:[#allocation2 + $0x79] sm:$0xff]
      %v527 = vld [vmem:[#allocation2 + $0x81] sm:$0xff]
      %v528 = vld [vmem:[#allocation2 + $0x91] sm:$0xff]
      %v529 = vld [vmem:[#allocation2 + $0x99] sm:$0xff]
      %v530 = vld [vmem:[#allocation2 + $0xa9] sm:$0xff]
      %v531 = vld [vmem:[#allocation2 + $0xb1] sm:$0xff]
      %v532 = vld [vmem:[#allocation2 + $0xc1] sm:$0xff]
      %v533 = vld [vmem:[#allocation2 + $0xc9] sm:$0xff]
      %v534 = vld [vmem:[#allocation2 + $0xd9] sm:$0xff]
      %v535 = vld [vmem:[#allocation2 + $0xe1] sm:$0xff]
      %v536 = vld [vmem:[#allocation2 + $0xf1] sm:$0xff]
      %v537 = vld [vmem:[#allocation2 + $0xf9] sm:$0xff]
      %v538 = vld [vmem:[#allocation2 + $0x109] sm:$0xff]
      %v539 = vld [vmem:[#allocation2 + $0x111] sm:$0xff]
      %v540 = vld [vmem:[#allocation2 + $0x121] sm:$0xff]
      %v541 = vld [vmem:[#allocation2 + $0x129] sm:$0xff]
      %v542 = vld [vmem:[#allocation2 + $0x139] sm:$0xff]
      %v543 = vld [vmem:[#allocation2 + $0x141] sm:$0xff]
      %v544 = vld [vmem:[#allocation2 + $0x151] sm:$0xff]
      %v545 = vld [vmem:[#allocation2 + $0x159] sm:$0xff]
      %v546 = vld [vmem:[#allocation2 + $0x169] sm:$0xff]
      %v547 = vld [vmem:[#allocation2 + $0x171] sm:$0xff]
      %v548 = vld [vmem:[#allocation2 + $0x2] sm:$0xff]
      %v549 = vld [vmem:[#allocation2 + $0xa] sm:$0xff]
      %v550 = vld [vmem:[#allocation2 + $0x1a] sm:$0xff]
      %v551 = vld [vmem:[#allocation2 + $0x22] sm:$0xff]
      %v552 = vld [vmem:[#allocation2 + $0x32] sm:$0xff]
      %v553 = vld [vmem:[#allocation2 + $0x3a] sm:$0xff]
      %v554 = vld [vmem:[#allocation2 + $0x4a] sm:$0xff]
      %v555 = vld [vmem:[#allocation2 + $0x52] sm:$0xff]
      %v556 = vld [vmem:[#allocation2 + $0x62] sm:$0xff]
      %v557 = vld [vmem:[#allocation2 + $0x6a] sm:$0xff]
      %v558 = vld [vmem:[#allocation2 + $0x7a] sm:$0xff]
      %v559 = vld [vmem:[#allocation2 + $0x82] sm:$0xff]
      %v560 = vld [vmem:[#allocation2 + $0x92] sm:$0xff]
      %v561 = vld [vmem:[#allocation2 + $0x9a] sm:$0xff]
      %v562 = vld [vmem:[#allocation2 + $0xaa] sm:$0xff]
      %v563 = vld [vmem:[#allocation2 + $0xb2] sm:$0xff]
      %v564 = vld [vmem:[#allocation2 + $0xc2] sm:$0xff]
      %v565 = vld [vmem:[#allocation2 + $0xca] sm:$0xff]
      %v566 = vld [vmem:[#allocation2 + $0xda] sm:$0xff]
      %v567 = vld [vmem:[#allocation2 + $0xe2] sm:$0xff]
      %v568 = vld [vmem:[#allocation2 + $0xf2] sm:$0xff]
      %v569 = vld [vmem:[#allocation2 + $0xfa] sm:$0xff]
      %v570 = vld [vmem:[#allocation2 + $0x10a] sm:$0xff]
      %v571 = vld [vmem:[#allocation2 + $0x112] sm:$0xff]
      %v572 = vld [vmem:[#allocation2 + $0x122] sm:$0xff]
      %v573 = vld [vmem:[#allocation2 + $0x12a] sm:$0xff]
      %v574 = vld [vmem:[#allocation2 + $0x13a] sm:$0xff]
      %v575 = vld [vmem:[#allocation2 + $0x142] sm:$0xff]
      %v576 = vld [vmem:[#allocation2 + $0x152] sm:$0xff]
      %v577 = vld [vmem:[#allocation2 + $0x15a] sm:$0xff]
      %v578 = vld [vmem:[#allocation2 + $0x16a] sm:$0xff]
      %v579 = vld [vmem:[#allocation2 + $0x172] sm:$0xff]
      %s580 = scalar_lea.vmem [#allocation2], 24
      %v581 = vld [vmem:[%s580] sm:$0xff]
      %v582 = vld [vmem:[%s580 + $0x8] sm:$0xff]
      %v583 = vld [vmem:[%s580 + $0x18] sm:$0xff]
      %v584 = vld [vmem:[%s580 + $0x20] sm:$0xff]
      %v585 = vld [vmem:[%s580 + $0x30] sm:$0xff]
      %v586 = vld [vmem:[%s580 + $0x38] sm:$0xff]
      %v587 = vld [vmem:[%s580 + $0x48] sm:$0xff]
      %v588 = vld [vmem:[%s580 + $0x50] sm:$0xff]
      %v589 = vld [vmem:[%s580 + $0x60] sm:$0xff]
      %v590 = vld [vmem:[%s580 + $0x68] sm:$0xff]
      %v591 = vld [vmem:[%s580 + $0x78] sm:$0xff]
      %v592 = vld [vmem:[%s580 + $0x80] sm:$0xff]
      %v593 = vld [vmem:[%s580 + $0x90] sm:$0xff]
      %v594 = vld [vmem:[%s580 + $0x98] sm:$0xff]
      %v595 = vld [vmem:[%s580 + $0xa8] sm:$0xff]
      %v596 = vld [vmem:[%s580 + $0xb0] sm:$0xff]
      %v597 = vld [vmem:[%s580 + $0xc0] sm:$0xff]
      %v598 = vld [vmem:[%s580 + $0xc8] sm:$0xff]
      %v599 = vld [vmem:[%s580 + $0xd8] sm:$0xff]
      %v600 = vld [vmem:[%s580 + $0xe0] sm:$0xff]
      %v601 = vld [vmem:[%s580 + $0xf0] sm:$0xff]
      %v602 = vld [vmem:[%s580 + $0xf8] sm:$0xff]
      %v603 = vld [vmem:[%s580 + $0x108] sm:$0xff]
      %v604 = vld [vmem:[%s580 + $0x110] sm:$0xff]
      %v605 = vld [vmem:[%s580 + $0x120] sm:$0xff]
      %v606 = vld [vmem:[%s580 + $0x128] sm:$0xff]
      %v607 = vld [vmem:[%s580 + $0x138] sm:$0xff]
      %v608 = vld [vmem:[%s580 + $0x140] sm:$0xff]
      %v609 = vld [vmem:[%s580 + $0x150] sm:$0xff]
      %v610 = vld [vmem:[%s580 + $0x158] sm:$0xff]
      %v611 = vld [vmem:[%s580 + $0x168] sm:$0xff]
      %v612 = vld [vmem:[%s580 + $0x170] sm:$0xff]
      %v613 = vld [vmem:[%s580 + $0x1] sm:$0xff]
      %v614 = vld [vmem:[%s580 + $0x9] sm:$0xff]
      %v615 = vld [vmem:[%s580 + $0x19] sm:$0xff]
      %v616 = vld [vmem:[%s580 + $0x21] sm:$0xff]
      %v617 = vld [vmem:[%s580 + $0x31] sm:$0xff]
      %v618 = vld [vmem:[%s580 + $0x39] sm:$0xff]
      %v619 = vld [vmem:[%s580 + $0x49] sm:$0xff]
      %v620 = vld [vmem:[%s580 + $0x51] sm:$0xff]
      %v621 = vld [vmem:[%s580 + $0x61] sm:$0xff]
      %v622 = vld [vmem:[%s580 + $0x69] sm:$0xff]
      %v623 = vld [vmem:[%s580 + $0x79] sm:$0xff]
      %v624 = vld [vmem:[%s580 + $0x81] sm:$0xff]
      %v625 = vld [vmem:[%s580 + $0x91] sm:$0xff]
      %v626 = vld [vmem:[%s580 + $0x99] sm:$0xff]
      %v627 = vld [vmem:[%s580 + $0xa9] sm:$0xff]
      %v628 = vld [vmem:[%s580 + $0xb1] sm:$0xff]
      %v629 = vld [vmem:[%s580 + $0xc1] sm:$0xff]
      %v630 = vld [vmem:[%s580 + $0xc9] sm:$0xff]
      %v631 = vld [vmem:[%s580 + $0xd9] sm:$0xff]
      %v632 = vld [vmem:[%s580 + $0xe1] sm:$0xff]
      %v633 = vld [vmem:[%s580 + $0xf1] sm:$0xff]
      %v634 = vld [vmem:[%s580 + $0xf9] sm:$0xff]
      %v635 = vld [vmem:[%s580 + $0x109] sm:$0xff]
      %v636 = vld [vmem:[%s580 + $0x111] sm:$0xff]
      %v637 = vld [vmem:[%s580 + $0x121] sm:$0xff]
      %v638 = vld [vmem:[%s580 + $0x129] sm:$0xff]
      %v639 = vld [vmem:[%s580 + $0x139] sm:$0xff]
      %v640 = vld [vmem:[%s580 + $0x141] sm:$0xff]
      %v641 = vld [vmem:[%s580 + $0x151] sm:$0xff]
      %v642 = vld [vmem:[%s580 + $0x159] sm:$0xff]
      %v643 = vld [vmem:[%s580 + $0x169] sm:$0xff]
      %v644 = vld [vmem:[%s580 + $0x171] sm:$0xff]
      %v645 = vld [vmem:[%s580 + $0x2] sm:$0xff]
      %v646 = vld [vmem:[%s580 + $0xa] sm:$0xff]
      %v647 = vld [vmem:[%s580 + $0x1a] sm:$0xff]
      %v648 = vld [vmem:[%s580 + $0x22] sm:$0xff]
      %v649 = vld [vmem:[%s580 + $0x32] sm:$0xff]
      %v650 = vld [vmem:[%s580 + $0x3a] sm:$0xff]
      %v651 = vld [vmem:[%s580 + $0x4a] sm:$0xff]
      %v652 = vld [vmem:[%s580 + $0x52] sm:$0xff]
      %v653 = vld [vmem:[%s580 + $0x62] sm:$0xff]
      %v654 = vld [vmem:[%s580 + $0x6a] sm:$0xff]
      %v655 = vld [vmem:[%s580 + $0x7a] sm:$0xff]
      %v656 = vld [vmem:[%s580 + $0x82] sm:$0xff]
      %v657 = vld [vmem:[%s580 + $0x92] sm:$0xff]
      %v658 = vld [vmem:[%s580 + $0x9a] sm:$0xff]
      %v659 = vld [vmem:[%s580 + $0xaa] sm:$0xff]
      %v660 = vld [vmem:[%s580 + $0xb2] sm:$0xff]
      %v661 = vld [vmem:[%s580 + $0xc2] sm:$0xff]
      %v662 = vld [vmem:[%s580 + $0xca] sm:$0xff]
      %v663 = vld [vmem:[%s580 + $0xda] sm:$0xff]
      %v664 = vld [vmem:[%s580 + $0xe2] sm:$0xff]
      %v665 = vld [vmem:[%s580 + $0xf2] sm:$0xff]
      %v666 = vld [vmem:[%s580 + $0xfa] sm:$0xff]
      %v667 = vld [vmem:[%s580 + $0x10a] sm:$0xff]
      %v668 = vld [vmem:[%s580 + $0x112] sm:$0xff]
      %v669 = vld [vmem:[%s580 + $0x122] sm:$0xff]
      %v670 = vld [vmem:[%s580 + $0x12a] sm:$0xff]
      %v671 = vld [vmem:[%s580 + $0x13a] sm:$0xff]
      %v672 = vld [vmem:[%s580 + $0x142] sm:$0xff]
      %v673 = vld [vmem:[%s580 + $0x152] sm:$0xff]
      %v674 = vld [vmem:[%s580 + $0x15a] sm:$0xff]
      %v675 = vld [vmem:[%s580 + $0x16a] sm:$0xff]
      %v676 = vld [vmem:[%s580 + $0x172] sm:$0xff]
      %s677 = scalar_lea.vmem [#allocation2], 48
      %v678 = vld [vmem:[%s677] sm:$0xff]
      %v679 = vld [vmem:[%s677 + $0x8] sm:$0xff]
      %v680 = vld [vmem:[%s677 + $0x18] sm:$0xff]
      %v681 = vld [vmem:[%s677 + $0x20] sm:$0xff]
      %v682 = vld [vmem:[%s677 + $0x30] sm:$0xff]
      %v683 = vld [vmem:[%s677 + $0x38] sm:$0xff]
      %v684 = vld [vmem:[%s677 + $0x48] sm:$0xff]
      %v685 = vld [vmem:[%s677 + $0x50] sm:$0xff]
      %v686 = vld [vmem:[%s677 + $0x60] sm:$0xff]
      %v687 = vld [vmem:[%s677 + $0x68] sm:$0xff]
      %v688 = vld [vmem:[%s677 + $0x78] sm:$0xff]
      %v689 = vld [vmem:[%s677 + $0x80] sm:$0xff]
      %v690 = vld [vmem:[%s677 + $0x90] sm:$0xff]
      %v691 = vld [vmem:[%s677 + $0x98] sm:$0xff]
      %v692 = vld [vmem:[%s677 + $0xa8] sm:$0xff]
      %v693 = vld [vmem:[%s677 + $0xb0] sm:$0xff]
      %v694 = vld [vmem:[%s677 + $0xc0] sm:$0xff]
      %v695 = vld [vmem:[%s677 + $0xc8] sm:$0xff]
      %v696 = vld [vmem:[%s677 + $0xd8] sm:$0xff]
      %v697 = vld [vmem:[%s677 + $0xe0] sm:$0xff]
      %v698 = vld [vmem:[%s677 + $0xf0] sm:$0xff]
      %v699 = vld [vmem:[%s677 + $0xf8] sm:$0xff]
      %v700 = vld [vmem:[%s677 + $0x108] sm:$0xff]
      %v701 = vld [vmem:[%s677 + $0x110] sm:$0xff]
      %v702 = vld [vmem:[%s677 + $0x120] sm:$0xff]
      %v703 = vld [vmem:[%s677 + $0x128] sm:$0xff]
      %v704 = vld [vmem:[%s677 + $0x138] sm:$0xff]
      %v705 = vld [vmem:[%s677 + $0x140] sm:$0xff]
      %v706 = vld [vmem:[%s677 + $0x150] sm:$0xff]
      %v707 = vld [vmem:[%s677 + $0x158] sm:$0xff]
      %v708 = vld [vmem:[%s677 + $0x168] sm:$0xff]
      %v709 = vld [vmem:[%s677 + $0x170] sm:$0xff]
      %v710 = vld [vmem:[%s677 + $0x1] sm:$0xff]
      %v711 = vld [vmem:[%s677 + $0x9] sm:$0xff]
      %v712 = vld [vmem:[%s677 + $0x19] sm:$0xff]
      %v713 = vld [vmem:[%s677 + $0x21] sm:$0xff]
      %v714 = vld [vmem:[%s677 + $0x31] sm:$0xff]
      %v715 = vld [vmem:[%s677 + $0x39] sm:$0xff]
      %v716 = vld [vmem:[%s677 + $0x49] sm:$0xff]
      %v717 = vld [vmem:[%s677 + $0x51] sm:$0xff]
      %v718 = vld [vmem:[%s677 + $0x61] sm:$0xff]
      %v719 = vld [vmem:[%s677 + $0x69] sm:$0xff]
      %v720 = vld [vmem:[%s677 + $0x79] sm:$0xff]
      %v721 = vld [vmem:[%s677 + $0x81] sm:$0xff]
      %v722 = vld [vmem:[%s677 + $0x91] sm:$0xff]
      %v723 = vld [vmem:[%s677 + $0x99] sm:$0xff]
      %v724 = vld [vmem:[%s677 + $0xa9] sm:$0xff]
      %v725 = vld [vmem:[%s677 + $0xb1] sm:$0xff]
      %v726 = vld [vmem:[%s677 + $0xc1] sm:$0xff]
      %v727 = vld [vmem:[%s677 + $0xc9] sm:$0xff]
      %v728 = vld [vmem:[%s677 + $0xd9] sm:$0xff]
      %v729 = vld [vmem:[%s677 + $0xe1] sm:$0xff]
      %v730 = vld [vmem:[%s677 + $0xf1] sm:$0xff]
      %v731 = vld [vmem:[%s677 + $0xf9] sm:$0xff]
      %v732 = vld [vmem:[%s677 + $0x109] sm:$0xff]
      %v733 = vld [vmem:[%s677 + $0x111] sm:$0xff]
      %v734 = vld [vmem:[%s677 + $0x121] sm:$0xff]
      %v735 = vld [vmem:[%s677 + $0x129] sm:$0xff]
      %v736 = vld [vmem:[%s677 + $0x139] sm:$0xff]
      %v737 = vld [vmem:[%s677 + $0x141] sm:$0xff]
      %v738 = vld [vmem:[%s677 + $0x151] sm:$0xff]
      %v739 = vld [vmem:[%s677 + $0x159] sm:$0xff]
      %v740 = vld [vmem:[%s677 + $0x169] sm:$0xff]
      %v741 = vld [vmem:[%s677 + $0x171] sm:$0xff]
      %v742 = vld [vmem:[%s677 + $0x2] sm:$0xff]
      %v743 = vld [vmem:[%s677 + $0xa] sm:$0xff]
      %v744 = vld [vmem:[%s677 + $0x1a] sm:$0xff]
      %v745 = vld [vmem:[%s677 + $0x22] sm:$0xff]
      %v746 = vld [vmem:[%s677 + $0x32] sm:$0xff]
      %v747 = vld [vmem:[%s677 + $0x3a] sm:$0xff]
      %v748 = vld [vmem:[%s677 + $0x4a] sm:$0xff]
      %v749 = vld [vmem:[%s677 + $0x52] sm:$0xff]
      %v750 = vld [vmem:[%s677 + $0x62] sm:$0xff]
      %v751 = vld [vmem:[%s677 + $0x6a] sm:$0xff]
      %v752 = vld [vmem:[%s677 + $0x7a] sm:$0xff]
      %v753 = vld [vmem:[%s677 + $0x82] sm:$0xff]
      %v754 = vld [vmem:[%s677 + $0x92] sm:$0xff]
      %v755 = vld [vmem:[%s677 + $0x9a] sm:$0xff]
      %v756 = vld [vmem:[%s677 + $0xaa] sm:$0xff]
      %v757 = vld [vmem:[%s677 + $0xb2] sm:$0xff]
      %v758 = vld [vmem:[%s677 + $0xc2] sm:$0xff]
      %v759 = vld [vmem:[%s677 + $0xca] sm:$0xff]
      %v760 = vld [vmem:[%s677 + $0xda] sm:$0xff]
      %v761 = vld [vmem:[%s677 + $0xe2] sm:$0xff]
      %v762 = vld [vmem:[%s677 + $0xf2] sm:$0xff]
      %v763 = vld [vmem:[%s677 + $0xfa] sm:$0xff]
      %v764 = vld [vmem:[%s677 + $0x10a] sm:$0xff]
      %v765 = vld [vmem:[%s677 + $0x112] sm:$0xff]
      %v766 = vld [vmem:[%s677 + $0x122] sm:$0xff]
      %v767 = vld [vmem:[%s677 + $0x12a] sm:$0xff]
      %v768 = vld [vmem:[%s677 + $0x13a] sm:$0xff]
      %v769 = vld [vmem:[%s677 + $0x142] sm:$0xff]
      %v770 = vld [vmem:[%s677 + $0x152] sm:$0xff]
      %v771 = vld [vmem:[%s677 + $0x15a] sm:$0xff]
      %v772 = vld [vmem:[%s677 + $0x16a] sm:$0xff]
      %v773 = vld [vmem:[%s677 + $0x172] sm:$0xff]
      %806 = vrot.lane.b32.xlu0 %v516, 4
      %v807 = vpop.permute.xlu0 %806
      %808 = vrot.lane.b32.xlu0 %v517, 4
      %v809 = vpop.permute.xlu0 %808
      %810 = vrot.lane.b32.xlu0 %v518, 4
      %v811 = vpop.permute.xlu0 %810
      %812 = vrot.lane.b32.xlu0 %v519, 4
      %v813 = vpop.permute.xlu0 %812
      %814 = vrot.lane.b32.xlu0 %v520, 4
      %v815 = vpop.permute.xlu0 %814
      %816 = vrot.lane.b32.xlu0 %v521, 4
      %v817 = vpop.permute.xlu0 %816
      %818 = vrot.lane.b32.xlu0 %v522, 4
      %v819 = vpop.permute.xlu0 %818
      %820 = vrot.lane.b32.xlu0 %v523, 4
      %v821 = vpop.permute.xlu0 %820
      %822 = vrot.lane.b32.xlu0 %v524, 4
      %v823 = vpop.permute.xlu0 %822
      %824 = vrot.lane.b32.xlu0 %v525, 4
      %v825 = vpop.permute.xlu0 %824
      %826 = vrot.lane.b32.xlu0 %v526, 4
      %v827 = vpop.permute.xlu0 %826
      %828 = vrot.lane.b32.xlu0 %v527, 4
      %v829 = vpop.permute.xlu0 %828
      %830 = vrot.lane.b32.xlu0 %v528, 4
      %v831 = vpop.permute.xlu0 %830
      %832 = vrot.lane.b32.xlu0 %v529, 4
      %v833 = vpop.permute.xlu0 %832
      %834 = vrot.lane.b32.xlu0 %v530, 4
      %v835 = vpop.permute.xlu0 %834
      %836 = vrot.lane.b32.xlu0 %v531, 4
      %v837 = vpop.permute.xlu0 %836
      %838 = vrot.lane.b32.xlu0 %v532, 4
      %v839 = vpop.permute.xlu0 %838
      %840 = vrot.lane.b32.xlu0 %v533, 4
      %v841 = vpop.permute.xlu0 %840
      %842 = vrot.lane.b32.xlu0 %v534, 4
      %v843 = vpop.permute.xlu0 %842
      %844 = vrot.lane.b32.xlu0 %v535, 4
      %v845 = vpop.permute.xlu0 %844
      %846 = vrot.lane.b32.xlu0 %v536, 4
      %v847 = vpop.permute.xlu0 %846
      %848 = vrot.lane.b32.xlu0 %v537, 4
      %v849 = vpop.permute.xlu0 %848
      %850 = vrot.lane.b32.xlu0 %v538, 4
      %v851 = vpop.permute.xlu0 %850
      %852 = vrot.lane.b32.xlu0 %v539, 4
      %v853 = vpop.permute.xlu0 %852
      %854 = vrot.lane.b32.xlu0 %v540, 4
      %v855 = vpop.permute.xlu0 %854
      %856 = vrot.lane.b32.xlu0 %v541, 4
      %v857 = vpop.permute.xlu0 %856
      %858 = vrot.lane.b32.xlu0 %v542, 4
      %v859 = vpop.permute.xlu0 %858
      %860 = vrot.lane.b32.xlu0 %v543, 4
      %v861 = vpop.permute.xlu0 %860
      %862 = vrot.lane.b32.xlu0 %v544, 4
      %v863 = vpop.permute.xlu0 %862
      %864 = vrot.lane.b32.xlu0 %v545, 4
      %v865 = vpop.permute.xlu0 %864
      %866 = vrot.lane.b32.xlu0 %v546, 4
      %v867 = vpop.permute.xlu0 %866
      %868 = vrot.lane.b32.xlu0 %v547, 4
      %v869 = vpop.permute.xlu0 %868
      %934 = vrot.lane.b32.xlu0 %v548, 8
      %v935 = vpop.permute.xlu0 %934
      %936 = vrot.lane.b32.xlu0 %v549, 8
      %v937 = vpop.permute.xlu0 %936
      %938 = vrot.lane.b32.xlu0 %v550, 8
      %v939 = vpop.permute.xlu0 %938
      %940 = vrot.lane.b32.xlu0 %v551, 8
      %v941 = vpop.permute.xlu0 %940
      %942 = vrot.lane.b32.xlu0 %v552, 8
      %v943 = vpop.permute.xlu0 %942
      %944 = vrot.lane.b32.xlu0 %v553, 8
      %v945 = vpop.permute.xlu0 %944
      %946 = vrot.lane.b32.xlu0 %v554, 8
      %v947 = vpop.permute.xlu0 %946
      %948 = vrot.lane.b32.xlu0 %v555, 8
      %v949 = vpop.permute.xlu0 %948
      %950 = vrot.lane.b32.xlu0 %v556, 8
      %v951 = vpop.permute.xlu0 %950
      %952 = vrot.lane.b32.xlu0 %v557, 8
      %v953 = vpop.permute.xlu0 %952
      %954 = vrot.lane.b32.xlu0 %v558, 8
      %v955 = vpop.permute.xlu0 %954
      %956 = vrot.lane.b32.xlu0 %v559, 8
      %v957 = vpop.permute.xlu0 %956
      %958 = vrot.lane.b32.xlu0 %v560, 8
      %v959 = vpop.permute.xlu0 %958
      %960 = vrot.lane.b32.xlu0 %v561, 8
      %v961 = vpop.permute.xlu0 %960
      %962 = vrot.lane.b32.xlu0 %v562, 8
      %v963 = vpop.permute.xlu0 %962
      %964 = vrot.lane.b32.xlu0 %v563, 8
      %v965 = vpop.permute.xlu0 %964
      %966 = vrot.lane.b32.xlu0 %v564, 8
      %v967 = vpop.permute.xlu0 %966
      %968 = vrot.lane.b32.xlu0 %v565, 8
      %v969 = vpop.permute.xlu0 %968
      %970 = vrot.lane.b32.xlu0 %v566, 8
      %v971 = vpop.permute.xlu0 %970
      %972 = vrot.lane.b32.xlu0 %v567, 8
      %v973 = vpop.permute.xlu0 %972
      %974 = vrot.lane.b32.xlu0 %v568, 8
      %v975 = vpop.permute.xlu0 %974
      %976 = vrot.lane.b32.xlu0 %v569, 8
      %v977 = vpop.permute.xlu0 %976
      %978 = vrot.lane.b32.xlu0 %v570, 8
      %v979 = vpop.permute.xlu0 %978
      %980 = vrot.lane.b32.xlu0 %v571, 8
      %v981 = vpop.permute.xlu0 %980
      %982 = vrot.lane.b32.xlu0 %v572, 8
      %v983 = vpop.permute.xlu0 %982
      %984 = vrot.lane.b32.xlu0 %v573, 8
      %v985 = vpop.permute.xlu0 %984
      %986 = vrot.lane.b32.xlu0 %v574, 8
      %v987 = vpop.permute.xlu0 %986
      %988 = vrot.lane.b32.xlu0 %v575, 8
      %v989 = vpop.permute.xlu0 %988
      %990 = vrot.lane.b32.xlu0 %v576, 8
      %v991 = vpop.permute.xlu0 %990
      %992 = vrot.lane.b32.xlu0 %v577, 8
      %v993 = vpop.permute.xlu0 %992
      %994 = vrot.lane.b32.xlu0 %v578, 8
      %v995 = vpop.permute.xlu0 %994
      %996 = vrot.lane.b32.xlu0 %v579, 8
      %v997 = vpop.permute.xlu0 %996
      %1062 = vrot.lane.b32.xlu0 %v581, 12
      %v1063 = vpop.permute.xlu0 %1062
      %1064 = vrot.lane.b32.xlu0 %v582, 12
      %v1065 = vpop.permute.xlu0 %1064
      %1066 = vrot.lane.b32.xlu0 %v583, 12
      %v1067 = vpop.permute.xlu0 %1066
      %1068 = vrot.lane.b32.xlu0 %v584, 12
      %v1069 = vpop.permute.xlu0 %1068
      %1070 = vrot.lane.b32.xlu0 %v585, 12
      %v1071 = vpop.permute.xlu0 %1070
      %1072 = vrot.lane.b32.xlu0 %v586, 12
      %v1073 = vpop.permute.xlu0 %1072
      %1074 = vrot.lane.b32.xlu0 %v587, 12
      %v1075 = vpop.permute.xlu0 %1074
      %1076 = vrot.lane.b32.xlu0 %v588, 12
      %v1077 = vpop.permute.xlu0 %1076
      %1078 = vrot.lane.b32.xlu0 %v589, 12
      %v1079 = vpop.permute.xlu0 %1078
      %1080 = vrot.lane.b32.xlu0 %v590, 12
      %v1081 = vpop.permute.xlu0 %1080
      %1082 = vrot.lane.b32.xlu0 %v591, 12
      %v1083 = vpop.permute.xlu0 %1082
      %1084 = vrot.lane.b32.xlu0 %v592, 12
      %v1085 = vpop.permute.xlu0 %1084
      %1086 = vrot.lane.b32.xlu0 %v593, 12
      %v1087 = vpop.permute.xlu0 %1086
      %1088 = vrot.lane.b32.xlu0 %v594, 12
      %v1089 = vpop.permute.xlu0 %1088
      %1090 = vrot.lane.b32.xlu0 %v595, 12
      %v1091 = vpop.permute.xlu0 %1090
      %1092 = vrot.lane.b32.xlu0 %v596, 12
      %v1093 = vpop.permute.xlu0 %1092
      %1094 = vrot.lane.b32.xlu0 %v597, 12
      %v1095 = vpop.permute.xlu0 %1094
      %1096 = vrot.lane.b32.xlu0 %v598, 12
      %v1097 = vpop.permute.xlu0 %1096
      %1098 = vrot.lane.b32.xlu0 %v599, 12
      %v1099 = vpop.permute.xlu0 %1098
      %1100 = vrot.lane.b32.xlu0 %v600, 12
      %v1101 = vpop.permute.xlu0 %1100
      %1102 = vrot.lane.b32.xlu0 %v601, 12
      %v1103 = vpop.permute.xlu0 %1102
      %1104 = vrot.lane.b32.xlu0 %v602, 12
      %v1105 = vpop.permute.xlu0 %1104
      %1106 = vrot.lane.b32.xlu0 %v603, 12
      %v1107 = vpop.permute.xlu0 %1106
      %1108 = vrot.lane.b32.xlu0 %v604, 12
      %v1109 = vpop.permute.xlu0 %1108
      %1110 = vrot.lane.b32.xlu0 %v605, 12
      %v1111 = vpop.permute.xlu0 %1110
      %1112 = vrot.lane.b32.xlu0 %v606, 12
      %v1113 = vpop.permute.xlu0 %1112
      %1114 = vrot.lane.b32.xlu0 %v607, 12
      %v1115 = vpop.permute.xlu0 %1114
      %1116 = vrot.lane.b32.xlu0 %v608, 12
      %v1117 = vpop.permute.xlu0 %1116
      %1118 = vrot.lane.b32.xlu0 %v609, 12
      %v1119 = vpop.permute.xlu0 %1118
      %1120 = vrot.lane.b32.xlu0 %v610, 12
      %v1121 = vpop.permute.xlu0 %1120
      %1122 = vrot.lane.b32.xlu0 %v611, 12
      %v1123 = vpop.permute.xlu0 %1122
      %1124 = vrot.lane.b32.xlu0 %v612, 12
      %v1125 = vpop.permute.xlu0 %1124
      %1190 = vrot.lane.b32.xlu0 %v613, 16
      %v1191 = vpop.permute.xlu0 %1190
      %1192 = vrot.lane.b32.xlu0 %v614, 16
      %v1193 = vpop.permute.xlu0 %1192
      %1194 = vrot.lane.b32.xlu0 %v615, 16
      %v1195 = vpop.permute.xlu0 %1194
      %1196 = vrot.lane.b32.xlu0 %v616, 16
      %v1197 = vpop.permute.xlu0 %1196
      %1198 = vrot.lane.b32.xlu0 %v617, 16
      %v1199 = vpop.permute.xlu0 %1198
      %1200 = vrot.lane.b32.xlu0 %v618, 16
      %v1201 = vpop.permute.xlu0 %1200
      %1202 = vrot.lane.b32.xlu0 %v619, 16
      %v1203 = vpop.permute.xlu0 %1202
      %1204 = vrot.lane.b32.xlu0 %v620, 16
      %v1205 = vpop.permute.xlu0 %1204
      %1206 = vrot.lane.b32.xlu0 %v621, 16
      %v1207 = vpop.permute.xlu0 %1206
      %1208 = vrot.lane.b32.xlu0 %v622, 16
      %v1209 = vpop.permute.xlu0 %1208
      %1210 = vrot.lane.b32.xlu0 %v623, 16
      %v1211 = vpop.permute.xlu0 %1210
      %1212 = vrot.lane.b32.xlu0 %v624, 16
      %v1213 = vpop.permute.xlu0 %1212
      %1214 = vrot.lane.b32.xlu0 %v625, 16
      %v1215 = vpop.permute.xlu0 %1214
      %1216 = vrot.lane.b32.xlu0 %v626, 16
      %v1217 = vpop.permute.xlu0 %1216
      %1218 = vrot.lane.b32.xlu0 %v627, 16
      %v1219 = vpop.permute.xlu0 %1218
      %1220 = vrot.lane.b32.xlu0 %v628, 16
      %v1221 = vpop.permute.xlu0 %1220
      %1222 = vrot.lane.b32.xlu0 %v629, 16
      %v1223 = vpop.permute.xlu0 %1222
      %1224 = vrot.lane.b32.xlu0 %v630, 16
      %v1225 = vpop.permute.xlu0 %1224
      %1226 = vrot.lane.b32.xlu0 %v631, 16
      %v1227 = vpop.permute.xlu0 %1226
      %1228 = vrot.lane.b32.xlu0 %v632, 16
      %v1229 = vpop.permute.xlu0 %1228
      %1230 = vrot.lane.b32.xlu0 %v633, 16
      %v1231 = vpop.permute.xlu0 %1230
      %1232 = vrot.lane.b32.xlu0 %v634, 16
      %v1233 = vpop.permute.xlu0 %1232
      %1234 = vrot.lane.b32.xlu0 %v635, 16
      %v1235 = vpop.permute.xlu0 %1234
      %1236 = vrot.lane.b32.xlu0 %v636, 16
      %v1237 = vpop.permute.xlu0 %1236
      %1238 = vrot.lane.b32.xlu0 %v637, 16
      %v1239 = vpop.permute.xlu0 %1238
      %1240 = vrot.lane.b32.xlu0 %v638, 16
      %v1241 = vpop.permute.xlu0 %1240
      %1242 = vrot.lane.b32.xlu0 %v639, 16
      %v1243 = vpop.permute.xlu0 %1242
      %1244 = vrot.lane.b32.xlu0 %v640, 16
      %v1245 = vpop.permute.xlu0 %1244
      %1246 = vrot.lane.b32.xlu0 %v641, 16
      %v1247 = vpop.permute.xlu0 %1246
      %1248 = vrot.lane.b32.xlu0 %v642, 16
      %v1249 = vpop.permute.xlu0 %1248
      %1250 = vrot.lane.b32.xlu0 %v643, 16
      %v1251 = vpop.permute.xlu0 %1250
      %1252 = vrot.lane.b32.xlu0 %v644, 16
      %v1253 = vpop.permute.xlu0 %1252
      %1318 = vrot.lane.b32.xlu0 %v645, 20
      %v1319 = vpop.permute.xlu0 %1318
      %1320 = vrot.lane.b32.xlu0 %v646, 20
      %v1321 = vpop.permute.xlu0 %1320
      %1322 = vrot.lane.b32.xlu0 %v647, 20
      %v1323 = vpop.permute.xlu0 %1322
      %1324 = vrot.lane.b32.xlu0 %v648, 20
      %v1325 = vpop.permute.xlu0 %1324
      %1326 = vrot.lane.b32.xlu0 %v649, 20
      %v1327 = vpop.permute.xlu0 %1326
      %1328 = vrot.lane.b32.xlu0 %v650, 20
      %v1329 = vpop.permute.xlu0 %1328
      %1330 = vrot.lane.b32.xlu0 %v651, 20
      %v1331 = vpop.permute.xlu0 %1330
      %1332 = vrot.lane.b32.xlu0 %v652, 20
      %v1333 = vpop.permute.xlu0 %1332
      %1334 = vrot.lane.b32.xlu0 %v653, 20
      %v1335 = vpop.permute.xlu0 %1334
      %1336 = vrot.lane.b32.xlu0 %v654, 20
      %v1337 = vpop.permute.xlu0 %1336
      %1338 = vrot.lane.b32.xlu0 %v655, 20
      %v1339 = vpop.permute.xlu0 %1338
      %1340 = vrot.lane.b32.xlu0 %v656, 20
      %v1341 = vpop.permute.xlu0 %1340
      %1342 = vrot.lane.b32.xlu0 %v657, 20
      %v1343 = vpop.permute.xlu0 %1342
      %1344 = vrot.lane.b32.xlu0 %v658, 20
      %v1345 = vpop.permute.xlu0 %1344
      %1346 = vrot.lane.b32.xlu0 %v659, 20
      %v1347 = vpop.permute.xlu0 %1346
      %1348 = vrot.lane.b32.xlu0 %v660, 20
      %v1349 = vpop.permute.xlu0 %1348
      %1350 = vrot.lane.b32.xlu0 %v661, 20
      %v1351 = vpop.permute.xlu0 %1350
      %1352 = vrot.lane.b32.xlu0 %v662, 20
      %v1353 = vpop.permute.xlu0 %1352
      %1354 = vrot.lane.b32.xlu0 %v663, 20
      %v1355 = vpop.permute.xlu0 %1354
      %1356 = vrot.lane.b32.xlu0 %v664, 20
      %v1357 = vpop.permute.xlu0 %1356
      %1358 = vrot.lane.b32.xlu0 %v665, 20
      %v1359 = vpop.permute.xlu0 %1358
      %1360 = vrot.lane.b32.xlu0 %v666, 20
      %v1361 = vpop.permute.xlu0 %1360
      %1362 = vrot.lane.b32.xlu0 %v667, 20
      %v1363 = vpop.permute.xlu0 %1362
      %1364 = vrot.lane.b32.xlu0 %v668, 20
      %v1365 = vpop.permute.xlu0 %1364
      %1366 = vrot.lane.b32.xlu0 %v669, 20
      %v1367 = vpop.permute.xlu0 %1366
      %1368 = vrot.lane.b32.xlu0 %v670, 20
      %v1369 = vpop.permute.xlu0 %1368
      %1370 = vrot.lane.b32.xlu0 %v671, 20
      %v1371 = vpop.permute.xlu0 %1370
      %1372 = vrot.lane.b32.xlu0 %v672, 20
      %v1373 = vpop.permute.xlu0 %1372
      %1374 = vrot.lane.b32.xlu0 %v673, 20
      %v1375 = vpop.permute.xlu0 %1374
      %1376 = vrot.lane.b32.xlu0 %v674, 20
      %v1377 = vpop.permute.xlu0 %1376
      %1378 = vrot.lane.b32.xlu0 %v675, 20
      %v1379 = vpop.permute.xlu0 %1378
      %1380 = vrot.lane.b32.xlu0 %v676, 20
      %v1381 = vpop.permute.xlu0 %1380
      %1446 = vrot.lane.b32.xlu0 %v678, 24
      %v1447 = vpop.permute.xlu0 %1446
      %1448 = vrot.lane.b32.xlu0 %v679, 24
      %v1449 = vpop.permute.xlu0 %1448
      %1450 = vrot.lane.b32.xlu0 %v680, 24
      %v1451 = vpop.permute.xlu0 %1450
      %1452 = vrot.lane.b32.xlu0 %v681, 24
      %v1453 = vpop.permute.xlu0 %1452
      %1454 = vrot.lane.b32.xlu0 %v682, 24
      %v1455 = vpop.permute.xlu0 %1454
      %1456 = vrot.lane.b32.xlu0 %v683, 24
      %v1457 = vpop.permute.xlu0 %1456
      %1458 = vrot.lane.b32.xlu0 %v684, 24
      %v1459 = vpop.permute.xlu0 %1458
      %1460 = vrot.lane.b32.xlu0 %v685, 24
      %v1461 = vpop.permute.xlu0 %1460
      %1462 = vrot.lane.b32.xlu0 %v686, 24
      %v1463 = vpop.permute.xlu0 %1462
      %1464 = vrot.lane.b32.xlu0 %v687, 24
      %v1465 = vpop.permute.xlu0 %1464
      %1466 = vrot.lane.b32.xlu0 %v688, 24
      %v1467 = vpop.permute.xlu0 %1466
      %1468 = vrot.lane.b32.xlu0 %v689, 24
      %v1469 = vpop.permute.xlu0 %1468
      %1470 = vrot.lane.b32.xlu0 %v690, 24
      %v1471 = vpop.permute.xlu0 %1470
      %1472 = vrot.lane.b32.xlu0 %v691, 24
      %v1473 = vpop.permute.xlu0 %1472
      %1474 = vrot.lane.b32.xlu0 %v692, 24
      %v1475 = vpop.permute.xlu0 %1474
      %1476 = vrot.lane.b32.xlu0 %v693, 24
      %v1477 = vpop.permute.xlu0 %1476
      %1478 = vrot.lane.b32.xlu0 %v694, 24
      %v1479 = vpop.permute.xlu0 %1478
      %1480 = vrot.lane.b32.xlu0 %v695, 24
      %v1481 = vpop.permute.xlu0 %1480
      %1482 = vrot.lane.b32.xlu0 %v696, 24
      %v1483 = vpop.permute.xlu0 %1482
      %1484 = vrot.lane.b32.xlu0 %v697, 24
      %v1485 = vpop.permute.xlu0 %1484
      %1486 = vrot.lane.b32.xlu0 %v698, 24
      %v1487 = vpop.permute.xlu0 %1486
      %1488 = vrot.lane.b32.xlu0 %v699, 24
      %v1489 = vpop.permute.xlu0 %1488
      %1490 = vrot.lane.b32.xlu0 %v700, 24
      %v1491 = vpop.permute.xlu0 %1490
      %1492 = vrot.lane.b32.xlu0 %v701, 24
      %v1493 = vpop.permute.xlu0 %1492
      %1494 = vrot.lane.b32.xlu0 %v702, 24
      %v1495 = vpop.permute.xlu0 %1494
      %1496 = vrot.lane.b32.xlu0 %v703, 24
      %v1497 = vpop.permute.xlu0 %1496
      %1498 = vrot.lane.b32.xlu0 %v704, 24
      %v1499 = vpop.permute.xlu0 %1498
      %1500 = vrot.lane.b32.xlu0 %v705, 24
      %v1501 = vpop.permute.xlu0 %1500
      %1502 = vrot.lane.b32.xlu0 %v706, 24
      %v1503 = vpop.permute.xlu0 %1502
      %1504 = vrot.lane.b32.xlu0 %v707, 24
      %v1505 = vpop.permute.xlu0 %1504
      %1506 = vrot.lane.b32.xlu0 %v708, 24
      %v1507 = vpop.permute.xlu0 %1506
      %1508 = vrot.lane.b32.xlu0 %v709, 24
      %v1509 = vpop.permute.xlu0 %1508
      %1574 = vrot.lane.b32.xlu0 %v710, 28
      %v1575 = vpop.permute.xlu0 %1574
      %1576 = vrot.lane.b32.xlu0 %v711, 28
      %v1577 = vpop.permute.xlu0 %1576
      %1578 = vrot.lane.b32.xlu0 %v712, 28
      %v1579 = vpop.permute.xlu0 %1578
      %1580 = vrot.lane.b32.xlu0 %v713, 28
      %v1581 = vpop.permute.xlu0 %1580
      %1582 = vrot.lane.b32.xlu0 %v714, 28
      %v1583 = vpop.permute.xlu0 %1582
      %1584 = vrot.lane.b32.xlu0 %v715, 28
      %v1585 = vpop.permute.xlu0 %1584
      %1586 = vrot.lane.b32.xlu0 %v716, 28
      %v1587 = vpop.permute.xlu0 %1586
      %1588 = vrot.lane.b32.xlu0 %v717, 28
      %v1589 = vpop.permute.xlu0 %1588
      %1590 = vrot.lane.b32.xlu0 %v718, 28
      %v1591 = vpop.permute.xlu0 %1590
      %1592 = vrot.lane.b32.xlu0 %v719, 28
      %v1593 = vpop.permute.xlu0 %1592
      %1594 = vrot.lane.b32.xlu0 %v720, 28
      %v1595 = vpop.permute.xlu0 %1594
      %1596 = vrot.lane.b32.xlu0 %v721, 28
      %v1597 = vpop.permute.xlu0 %1596
      %1598 = vrot.lane.b32.xlu0 %v722, 28
      %v1599 = vpop.permute.xlu0 %1598
      %1600 = vrot.lane.b32.xlu0 %v723, 28
      %v1601 = vpop.permute.xlu0 %1600
      %1602 = vrot.lane.b32.xlu0 %v724, 28
      %v1603 = vpop.permute.xlu0 %1602
      %1604 = vrot.lane.b32.xlu0 %v725, 28
      %v1605 = vpop.permute.xlu0 %1604
      %1606 = vrot.lane.b32.xlu0 %v726, 28
      %v1607 = vpop.permute.xlu0 %1606
      %1608 = vrot.lane.b32.xlu0 %v727, 28
      %v1609 = vpop.permute.xlu0 %1608
      %1610 = vrot.lane.b32.xlu0 %v728, 28
      %v1611 = vpop.permute.xlu0 %1610
      %1612 = vrot.lane.b32.xlu0 %v729, 28
      %v1613 = vpop.permute.xlu0 %1612
      %1614 = vrot.lane.b32.xlu0 %v730, 28
      %v1615 = vpop.permute.xlu0 %1614
      %1616 = vrot.lane.b32.xlu0 %v731, 28
      %v1617 = vpop.permute.xlu0 %1616
      %1618 = vrot.lane.b32.xlu0 %v732, 28
      %v1619 = vpop.permute.xlu0 %1618
      %1620 = vrot.lane.b32.xlu0 %v733, 28
      %v1621 = vpop.permute.xlu0 %1620
      %1622 = vrot.lane.b32.xlu0 %v734, 28
      %v1623 = vpop.permute.xlu0 %1622
      %1624 = vrot.lane.b32.xlu0 %v735, 28
      %v1625 = vpop.permute.xlu0 %1624
      %1626 = vrot.lane.b32.xlu0 %v736, 28
      %v1627 = vpop.permute.xlu0 %1626
      %1628 = vrot.lane.b32.xlu0 %v737, 28
      %v1629 = vpop.permute.xlu0 %1628
      %1630 = vrot.lane.b32.xlu0 %v738, 28
      %v1631 = vpop.permute.xlu0 %1630
      %1632 = vrot.lane.b32.xlu0 %v739, 28
      %v1633 = vpop.permute.xlu0 %1632
      %1634 = vrot.lane.b32.xlu0 %v740, 28
      %v1635 = vpop.permute.xlu0 %1634
      %1636 = vrot.lane.b32.xlu0 %v741, 28
      %v1637 = vpop.permute.xlu0 %1636
      %1702 = vrot.lane.b32.xlu0 %v742, 32
      %v1703 = vpop.permute.xlu0 %1702
      %1704 = vrot.lane.b32.xlu0 %v743, 32
      %v1705 = vpop.permute.xlu0 %1704
      %1706 = vrot.lane.b32.xlu0 %v744, 32
      %v1707 = vpop.permute.xlu0 %1706
      %1708 = vrot.lane.b32.xlu0 %v745, 32
      %v1709 = vpop.permute.xlu0 %1708
      %1710 = vrot.lane.b32.xlu0 %v746, 32
      %v1711 = vpop.permute.xlu0 %1710
      %1712 = vrot.lane.b32.xlu0 %v747, 32
      %v1713 = vpop.permute.xlu0 %1712
      %1714 = vrot.lane.b32.xlu0 %v748, 32
      %v1715 = vpop.permute.xlu0 %1714
      %1716 = vrot.lane.b32.xlu0 %v749, 32
      %v1717 = vpop.permute.xlu0 %1716
      %1718 = vrot.lane.b32.xlu0 %v750, 32
      %v1719 = vpop.permute.xlu0 %1718
      %1720 = vrot.lane.b32.xlu0 %v751, 32
      %v1721 = vpop.permute.xlu0 %1720
      %1722 = vrot.lane.b32.xlu0 %v752, 32
      %v1723 = vpop.permute.xlu0 %1722
      %1724 = vrot.lane.b32.xlu0 %v753, 32
      %v1725 = vpop.permute.xlu0 %1724
      %1726 = vrot.lane.b32.xlu0 %v754, 32
      %v1727 = vpop.permute.xlu0 %1726
      %1728 = vrot.lane.b32.xlu0 %v755, 32
      %v1729 = vpop.permute.xlu0 %1728
      %1730 = vrot.lane.b32.xlu0 %v756, 32
      %v1731 = vpop.permute.xlu0 %1730
      %1732 = vrot.lane.b32.xlu0 %v757, 32
      %v1733 = vpop.permute.xlu0 %1732
      %1734 = vrot.lane.b32.xlu0 %v758, 32
      %v1735 = vpop.permute.xlu0 %1734
      %1736 = vrot.lane.b32.xlu0 %v759, 32
      %v1737 = vpop.permute.xlu0 %1736
      %1738 = vrot.lane.b32.xlu0 %v760, 32
      %v1739 = vpop.permute.xlu0 %1738
      %1740 = vrot.lane.b32.xlu0 %v761, 32
      %v1741 = vpop.permute.xlu0 %1740
      %1742 = vrot.lane.b32.xlu0 %v762, 32
      %v1743 = vpop.permute.xlu0 %1742
      %1744 = vrot.lane.b32.xlu0 %v763, 32
      %v1745 = vpop.permute.xlu0 %1744
      %1746 = vrot.lane.b32.xlu0 %v764, 32
      %v1747 = vpop.permute.xlu0 %1746
      %1748 = vrot.lane.b32.xlu0 %v765, 32
      %v1749 = vpop.permute.xlu0 %1748
      %1750 = vrot.lane.b32.xlu0 %v766, 32
      %v1751 = vpop.permute.xlu0 %1750
      %1752 = vrot.lane.b32.xlu0 %v767, 32
      %v1753 = vpop.permute.xlu0 %1752
      %1754 = vrot.lane.b32.xlu0 %v768, 32
      %v1755 = vpop.permute.xlu0 %1754
      %1756 = vrot.lane.b32.xlu0 %v769, 32
      %v1757 = vpop.permute.xlu0 %1756
      %1758 = vrot.lane.b32.xlu0 %v770, 32
      %v1759 = vpop.permute.xlu0 %1758
      %1760 = vrot.lane.b32.xlu0 %v771, 32
      %v1761 = vpop.permute.xlu0 %1760
      %1762 = vrot.lane.b32.xlu0 %v772, 32
      %v1763 = vpop.permute.xlu0 %1762
      %1764 = vrot.lane.b32.xlu0 %v773, 32
      %v1765 = vpop.permute.xlu0 %1764
      %v1798 = vsel %vm428, %v484, %v807
      %v1799 = vsel %vm428, %v485, %v809
      %v1800 = vsel %vm428, %v486, %v811
      %v1801 = vsel %vm428, %v487, %v813
      %v1802 = vsel %vm428, %v488, %v815
      %v1803 = vsel %vm428, %v489, %v817
      %v1804 = vsel %vm428, %v490, %v819
      %v1805 = vsel %vm428, %v491, %v821
      %v1806 = vsel %vm428, %v492, %v823
      %v1807 = vsel %vm428, %v493, %v825
      %v1808 = vsel %vm428, %v494, %v827
      %v1809 = vsel %vm428, %v495, %v829
      %v1810 = vsel %vm428, %v496, %v831
      %v1811 = vsel %vm428, %v497, %v833
      %v1812 = vsel %vm428, %v498, %v835
      %v1813 = vsel %vm428, %v499, %v837
      %v1814 = vsel %vm428, %v500, %v839
      %v1815 = vsel %vm428, %v501, %v841
      %v1816 = vsel %vm428, %v502, %v843
      %v1817 = vsel %vm428, %v503, %v845
      %v1818 = vsel %vm428, %v504, %v847
      %v1819 = vsel %vm428, %v505, %v849
      %v1820 = vsel %vm428, %v506, %v851
      %v1821 = vsel %vm428, %v507, %v853
      %v1822 = vsel %vm428, %v508, %v855
      %v1823 = vsel %vm428, %v509, %v857
      %v1824 = vsel %vm428, %v510, %v859
      %v1825 = vsel %vm428, %v511, %v861
      %v1826 = vsel %vm428, %v512, %v863
      %v1827 = vsel %vm428, %v513, %v865
      %v1828 = vsel %vm428, %v514, %v867
      %v1829 = vsel %vm428, %v515, %v869
      %vm1830 = vcmask 64512
      %v1831 = vsel %vm1830, %v1798, %v935
      %v1832 = vsel %vm1830, %v1799, %v937
      %v1833 = vsel %vm1830, %v1800, %v939
      %v1834 = vsel %vm1830, %v1801, %v941
      %v1835 = vsel %vm1830, %v1802, %v943
      %v1836 = vsel %vm1830, %v1803, %v945
      %v1837 = vsel %vm1830, %v1804, %v947
      %v1838 = vsel %vm1830, %v1805, %v949
      %v1839 = vsel %vm1830, %v1806, %v951
      %v1840 = vsel %vm1830, %v1807, %v953
      %v1841 = vsel %vm1830, %v1808, %v955
      %v1842 = vsel %vm1830, %v1809, %v957
      %v1843 = vsel %vm1830, %v1810, %v959
      %v1844 = vsel %vm1830, %v1811, %v961
      %v1845 = vsel %vm1830, %v1812, %v963
      %v1846 = vsel %vm1830, %v1813, %v965
      %v1847 = vsel %vm1830, %v1814, %v967
      %v1848 = vsel %vm1830, %v1815, %v969
      %v1849 = vsel %vm1830, %v1816, %v971
      %v1850 = vsel %vm1830, %v1817, %v973
      %v1851 = vsel %vm1830, %v1818, %v975
      %v1852 = vsel %vm1830, %v1819, %v977
      %v1853 = vsel %vm1830, %v1820, %v979
      %v1854 = vsel %vm1830, %v1821, %v981
      %v1855 = vsel %vm1830, %v1822, %v983
      %v1856 = vsel %vm1830, %v1823, %v985
      %v1857 = vsel %vm1830, %v1824, %v987
      %v1858 = vsel %vm1830, %v1825, %v989
      %v1859 = vsel %vm1830, %v1826, %v991
      %v1860 = vsel %vm1830, %v1827, %v993
      %v1861 = vsel %vm1830, %v1828, %v995
      %v1862 = vsel %vm1830, %v1829, %v997
      %vm1863 = vcmask 97280
      %v1864 = vsel %vm1863, %v1831, %v1063
      %v1865 = vsel %vm1863, %v1832, %v1065
      %v1866 = vsel %vm1863, %v1833, %v1067
      %v1867 = vsel %vm1863, %v1834, %v1069
      %v1868 = vsel %vm1863, %v1835, %v1071
      %v1869 = vsel %vm1863, %v1836, %v1073
      %v1870 = vsel %vm1863, %v1837, %v1075
      %v1871 = vsel %vm1863, %v1838, %v1077
      %v1872 = vsel %vm1863, %v1839, %v1079
      %v1873 = vsel %vm1863, %v1840, %v1081
      %v1874 = vsel %vm1863, %v1841, %v1083
      %v1875 = vsel %vm1863, %v1842, %v1085
      %v1876 = vsel %vm1863, %v1843, %v1087
      %v1877 = vsel %vm1863, %v1844, %v1089
      %v1878 = vsel %vm1863, %v1845, %v1091
      %v1879 = vsel %vm1863, %v1846, %v1093
      %v1880 = vsel %vm1863, %v1847, %v1095
      %v1881 = vsel %vm1863, %v1848, %v1097
      %v1882 = vsel %vm1863, %v1849, %v1099
      %v1883 = vsel %vm1863, %v1850, %v1101
      %v1884 = vsel %vm1863, %v1851, %v1103
      %v1885 = vsel %vm1863, %v1852, %v1105
      %v1886 = vsel %vm1863, %v1853, %v1107
      %v1887 = vsel %vm1863, %v1854, %v1109
      %v1888 = vsel %vm1863, %v1855, %v1111
      %v1889 = vsel %vm1863, %v1856, %v1113
      %v1890 = vsel %vm1863, %v1857, %v1115
      %v1891 = vsel %vm1863, %v1858, %v1117
      %v1892 = vsel %vm1863, %v1859, %v1119
      %v1893 = vsel %vm1863, %v1860, %v1121
      %v1894 = vsel %vm1863, %v1861, %v1123
      %v1895 = vsel %vm1863, %v1862, %v1125
      %vm1896 = vcmask 130048
      %v1897 = vsel %vm1896, %v1864, %v1191
      %v1898 = vsel %vm1896, %v1865, %v1193
      %v1899 = vsel %vm1896, %v1866, %v1195
      %v1900 = vsel %vm1896, %v1867, %v1197
      %v1901 = vsel %vm1896, %v1868, %v1199
      %v1902 = vsel %vm1896, %v1869, %v1201
      %v1903 = vsel %vm1896, %v1870, %v1203
      %v1904 = vsel %vm1896, %v1871, %v1205
      %v1905 = vsel %vm1896, %v1872, %v1207
      %v1906 = vsel %vm1896, %v1873, %v1209
      %v1907 = vsel %vm1896, %v1874, %v1211
      %v1908 = vsel %vm1896, %v1875, %v1213
      %v1909 = vsel %vm1896, %v1876, %v1215
      %v1910 = vsel %vm1896, %v1877, %v1217
      %v1911 = vsel %vm1896, %v1878, %v1219
      %v1912 = vsel %vm1896, %v1879, %v1221
      %v1913 = vsel %vm1896, %v1880, %v1223
      %v1914 = vsel %vm1896, %v1881, %v1225
      %v1915 = vsel %vm1896, %v1882, %v1227
      %v1916 = vsel %vm1896, %v1883, %v1229
      %v1917 = vsel %vm1896, %v1884, %v1231
      %v1918 = vsel %vm1896, %v1885, %v1233
      %v1919 = vsel %vm1896, %v1886, %v1235
      %v1920 = vsel %vm1896, %v1887, %v1237
      %v1921 = vsel %vm1896, %v1888, %v1239
      %v1922 = vsel %vm1896, %v1889, %v1241
      %v1923 = vsel %vm1896, %v1890, %v1243
      %v1924 = vsel %vm1896, %v1891, %v1245
      %v1925 = vsel %vm1896, %v1892, %v1247
      %v1926 = vsel %vm1896, %v1893, %v1249
      %v1927 = vsel %vm1896, %v1894, %v1251
      %v1928 = vsel %vm1896, %v1895, %v1253
      %vm1929 = vcmask 162816
      %v1930 = vsel %vm1929, %v1897, %v1319
      %v1931 = vsel %vm1929, %v1898, %v1321
      %v1932 = vsel %vm1929, %v1899, %v1323
      %v1933 = vsel %vm1929, %v1900, %v1325
      %v1934 = vsel %vm1929, %v1901, %v1327
      %v1935 = vsel %vm1929, %v1902, %v1329
      %v1936 = vsel %vm1929, %v1903, %v1331
      %v1937 = vsel %vm1929, %v1904, %v1333
      %v1938 = vsel %vm1929, %v1905, %v1335
      %v1939 = vsel %vm1929, %v1906, %v1337
      %v1940 = vsel %vm1929, %v1907, %v1339
      %v1941 = vsel %vm1929, %v1908, %v1341
      %v1942 = vsel %vm1929, %v1909, %v1343
      %v1943 = vsel %vm1929, %v1910, %v1345
      %v1944 = vsel %vm1929, %v1911, %v1347
      %v1945 = vsel %vm1929, %v1912, %v1349
      %v1946 = vsel %vm1929, %v1913, %v1351
      %v1947 = vsel %vm1929, %v1914, %v1353
      %v1948 = vsel %vm1929, %v1915, %v1355
      %v1949 = vsel %vm1929, %v1916, %v1357
      %v1950 = vsel %vm1929, %v1917, %v1359
      %v1951 = vsel %vm1929, %v1918, %v1361
      %v1952 = vsel %vm1929, %v1919, %v1363
      %v1953 = vsel %vm1929, %v1920, %v1365
      %v1954 = vsel %vm1929, %v1921, %v1367
      %v1955 = vsel %vm1929, %v1922, %v1369
      %v1956 = vsel %vm1929, %v1923, %v1371
      %v1957 = vsel %vm1929, %v1924, %v1373
      %v1958 = vsel %vm1929, %v1925, %v1375
      %v1959 = vsel %vm1929, %v1926, %v1377
      %v1960 = vsel %vm1929, %v1927, %v1379
      %v1961 = vsel %vm1929, %v1928, %v1381
      %vm1962 = vcmask 195584
      %v1963 = vsel %vm1962, %v1930, %v1447
      %v1964 = vsel %vm1962, %v1931, %v1449
      %v1965 = vsel %vm1962, %v1932, %v1451
      %v1966 = vsel %vm1962, %v1933, %v1453
      %v1967 = vsel %vm1962, %v1934, %v1455
      %v1968 = vsel %vm1962, %v1935, %v1457
      %v1969 = vsel %vm1962, %v1936, %v1459
      %v1970 = vsel %vm1962, %v1937, %v1461
      %v1971 = vsel %vm1962, %v1938, %v1463
      %v1972 = vsel %vm1962, %v1939, %v1465
      %v1973 = vsel %vm1962, %v1940, %v1467
      %v1974 = vsel %vm1962, %v1941, %v1469
      %v1975 = vsel %vm1962, %v1942, %v1471
      %v1976 = vsel %vm1962, %v1943, %v1473
      %v1977 = vsel %vm1962, %v1944, %v1475
      %v1978 = vsel %vm1962, %v1945, %v1477
      %v1979 = vsel %vm1962, %v1946, %v1479
      %v1980 = vsel %vm1962, %v1947, %v1481
      %v1981 = vsel %vm1962, %v1948, %v1483
      %v1982 = vsel %vm1962, %v1949, %v1485
      %v1983 = vsel %vm1962, %v1950, %v1487
      %v1984 = vsel %vm1962, %v1951, %v1489
      %v1985 = vsel %vm1962, %v1952, %v1491
      %v1986 = vsel %vm1962, %v1953, %v1493
      %v1987 = vsel %vm1962, %v1954, %v1495
      %v1988 = vsel %vm1962, %v1955, %v1497
      %v1989 = vsel %vm1962, %v1956, %v1499
      %v1990 = vsel %vm1962, %v1957, %v1501
      %v1991 = vsel %vm1962, %v1958, %v1503
      %v1992 = vsel %vm1962, %v1959, %v1505
      %v1993 = vsel %vm1962, %v1960, %v1507
      %v1994 = vsel %vm1962, %v1961, %v1509
      %vm1995 = vcmask 228352
      %v1996 = vsel %vm1995, %v1963, %v1575
      %v1997 = vsel %vm1995, %v1964, %v1577
      %v1998 = vsel %vm1995, %v1965, %v1579
      %v1999 = vsel %vm1995, %v1966, %v1581
      %v2000 = vsel %vm1995, %v1967, %v1583
      %v2001 = vsel %vm1995, %v1968, %v1585
      %v2002 = vsel %vm1995, %v1969, %v1587
      %v2003 = vsel %vm1995, %v1970, %v1589
      %v2004 = vsel %vm1995, %v1971, %v1591
      %v2005 = vsel %vm1995, %v1972, %v1593
      %v2006 = vsel %vm1995, %v1973, %v1595
      %v2007 = vsel %vm1995, %v1974, %v1597
      %v2008 = vsel %vm1995, %v1975, %v1599
      %v2009 = vsel %vm1995, %v1976, %v1601
      %v2010 = vsel %vm1995, %v1977, %v1603
      %v2011 = vsel %vm1995, %v1978, %v1605
      %v2012 = vsel %vm1995, %v1979, %v1607
      %v2013 = vsel %vm1995, %v1980, %v1609
      %v2014 = vsel %vm1995, %v1981, %v1611
      %v2015 = vsel %vm1995, %v1982, %v1613
      %v2016 = vsel %vm1995, %v1983, %v1615
      %v2017 = vsel %vm1995, %v1984, %v1617
      %v2018 = vsel %vm1995, %v1985, %v1619
      %v2019 = vsel %vm1995, %v1986, %v1621
      %v2020 = vsel %vm1995, %v1987, %v1623
      %v2021 = vsel %vm1995, %v1988, %v1625
      %v2022 = vsel %vm1995, %v1989, %v1627
      %v2023 = vsel %vm1995, %v1990, %v1629
      %v2024 = vsel %vm1995, %v1991, %v1631
      %v2025 = vsel %vm1995, %v1992, %v1633
      %v2026 = vsel %vm1995, %v1993, %v1635
      %v2027 = vsel %vm1995, %v1994, %v1637
      %vm2028 = vcmask 261120
      %v2029 = vsel %vm2028, %v1996, %v1703
      %v2030 = vsel %vm2028, %v1997, %v1705
      %v2031 = vsel %vm2028, %v1998, %v1707
      %v2032 = vsel %vm2028, %v1999, %v1709
      %v2033 = vsel %vm2028, %v2000, %v1711
      %v2034 = vsel %vm2028, %v2001, %v1713
      %v2035 = vsel %vm2028, %v2002, %v1715
      %v2036 = vsel %vm2028, %v2003, %v1717
      %v2037 = vsel %vm2028, %v2004, %v1719
      %v2038 = vsel %vm2028, %v2005, %v1721
      %v2039 = vsel %vm2028, %v2006, %v1723
      %v2040 = vsel %vm2028, %v2007, %v1725
      %v2041 = vsel %vm2028, %v2008, %v1727
      %v2042 = vsel %vm2028, %v2009, %v1729
      %v2043 = vsel %vm2028, %v2010, %v1731
      %v2044 = vsel %vm2028, %v2011, %v1733
      %v2045 = vsel %vm2028, %v2012, %v1735
      %v2046 = vsel %vm2028, %v2013, %v1737
      %v2047 = vsel %vm2028, %v2014, %v1739
      %v2048 = vsel %vm2028, %v2015, %v1741
      %v2049 = vsel %vm2028, %v2016, %v1743
      %v2050 = vsel %vm2028, %v2017, %v1745
      %v2051 = vsel %vm2028, %v2018, %v1747
      %v2052 = vsel %vm2028, %v2019, %v1749
      %v2053 = vsel %vm2028, %v2020, %v1751
      %v2054 = vsel %vm2028, %v2021, %v1753
      %v2055 = vsel %vm2028, %v2022, %v1755
      %v2056 = vsel %vm2028, %v2023, %v1757
      %v2057 = vsel %vm2028, %v2024, %v1759
      %v2058 = vsel %vm2028, %v2025, %v1761
      %v2059 = vsel %vm2028, %v2026, %v1763
      %v2060 = vsel %vm2028, %v2027, %v1765
      %v2061 = vld [vmem:[%s1] sm:$0xff]
      %v2062 = vld [vmem:[%s1 + $0x8] sm:$0xff]
      %v2063 = vld [vmem:[%s1 + $0x10] sm:$0xff]
      %v2064 = vld [vmem:[%s1 + $0x18] sm:$0xff]
      %v2065 = vld [vmem:[%s1 + $0x20] sm:$0xf]
      %vm2066 = vcmask 293888
      %v2068 = vsel %vm2066, %v2029, 0
      %v2071 = vsel %vm2066, %v2030, 0
      %v2074 = vsel %vm2066, %v2031, 0
      %v2077 = vsel %vm2066, %v2032, 0
      %v2080 = vsel %vm2066, %v2033, 0
      %v2083 = vsel %vm2066, %v2034, 0
      %v2086 = vsel %vm2066, %v2035, 0
      %v2089 = vsel %vm2066, %v2036, 0
      %v2092 = vsel %vm2066, %v2037, 0
      %v2095 = vsel %vm2066, %v2038, 0
      %v2098 = vsel %vm2066, %v2039, 0
      %v2101 = vsel %vm2066, %v2040, 0
      %v2104 = vsel %vm2066, %v2041, 0
      %v2107 = vsel %vm2066, %v2042, 0
      %v2110 = vsel %vm2066, %v2043, 0
      %v2113 = vsel %vm2066, %v2044, 0
      %v2116 = vsel %vm2066, %v2045, 0
      %v2119 = vsel %vm2066, %v2046, 0
      %v2122 = vsel %vm2066, %v2047, 0
      %v2125 = vsel %vm2066, %v2048, 0
      %v2128 = vsel %vm2066, %v2049, 0
      %v2131 = vsel %vm2066, %v2050, 0
      %v2134 = vsel %vm2066, %v2051, 0
      %v2137 = vsel %vm2066, %v2052, 0
      %v2140 = vsel %vm2066, %v2053, 0
      %v2143 = vsel %vm2066, %v2054, 0
      %v2146 = vsel %vm2066, %v2055, 0
      %v2149 = vsel %vm2066, %v2056, 0
      %v2152 = vsel %vm2066, %v2057, 0
      %v2155 = vsel %vm2066, %v2058, 0
      %v2158 = vsel %vm2066, %v2059, 0
      %v2161 = vsel %vm2066, %v2060, 0
      %vm2163 = vcmask 1043456
      %v2165 = vsel %vm2163, %v2065, 0
      %2167 = vmatprep.subr.mxu0 0.0
      %2168 = vmatpush1.msra.mxu0 %v2061
      %2169 = vmatprep.subr.mxu0 0.0
      %2170 = vmatpush1.msra.mxu0 %v2062
      %2171 = vmatprep.subr.mxu0 0.0
      %2172 = vmatpush1.msra.mxu0 %v2063
      %2173 = vmatprep.subr.mxu0 0.0
      %2174 = vmatpush1.msra.mxu0 %v2064
      %2175 = vmatprep.subr.mxu0 0.0
      %2176 = vmatpush1.msra.mxu0 %v2165
      %2177 = vmatprep.subr.mxu0 0.0
      %2178 = vmatpush1.msra.mxu0 0.0
      %2179 = vmatprep.subr.mxu0 0.0
      %2180 = vmatpush1.msra.mxu0 0.0
      %2181 = vmatprep.subr.mxu0 0.0
      %2182 = vmatpush1.msra.mxu0 0.0
      %2183 = vmatprep.subr.mxu0 0.0
      %2184 = vmatpush1.msra.mxu0 0.0
      %2185 = vmatprep.subr.mxu0 0.0
      %2186 = vmatpush1.msra.mxu0 0.0
      %2187 = vmatprep.subr.mxu0 0.0
      %2188 = vmatpush1.msra.mxu0 0.0
      %2189 = vmatprep.subr.mxu0 0.0
      %2190 = vmatpush1.msra.mxu0 0.0
      %2191 = vmatprep.subr.mxu0 0.0
      %2192 = vmatpush1.msra.mxu0 0.0
      %2193 = vmatprep.subr.mxu0 0.0
      %2194 = vmatpush1.msra.mxu0 0.0
      %2195 = vmatprep.subr.mxu0 0.0
      %2196 = vmatpush1.msra.mxu0 0.0
      %2197 = vmatprep.subr.mxu0 0.0
      %2198 = vmatpush1.msra.mxu0 0.0
      %2199 = vmatprep.subr.mxu0 0.0
      %2200 = vmatpush1.msra.mxu0 0.0
      %2201 = vmatprep.subr.mxu0 0.0
      %2202 = vmatpush1.msra.mxu0 0.0
      %2203 = vmatprep.subr.mxu0 0.0
      %2204 = vmatpush1.msra.mxu0 0.0
      %2205 = vmatprep.subr.mxu0 0.0
      %2206 = vmatpush1.msra.mxu0 0.0
      %2207 = vmatprep.subr.mxu0 0.0
      %2208 = vmatpush1.msra.mxu0 0.0
      %2209 = vmatprep.subr.mxu0 0.0
      %2210 = vmatpush1.msra.mxu0 0.0
      %2211 = vmatprep.subr.mxu0 0.0
      %2212 = vmatpush1.msra.mxu0 0.0
      %2213 = vmatprep.subr.mxu0 0.0
      %2214 = vmatpush1.msra.mxu0 0.0
      %2215 = vmatprep.subr.mxu0 0.0
      %2216 = vmatpush1.msra.mxu0 0.0
      %2217 = vmatprep.subr.mxu0 0.0
      %2218 = vmatpush1.msra.mxu0 0.0
      %2219 = vmatprep.subr.mxu0 0.0
      %2220 = vmatpush1.msra.mxu0 0.0
      %2221 = vmatprep.subr.mxu0 0.0
      %2222 = vmatpush1.msra.mxu0 0.0
      %2223 = vmatprep.subr.mxu0 0.0
      %2224 = vmatpush1.msra.mxu0 0.0
      %2225 = vmatprep.subr.mxu0 0.0
      %2226 = vmatpush1.msra.mxu0 0.0
      %2227 = vmatprep.subr.mxu0 0.0
      %2228 = vmatpush1.msra.mxu0 0.0
      %2229 = vmatprep.subr.mxu0 0.0
      %2230 = vmatpush1.msra.mxu0 0.0
      %2231 = vmatprep.mubr.f32.mxu0 0.0
      %2232 = vmatmul.mubr.f32.gmra.mrb[0].mxu0 %v2068
      %v2233 = vpop.f32.mrb[0].mxu0
      %v2234 = vadd.f32 0.0, %v2233
      %v2235 = vpop.f32.mrb[0].mxu0
      %2236 = vmatprep.mubr.f32.mxu0 0.0
      %2237 = vmatmul.mubr.f32.gmra.mrb[0].mxu0 %v2071
      %v2238 = vpop.f32.mrb[0].mxu0
      %v2239 = vadd.f32 0.0, %v2238
      %v2240 = vpop.f32.mrb[0].mxu0
      %2241 = vmatprep.mubr.f32.mxu0 0.0
      %2242 = vmatmul.mubr.f32.gmra.mrb[0].mxu0 %v2074
      %v2243 = vpop.f32.mrb[0].mxu0
      %v2244 = vadd.f32 0.0, %v2243
      %v2245 = vpop.f32.mrb[0].mxu0
      %2246 = vmatprep.mubr.f32.mxu0 0.0
      %2247 = vmatmul.mubr.f32.gmra.mrb[0].mxu0 %v2077
      %v2248 = vpop.f32.mrb[0].mxu0
      %v2249 = vadd.f32 0.0, %v2248
      %v2250 = vpop.f32.mrb[0].mxu0
      %2251 = vmatprep.mubr.f32.mxu0 0.0
      %2252 = vmatmul.mubr.f32.gmra.mrb[0].mxu0 %v2080
      %v2253 = vpop.f32.mrb[0].mxu0
      %v2254 = vadd.f32 0.0, %v2253
      %v2255 = vpop.f32.mrb[0].mxu0
      %2256 = vmatprep.mubr.f32.mxu0 0.0
      %2257 = vmatmul.mubr.f32.gmra.mrb[0].mxu0 %v2083
      %v2258 = vpop.f32.mrb[0].mxu0
      %v2259 = vadd.f32 0.0, %v2258
      %v2260 = vpop.f32.mrb[0].mxu0
      %2261 = vmatprep.mubr.f32.mxu0 0.0
      %2262 = vmatmul.mubr.f32.gmra.mrb[0].mxu0 %v2086
      %v2263 = vpop.f32.mrb[0].mxu0
      %v2264 = vadd.f32 0.0, %v2263
      %v2265 = vpop.f32.mrb[0].mxu0
      %2266 = vmatprep.mubr.f32.mxu0 0.0
      %2267 = vmatmul.mubr.f32.gmra.mrb[0].mxu0 %v2089
      %v2268 = vpop.f32.mrb[0].mxu0
      %v2269 = vadd.f32 0.0, %v2268
      %v2270 = vpop.f32.mrb[0].mxu0
      %2271 = vmatprep.mubr.f32.mxu0 0.0
      %2272 = vmatmul.mubr.f32.gmra.mrb[0].mxu0 %v2092
      %v2273 = vpop.f32.mrb[0].mxu0
      %v2274 = vadd.f32 0.0, %v2273
      %v2275 = vpop.f32.mrb[0].mxu0
      %2276 = vmatprep.mubr.f32.mxu0 0.0
      %2277 = vmatmul.mubr.f32.gmra.mrb[0].mxu0 %v2095
      %v2278 = vpop.f32.mrb[0].mxu0
      %v2279 = vadd.f32 0.0, %v2278
      %v2280 = vpop.f32.mrb[0].mxu0
      %2281 = vmatprep.mubr.f32.mxu0 0.0
      %2282 = vmatmul.mubr.f32.gmra.mrb[0].mxu0 %v2098
      %v2283 = vpop.f32.mrb[0].mxu0
      %v2284 = vadd.f32 0.0, %v2283
      %v2285 = vpop.f32.mrb[0].mxu0
      %2286 = vmatprep.mubr.f32.mxu0 0.0
      %2287 = vmatmul.mubr.f32.gmra.mrb[0].mxu0 %v2101
      %v2288 = vpop.f32.mrb[0].mxu0
      %v2289 = vadd.f32 0.0, %v2288
      %v2290 = vpop.f32.mrb[0].mxu0
      %2291 = vmatprep.mubr.f32.mxu0 0.0
      %2292 = vmatmul.mubr.f32.gmra.mrb[0].mxu0 %v2104
      %v2293 = vpop.f32.mrb[0].mxu0
      %v2294 = vadd.f32 0.0, %v2293
      %v2295 = vpop.f32.mrb[0].mxu0
      %2296 = vmatprep.mubr.f32.mxu0 0.0
      %2297 = vmatmul.mubr.f32.gmra.mrb[0].mxu0 %v2107
      %v2298 = vpop.f32.mrb[0].mxu0
      %v2299 = vadd.f32 0.0, %v2298
      %v2300 = vpop.f32.mrb[0].mxu0
      %2301 = vmatprep.mubr.f32.mxu0 0.0
      %2302 = vmatmul.mubr.f32.gmra.mrb[0].mxu0 %v2110
      %v2303 = vpop.f32.mrb[0].mxu0
      %v2304 = vadd.f32 0.0, %v2303
      %v2305 = vpop.f32.mrb[0].mxu0
      %2306 = vmatprep.mubr.f32.mxu0 0.0
      %2307 = vmatmul.mubr.f32.gmra.mrb[0].mxu0 %v2113
      %v2308 = vpop.f32.mrb[0].mxu0
      %v2309 = vadd.f32 0.0, %v2308
      %v2310 = vpop.f32.mrb[0].mxu0
      %2311 = vmatprep.mubr.f32.mxu0 0.0
      %2312 = vmatmul.mubr.f32.gmra.mrb[0].mxu0 %v2116
      %v2313 = vpop.f32.mrb[0].mxu0
      %v2314 = vadd.f32 0.0, %v2313
      %v2315 = vpop.f32.mrb[0].mxu0
      %2316 = vmatprep.mubr.f32.mxu0 0.0
      %2317 = vmatmul.mubr.f32.gmra.mrb[0].mxu0 %v2119
      %v2318 = vpop.f32.mrb[0].mxu0
      %v2319 = vadd.f32 0.0, %v2318
      %v2320 = vpop.f32.mrb[0].mxu0
      %2321 = vmatprep.mubr.f32.mxu0 0.0
      %2322 = vmatmul.mubr.f32.gmra.mrb[0].mxu0 %v2122
      %v2323 = vpop.f32.mrb[0].mxu0
      %v2324 = vadd.f32 0.0, %v2323
      %v2325 = vpop.f32.mrb[0].mxu0
      %2326 = vmatprep.mubr.f32.mxu0 0.0
      %2327 = vmatmul.mubr.f32.gmra.mrb[0].mxu0 %v2125
      %v2328 = vpop.f32.mrb[0].mxu0
      %v2329 = vadd.f32 0.0, %v2328
      %v2330 = vpop.f32.mrb[0].mxu0
      %2331 = vmatprep.mubr.f32.mxu0 0.0
      %2332 = vmatmul.mubr.f32.gmra.mrb[0].mxu0 %v2128
      %v2333 = vpop.f32.mrb[0].mxu0
      %v2334 = vadd.f32 0.0, %v2333
      %v2335 = vpop.f32.mrb[0].mxu0
      %2336 = vmatprep.mubr.f32.mxu0 0.0
      %2337 = vmatmul.mubr.f32.gmra.mrb[0].mxu0 %v2131
      %v2338 = vpop.f32.mrb[0].mxu0
      %v2339 = vadd.f32 0.0, %v2338
      %v2340 = vpop.f32.mrb[0].mxu0
      %2341 = vmatprep.mubr.f32.mxu0 0.0
      %2342 = vmatmul.mubr.f32.gmra.mrb[0].mxu0 %v2134
      %v2343 = vpop.f32.mrb[0].mxu0
      %v2344 = vadd.f32 0.0, %v2343
      %v2345 = vpop.f32.mrb[0].mxu0
      %2346 = vmatprep.mubr.f32.mxu0 0.0
      %2347 = vmatmul.mubr.f32.gmra.mrb[0].mxu0 %v2137
      %v2348 = vpop.f32.mrb[0].mxu0
      %v2349 = vadd.f32 0.0, %v2348
      %v2350 = vpop.f32.mrb[0].mxu0
      %2351 = vmatprep.mubr.f32.mxu0 0.0
      %2352 = vmatmul.mubr.f32.gmra.mrb[0].mxu0 %v2140
      %v2353 = vpop.f32.mrb[0].mxu0
      %v2354 = vadd.f32 0.0, %v2353
      %v2355 = vpop.f32.mrb[0].mxu0
      %2356 = vmatprep.mubr.f32.mxu0 0.0
      %2357 = vmatmul.mubr.f32.gmra.mrb[0].mxu0 %v2143
      %v2358 = vpop.f32.mrb[0].mxu0
      %v2359 = vadd.f32 0.0, %v2358
      %v2360 = vpop.f32.mrb[0].mxu0
      %2361 = vmatprep.mubr.f32.mxu0 0.0
      %2362 = vmatmul.mubr.f32.gmra.mrb[0].mxu0 %v2146
      %v2363 = vpop.f32.mrb[0].mxu0
      %v2364 = vadd.f32 0.0, %v2363
      %v2365 = vpop.f32.mrb[0].mxu0
      %2366 = vmatprep.mubr.f32.mxu0 0.0
      %2367 = vmatmul.mubr.f32.gmra.mrb[0].mxu0 %v2149
      %v2368 = vpop.f32.mrb[0].mxu0
      %v2369 = vadd.f32 0.0, %v2368
      %v2370 = vpop.f32.mrb[0].mxu0
      %2371 = vmatprep.mubr.f32.mxu0 0.0
      %2372 = vmatmul.mubr.f32.gmra.mrb[0].mxu0 %v2152
      %v2373 = vpop.f32.mrb[0].mxu0
      %v2374 = vadd.f32 0.0, %v2373
      %v2375 = vpop.f32.mrb[0].mxu0
      %2376 = vmatprep.mubr.f32.mxu0 0.0
      %2377 = vmatmul.mubr.f32.gmra.mrb[0].mxu0 %v2155
      %v2378 = vpop.f32.mrb[0].mxu0
      %v2379 = vadd.f32 0.0, %v2378
      %v2380 = vpop.f32.mrb[0].mxu0
      %2381 = vmatprep.mubr.f32.mxu0 0.0
      %2382 = vmatmul.mubr.f32.gmra.mrb[0].mxu0 %v2158
      %v2383 = vpop.f32.mrb[0].mxu0
      %v2384 = vadd.f32 0.0, %v2383
      %v2385 = vpop.f32.mrb[0].mxu0
      %2386 = vmatprep.mubr.f32.mxu0 0.0
      %2387 = vmatmul.mubr.f32.gmra.mrb[0].mxu0 %v2161
      %v2388 = vpop.f32.mrb[0].mxu0
      %v2389 = vadd.f32 0.0, %v2388
      %v2390 = vpop.f32.mrb[0].mxu0
      %2391 = vdwg.mxu0
      %v2392 = vsel %vm428, %v2234, 0.0
      %v2393 = vsel %vm428, %v2239, 0.0
      %v2394 = vadd.f32 %v2392, %v2393
      %v2395 = vsel %vm428, %v2244, 0.0
      %v2396 = vadd.f32 %v2394, %v2395
      %v2397 = vsel %vm428, %v2249, 0.0
      %v2398 = vadd.f32 %v2396, %v2397
      %v2399 = vsel %vm428, %v2254, 0.0
      %v2400 = vadd.f32 %v2398, %v2399
      %v2401 = vsel %vm428, %v2259, 0.0
      %v2402 = vadd.f32 %v2400, %v2401
      %v2403 = vsel %vm428, %v2264, 0.0
      %v2404 = vadd.f32 %v2402, %v2403
      %v2405 = vsel %vm428, %v2269, 0.0
      %v2406 = vadd.f32 %v2404, %v2405
      %v2407 = vsel %vm428, %v2274, 0.0
      %v2408 = vadd.f32 %v2406, %v2407
      %v2409 = vsel %vm428, %v2279, 0.0
      %v2410 = vadd.f32 %v2408, %v2409
      %v2411 = vsel %vm428, %v2284, 0.0
      %v2412 = vadd.f32 %v2410, %v2411
      %v2413 = vsel %vm428, %v2289, 0.0
      %v2414 = vadd.f32 %v2412, %v2413
      %v2415 = vsel %vm428, %v2294, 0.0
      %v2416 = vadd.f32 %v2414, %v2415
      %v2417 = vsel %vm428, %v2299, 0.0
      %v2418 = vadd.f32 %v2416, %v2417
      %v2419 = vsel %vm428, %v2304, 0.0
      %v2420 = vadd.f32 %v2418, %v2419
      %v2421 = vsel %vm428, %v2309, 0.0
      %v2422 = vadd.f32 %v2420, %v2421
      %v2423 = vsel %vm428, %v2314, 0.0
      %v2424 = vadd.f32 %v2422, %v2423
      %v2425 = vsel %vm428, %v2319, 0.0
      %v2426 = vadd.f32 %v2424, %v2425
      %v2427 = vsel %vm428, %v2324, 0.0
      %v2428 = vadd.f32 %v2426, %v2427
      %v2429 = vsel %vm428, %v2329, 0.0
      %v2430 = vadd.f32 %v2428, %v2429
      %v2431 = vsel %vm428, %v2334, 0.0
      %v2432 = vadd.f32 %v2430, %v2431
      %v2433 = vsel %vm428, %v2339, 0.0
      %v2434 = vadd.f32 %v2432, %v2433
      %v2435 = vsel %vm428, %v2344, 0.0
      %v2436 = vadd.f32 %v2434, %v2435
      %v2437 = vsel %vm428, %v2349, 0.0
      %v2438 = vadd.f32 %v2436, %v2437
      %v2439 = vsel %vm428, %v2354, 0.0
      %v2440 = vadd.f32 %v2438, %v2439
      %v2441 = vsel %vm428, %v2359, 0.0
      %v2442 = vadd.f32 %v2440, %v2441
      %v2443 = vsel %vm428, %v2364, 0.0
      %v2444 = vadd.f32 %v2442, %v2443
      %v2445 = vsel %vm428, %v2369, 0.0
      %v2446 = vadd.f32 %v2444, %v2445
      %v2447 = vsel %vm428, %v2374, 0.0
      %v2448 = vadd.f32 %v2446, %v2447
      %v2449 = vsel %vm428, %v2379, 0.0
      %v2450 = vadd.f32 %v2448, %v2449
      %v2451 = vsel %vm428, %v2384, 0.0
      %v2452 = vadd.f32 %v2450, %v2451
      %v2453 = vsel %vm428, %v2389, 0.0
      %v2454 = vadd.f32 %v2452, %v2453
      %v2455 = vrot.slane %v2454, 4
      %v2456 = vadd.f32 %v2454, %v2455
      %v2457 = vrot.slane %v2456, 2
      %v2458 = vadd.f32 %v2456, %v2457
      %v2459 = vrot.slane %v2458, 1
      %v2460 = vadd.f32 %v2458, %v2459
      %v2461 = vmul.f32 %v2234, %v2234
      %v2462 = vmul.f32 %v2239, %v2239
      %v2463 = vmul.f32 %v2244, %v2244
      %v2464 = vmul.f32 %v2249, %v2249
      %v2465 = vmul.f32 %v2254, %v2254
      %v2466 = vmul.f32 %v2259, %v2259
      %v2467 = vmul.f32 %v2264, %v2264
      %v2468 = vmul.f32 %v2269, %v2269
      %v2469 = vmul.f32 %v2274, %v2274
      %v2470 = vmul.f32 %v2279, %v2279
      %v2471 = vmul.f32 %v2284, %v2284
      %v2472 = vmul.f32 %v2289, %v2289
      %v2473 = vmul.f32 %v2294, %v2294
      %v2474 = vmul.f32 %v2299, %v2299
      %v2475 = vmul.f32 %v2304, %v2304
      %v2476 = vmul.f32 %v2309, %v2309
      %v2477 = vmul.f32 %v2314, %v2314
      %v2478 = vmul.f32 %v2319, %v2319
      %v2479 = vmul.f32 %v2324, %v2324
      %v2480 = vmul.f32 %v2329, %v2329
      %v2481 = vmul.f32 %v2334, %v2334
      %v2482 = vmul.f32 %v2339, %v2339
      %v2483 = vmul.f32 %v2344, %v2344
      %v2484 = vmul.f32 %v2349, %v2349
      %v2485 = vmul.f32 %v2354, %v2354
      %v2486 = vmul.f32 %v2359, %v2359
      %v2487 = vmul.f32 %v2364, %v2364
      %v2488 = vmul.f32 %v2369, %v2369
      %v2489 = vmul.f32 %v2374, %v2374
      %v2490 = vmul.f32 %v2379, %v2379
      %v2491 = vmul.f32 %v2384, %v2384
      %v2492 = vmul.f32 %v2389, %v2389
      %v2493 = vsel %vm428, %v2461, 0.0
      %v2494 = vsel %vm428, %v2462, 0.0
      %v2495 = vadd.f32 %v2493, %v2494
      %v2496 = vsel %vm428, %v2463, 0.0
      %v2497 = vadd.f32 %v2495, %v2496
      %v2498 = vsel %vm428, %v2464, 0.0
      %v2499 = vadd.f32 %v2497, %v2498
      %v2500 = vsel %vm428, %v2465, 0.0
      %v2501 = vadd.f32 %v2499, %v2500
      %v2502 = vsel %vm428, %v2466, 0.0
      %v2503 = vadd.f32 %v2501, %v2502
      %v2504 = vsel %vm428, %v2467, 0.0
      %v2505 = vadd.f32 %v2503, %v2504
      %v2506 = vsel %vm428, %v2468, 0.0
      %v2507 = vadd.f32 %v2505, %v2506
      %v2508 = vsel %vm428, %v2469, 0.0
      %v2509 = vadd.f32 %v2507, %v2508
      %v2510 = vsel %vm428, %v2470, 0.0
      %v2511 = vadd.f32 %v2509, %v2510
      %v2512 = vsel %vm428, %v2471, 0.0
      %v2513 = vadd.f32 %v2511, %v2512
      %v2514 = vsel %vm428, %v2472, 0.0
      %v2515 = vadd.f32 %v2513, %v2514
      %v2516 = vsel %vm428, %v2473, 0.0
      %v2517 = vadd.f32 %v2515, %v2516
      %v2518 = vsel %vm428, %v2474, 0.0
      %v2519 = vadd.f32 %v2517, %v2518
      %v2520 = vsel %vm428, %v2475, 0.0
      %v2521 = vadd.f32 %v2519, %v2520
      %v2522 = vsel %vm428, %v2476, 0.0
      %v2523 = vadd.f32 %v2521, %v2522
      %v2524 = vsel %vm428, %v2477, 0.0
      %v2525 = vadd.f32 %v2523, %v2524
      %v2526 = vsel %vm428, %v2478, 0.0
      %v2527 = vadd.f32 %v2525, %v2526
      %v2528 = vsel %vm428, %v2479, 0.0
      %v2529 = vadd.f32 %v2527, %v2528
      %v2530 = vsel %vm428, %v2480, 0.0
      %v2531 = vadd.f32 %v2529, %v2530
      %v2532 = vsel %vm428, %v2481, 0.0
      %v2533 = vadd.f32 %v2531, %v2532
      %v2534 = vsel %vm428, %v2482, 0.0
      %v2535 = vadd.f32 %v2533, %v2534
      %v2536 = vsel %vm428, %v2483, 0.0
      %v2537 = vadd.f32 %v2535, %v2536
      %v2538 = vsel %vm428, %v2484, 0.0
      %v2539 = vadd.f32 %v2537, %v2538
      %v2540 = vsel %vm428, %v2485, 0.0
      %v2541 = vadd.f32 %v2539, %v2540
      %v2542 = vsel %vm428, %v2486, 0.0
      %v2543 = vadd.f32 %v2541, %v2542
      %v2544 = vsel %vm428, %v2487, 0.0
      %v2545 = vadd.f32 %v2543, %v2544
      %v2546 = vsel %vm428, %v2488, 0.0
      %v2547 = vadd.f32 %v2545, %v2546
      %v2548 = vsel %vm428, %v2489, 0.0
      %v2549 = vadd.f32 %v2547, %v2548
      %v2550 = vsel %vm428, %v2490, 0.0
      %v2551 = vadd.f32 %v2549, %v2550
      %v2552 = vsel %vm428, %v2491, 0.0
      %v2553 = vadd.f32 %v2551, %v2552
      %v2554 = vsel %vm428, %v2492, 0.0
      %v2555 = vadd.f32 %v2553, %v2554
      %v2556 = vrot.slane %v2555, 4
      %v2557 = vadd.f32 %v2555, %v2556
      %v2558 = vrot.slane %v2557, 2
      %v2559 = vadd.f32 %v2557, %v2558
      %v2560 = vrot.slane %v2559, 1
      %v2561 = vadd.f32 %v2559, %v2560
      %v2562 = vmul.f32 %v2460, 0.00390625
      %v2563 = vmul.f32 %v2561, 0.00390625
      %v2564 = vmul.f32 %v2562, %v2562
      %v2565 = vsub.f32 %v2563, %v2564
      %v2566 = vadd.f32 %v2565, 1e-05
      %v2567 = vrsqrt.pop %v2566
      %v2568 = vsub.f32 0.0, %v2562
      %v2569 = vmul.f32 %v2568, %v2567
      %v2570 = vmul.f32 %v2234, %v2567
      %v2571 = vmul.f32 %v2239, %v2567
      %v2572 = vmul.f32 %v2244, %v2567
      %v2573 = vmul.f32 %v2249, %v2567
      %v2574 = vmul.f32 %v2254, %v2567
      %v2575 = vmul.f32 %v2259, %v2567
      %v2576 = vmul.f32 %v2264, %v2567
      %v2577 = vmul.f32 %v2269, %v2567
      %v2578 = vmul.f32 %v2274, %v2567
      %v2579 = vmul.f32 %v2279, %v2567
      %v2580 = vmul.f32 %v2284, %v2567
      %v2581 = vmul.f32 %v2289, %v2567
      %v2582 = vmul.f32 %v2294, %v2567
      %v2583 = vmul.f32 %v2299, %v2567
      %v2584 = vmul.f32 %v2304, %v2567
      %v2585 = vmul.f32 %v2309, %v2567
      %v2586 = vmul.f32 %v2314, %v2567
      %v2587 = vmul.f32 %v2319, %v2567
      %v2588 = vmul.f32 %v2324, %v2567
      %v2589 = vmul.f32 %v2329, %v2567
      %v2590 = vmul.f32 %v2334, %v2567
      %v2591 = vmul.f32 %v2339, %v2567
      %v2592 = vmul.f32 %v2344, %v2567
      %v2593 = vmul.f32 %v2349, %v2567
      %v2594 = vmul.f32 %v2354, %v2567
      %v2595 = vmul.f32 %v2359, %v2567
      %v2596 = vmul.f32 %v2364, %v2567
      %v2597 = vmul.f32 %v2369, %v2567
      %v2598 = vmul.f32 %v2374, %v2567
      %v2599 = vmul.f32 %v2379, %v2567
      %v2600 = vmul.f32 %v2384, %v2567
      %v2601 = vmul.f32 %v2389, %v2567
      %v2602 = vadd.f32 %v2570, %v2569
      %v2603 = vadd.f32 %v2571, %v2569
      %v2604 = vadd.f32 %v2572, %v2569
      %v2605 = vadd.f32 %v2573, %v2569
      %v2606 = vadd.f32 %v2574, %v2569
      %v2607 = vadd.f32 %v2575, %v2569
      %v2608 = vadd.f32 %v2576, %v2569
      %v2609 = vadd.f32 %v2577, %v2569
      %v2610 = vadd.f32 %v2578, %v2569
      %v2611 = vadd.f32 %v2579, %v2569
      %v2612 = vadd.f32 %v2580, %v2569
      %v2613 = vadd.f32 %v2581, %v2569
      %v2614 = vadd.f32 %v2582, %v2569
      %v2615 = vadd.f32 %v2583, %v2569
      %v2616 = vadd.f32 %v2584, %v2569
      %v2617 = vadd.f32 %v2585, %v2569
      %v2618 = vadd.f32 %v2586, %v2569
      %v2619 = vadd.f32 %v2587, %v2569
      %v2620 = vadd.f32 %v2588, %v2569
      %v2621 = vadd.f32 %v2589, %v2569
      %v2622 = vadd.f32 %v2590, %v2569
      %v2623 = vadd.f32 %v2591, %v2569
      %v2624 = vadd.f32 %v2592, %v2569
      %v2625 = vadd.f32 %v2593, %v2569
      %v2626 = vadd.f32 %v2594, %v2569
      %v2627 = vadd.f32 %v2595, %v2569
      %v2628 = vadd.f32 %v2596, %v2569
      %v2629 = vadd.f32 %v2597, %v2569
      %v2630 = vadd.f32 %v2598, %v2569
      %v2631 = vadd.f32 %v2599, %v2569
      %v2632 = vadd.f32 %v2600, %v2569
      %v2633 = vadd.f32 %v2601, %v2569
      %v2634 = vmax.f32 %v2602, 0.0
      %v2635 = vmax.f32 %v2603, 0.0
      %v2636 = vmax.f32 %v2604, 0.0
      %v2637 = vmax.f32 %v2605, 0.0
      %v2638 = vmax.f32 %v2606, 0.0
      %v2639 = vmax.f32 %v2607, 0.0
      %v2640 = vmax.f32 %v2608, 0.0
      %v2641 = vmax.f32 %v2609, 0.0
      %v2642 = vmax.f32 %v2610, 0.0
      %v2643 = vmax.f32 %v2611, 0.0
      %v2644 = vmax.f32 %v2612, 0.0
      %v2645 = vmax.f32 %v2613, 0.0
      %v2646 = vmax.f32 %v2614, 0.0
      %v2647 = vmax.f32 %v2615, 0.0
      %v2648 = vmax.f32 %v2616, 0.0
      %v2649 = vmax.f32 %v2617, 0.0
      %v2650 = vmax.f32 %v2618, 0.0
      %v2651 = vmax.f32 %v2619, 0.0
      %v2652 = vmax.f32 %v2620, 0.0
      %v2653 = vmax.f32 %v2621, 0.0
      %v2654 = vmax.f32 %v2622, 0.0
      %v2655 = vmax.f32 %v2623, 0.0
      %v2656 = vmax.f32 %v2624, 0.0
      %v2657 = vmax.f32 %v2625, 0.0
      %v2658 = vmax.f32 %v2626, 0.0
      %v2659 = vmax.f32 %v2627, 0.0
      %v2660 = vmax.f32 %v2628, 0.0
      %v2661 = vmax.f32 %v2629, 0.0
      %v2662 = vmax.f32 %v2630, 0.0
      %v2663 = vmax.f32 %v2631, 0.0
      %v2664 = vmax.f32 %v2632, 0.0
      %v2665 = vmax.f32 %v2633, 0.0
      %v2682 = vrot.slane %v2636, 1
      %v2683 = vrot.slane %v2634, 1
      %v2684 = vrot.slane %v2638, 1
      %v2685 = vrot.slane %v2640, 1
      %v2686 = vrot.slane %v2642, 1
      %v2687 = vrot.slane %v2644, 1
      %v2688 = vrot.slane %v2646, 1
      %v2689 = vrot.slane %v2648, 1
      %v2690 = vrot.slane %v2650, 1
      %v2691 = vrot.slane %v2652, 1
      %v2692 = vrot.slane %v2654, 1
      %v2693 = vrot.slane %v2656, 1
      %v2694 = vrot.slane %v2658, 1
      %v2695 = vrot.slane %v2660, 1
      %v2696 = vrot.slane %v2662, 1
      %v2697 = vrot.slane %v2664, 1
      %v2730 = vrot.slane %v2636, 7
      %v2731 = vrot.slane %v2637, 7
      %v2732 = vsel %vm267, %v2730, %v2731
      %v2733 = vrot.slane %v2634, 7
      %v2734 = vrot.slane %v2635, 7
      %v2735 = vsel %vm267, %v2733, %v2734
      %v2736 = vrot.slane %v2638, 7
      %v2737 = vrot.slane %v2639, 7
      %v2738 = vsel %vm267, %v2736, %v2737
      %v2739 = vrot.slane %v2640, 7
      %v2740 = vrot.slane %v2641, 7
      %v2741 = vsel %vm267, %v2739, %v2740
      %v2742 = vrot.slane %v2642, 7
      %v2743 = vrot.slane %v2643, 7
      %v2744 = vsel %vm267, %v2742, %v2743
      %v2745 = vrot.slane %v2644, 7
      %v2746 = vrot.slane %v2645, 7
      %v2747 = vsel %vm267, %v2745, %v2746
      %v2748 = vrot.slane %v2646, 7
      %v2749 = vrot.slane %v2647, 7
      %v2750 = vsel %vm267, %v2748, %v2749
      %v2751 = vrot.slane %v2648, 7
      %v2752 = vrot.slane %v2649, 7
      %v2753 = vsel %vm267, %v2751, %v2752
      %v2754 = vrot.slane %v2650, 7
      %v2755 = vrot.slane %v2651, 7
      %v2756 = vsel %vm267, %v2754, %v2755
      %v2757 = vrot.slane %v2652, 7
      %v2758 = vrot.slane %v2653, 7
      %v2759 = vsel %vm267, %v2757, %v2758
      %v2760 = vrot.slane %v2654, 7
      %v2761 = vrot.slane %v2655, 7
      %v2762 = vsel %vm267, %v2760, %v2761
      %v2763 = vrot.slane %v2656, 7
      %v2764 = vrot.slane %v2657, 7
      %v2765 = vsel %vm267, %v2763, %v2764
      %v2766 = vrot.slane %v2658, 7
      %v2767 = vrot.slane %v2659, 7
      %v2768 = vsel %vm267, %v2766, %v2767
      %v2769 = vrot.slane %v2660, 7
      %v2770 = vrot.slane %v2661, 7
      %v2771 = vsel %vm267, %v2769, %v2770
      %v2772 = vrot.slane %v2662, 7
      %v2773 = vrot.slane %v2663, 7
      %v2774 = vsel %vm267, %v2772, %v2773
      %v2775 = vrot.slane %v2664, 7
      %v2776 = vrot.slane %v2665, 7
      %v2777 = vsel %vm267, %v2775, %v2776
      %v2826 = vrot.slane %v2637, 5
      %v2827 = vrot.slane %v2635, 5
      %v2828 = vrot.slane %v2639, 5
      %v2829 = vrot.slane %v2641, 5
      %v2830 = vrot.slane %v2643, 5
      %v2831 = vrot.slane %v2645, 5
      %v2832 = vrot.slane %v2647, 5
      %v2833 = vrot.slane %v2649, 5
      %v2834 = vrot.slane %v2651, 5
      %v2835 = vrot.slane %v2653, 5
      %v2836 = vrot.slane %v2655, 5
      %v2837 = vrot.slane %v2657, 5
      %v2838 = vrot.slane %v2659, 5
      %v2839 = vrot.slane %v2661, 5
      %v2840 = vrot.slane %v2663, 5
      %v2841 = vrot.slane %v2665, 5
      %v2858 = vsel %vm267, %v2682, %v2730
      %v2859 = vsel %vm267, %v2683, %v2733
      %v2860 = vsel %vm267, %v2684, %v2736
      %v2861 = vsel %vm267, %v2685, %v2739
      %v2862 = vsel %vm267, %v2686, %v2742
      %v2863 = vsel %vm267, %v2687, %v2745
      %v2864 = vsel %vm267, %v2688, %v2748
      %v2865 = vsel %vm267, %v2689, %v2751
      %v2866 = vsel %vm267, %v2690, %v2754
      %v2867 = vsel %vm267, %v2691, %v2757
      %v2868 = vsel %vm267, %v2692, %v2760
      %v2869 = vsel %vm267, %v2693, %v2763
      %v2870 = vsel %vm267, %v2694, %v2766
      %v2871 = vsel %vm267, %v2695, %v2769
      %v2872 = vsel %vm267, %v2696, %v2772
      %v2873 = vsel %vm267, %v2697, %v2775
      %v2874 = vsel %vm267, %v2731, %v2826
      %v2875 = vsel %vm267, %v2734, %v2827
      %v2876 = vsel %vm267, %v2737, %v2828
      %v2877 = vsel %vm267, %v2740, %v2829
      %v2878 = vsel %vm267, %v2743, %v2830
      %v2879 = vsel %vm267, %v2746, %v2831
      %v2880 = vsel %vm267, %v2749, %v2832
      %v2881 = vsel %vm267, %v2752, %v2833
      %v2882 = vsel %vm267, %v2755, %v2834
      %v2883 = vsel %vm267, %v2758, %v2835
      %v2884 = vsel %vm267, %v2761, %v2836
      %v2885 = vsel %vm267, %v2764, %v2837
      %v2886 = vsel %vm267, %v2767, %v2838
      %v2887 = vsel %vm267, %v2770, %v2839
      %v2888 = vsel %vm267, %v2773, %v2840
      %v2889 = vsel %vm267, %v2776, %v2841
      %2890 = vst.msk [vmem:[#allocation2] sm:$0xff] %vm428, %v2858
      %2891 = vst.msk [vmem:[#allocation2 + $0x8] sm:$0xff] %vm428, %v2732
      %2892 = vst.msk [vmem:[#allocation2 + $0x10] sm:$0x3] %vm431, %v2874
      %2893 = vst.msk [vmem:[#allocation2 + $0x18] sm:$0xff] %vm428, %v2859
      %2894 = vst.msk [vmem:[#allocation2 + $0x20] sm:$0xff] %vm428, %v2735
      %2895 = vst.msk [vmem:[#allocation2 + $0x28] sm:$0x3] %vm431, %v2875
      %2896 = vst.msk [vmem:[#allocation2 + $0x30] sm:$0xff] %vm428, %v2858
      %2897 = vst.msk [vmem:[#allocation2 + $0x38] sm:$0xff] %vm428, %v2732
      %2898 = vst.msk [vmem:[#allocation2 + $0x40] sm:$0x3] %vm431, %v2874
      %2899 = vst.msk [vmem:[#allocation2 + $0x48] sm:$0xff] %vm428, %v2860
      %2900 = vst.msk [vmem:[#allocation2 + $0x50] sm:$0xff] %vm428, %v2738
      %2901 = vst.msk [vmem:[#allocation2 + $0x58] sm:$0x3] %vm431, %v2876
      %2902 = vst.msk [vmem:[#allocation2 + $0x60] sm:$0xff] %vm428, %v2861
      %2903 = vst.msk [vmem:[#allocation2 + $0x68] sm:$0xff] %vm428, %v2741
      %2904 = vst.msk [vmem:[#allocation2 + $0x70] sm:$0x3] %vm431, %v2877
      %2905 = vst.msk [vmem:[#allocation2 + $0x78] sm:$0xff] %vm428, %v2862
      %2906 = vst.msk [vmem:[#allocation2 + $0x80] sm:$0xff] %vm428, %v2744
      %2907 = vst.msk [vmem:[#allocation2 + $0x88] sm:$0x3] %vm431, %v2878
      %2908 = vst.msk [vmem:[#allocation2 + $0x90] sm:$0xff] %vm428, %v2863
      %2909 = vst.msk [vmem:[#allocation2 + $0x98] sm:$0xff] %vm428, %v2747
      %2910 = vst.msk [vmem:[#allocation2 + $0xa0] sm:$0x3] %vm431, %v2879
      %2911 = vst.msk [vmem:[#allocation2 + $0xa8] sm:$0xff] %vm428, %v2864
      %2912 = vst.msk [vmem:[#allocation2 + $0xb0] sm:$0xff] %vm428, %v2750
      %2913 = vst.msk [vmem:[#allocation2 + $0xb8] sm:$0x3] %vm431, %v2880
      %2914 = vst.msk [vmem:[#allocation2 + $0xc0] sm:$0xff] %vm428, %v2865
      %2915 = vst.msk [vmem:[#allocation2 + $0xc8] sm:$0xff] %vm428, %v2753
      %2916 = vst.msk [vmem:[#allocation2 + $0xd0] sm:$0x3] %vm431, %v2881
      %2917 = vst.msk [vmem:[#allocation2 + $0xd8] sm:$0xff] %vm428, %v2866
      %2918 = vst.msk [vmem:[#allocation2 + $0xe0] sm:$0xff] %vm428, %v2756
      %2919 = vst.msk [vmem:[#allocation2 + $0xe8] sm:$0x3] %vm431, %v2882
      %2920 = vst.msk [vmem:[#allocation2 + $0xf0] sm:$0xff] %vm428, %v2867
      %2921 = vst.msk [vmem:[#allocation2 + $0xf8] sm:$0xff] %vm428, %v2759
      %2922 = vst.msk [vmem:[#allocation2 + $0x100] sm:$0x3] %vm431, %v2883
      %2923 = vst.msk [vmem:[#allocation2 + $0x108] sm:$0xff] %vm428, %v2868
      %2924 = vst.msk [vmem:[#allocation2 + $0x110] sm:$0xff] %vm428, %v2762
      %2925 = vst.msk [vmem:[#allocation2 + $0x118] sm:$0x3] %vm431, %v2884
      %2926 = vst.msk [vmem:[#allocation2 + $0x120] sm:$0xff] %vm428, %v2869
      %2927 = vst.msk [vmem:[#allocation2 + $0x128] sm:$0xff] %vm428, %v2765
      %2928 = vst.msk [vmem:[#allocation2 + $0x130] sm:$0x3] %vm431, %v2885
      %2929 = vst.msk [vmem:[#allocation2 + $0x138] sm:$0xff] %vm428, %v2870
      %2930 = vst.msk [vmem:[#allocation2 + $0x140] sm:$0xff] %vm428, %v2768
      %2931 = vst.msk [vmem:[#allocation2 + $0x148] sm:$0x3] %vm431, %v2886
      %2932 = vst.msk [vmem:[#allocation2 + $0x150] sm:$0xff] %vm428, %v2871
      %2933 = vst.msk [vmem:[#allocation2 + $0x158] sm:$0xff] %vm428, %v2771
      %2934 = vst.msk [vmem:[#allocation2 + $0x160] sm:$0x3] %vm431, %v2887
      %2935 = vst.msk [vmem:[#allocation2 + $0x168] sm:$0xff] %vm428, %v2872
      %2936 = vst.msk [vmem:[#allocation2 + $0x170] sm:$0xff] %vm428, %v2774
      %2937 = vst.msk [vmem:[#allocation2 + $0x178] sm:$0x3] %vm431, %v2888
      %2938 = vst.msk [vmem:[#allocation2 + $0x180] sm:$0xff] %vm428, %v2873
      %2939 = vst.msk [vmem:[#allocation2 + $0x188] sm:$0xff] %vm428, %v2777
      %2940 = vst.msk [vmem:[#allocation2 + $0x190] sm:$0x3] %vm431, %v2889
      %2941 = vst.msk [vmem:[#allocation2 + $0x198] sm:$0xff] %vm428, %v2872
      %2942 = vst.msk [vmem:[#allocation2 + $0x1a0] sm:$0xff] %vm428, %v2774
      %2943 = vst.msk [vmem:[#allocation2 + $0x1a8] sm:$0x3] %vm431, %v2888
      %v2944 = vld [vmem:[#allocation2] sm:$0xff]
      %v2945 = vld [vmem:[#allocation2 + $0x8] sm:$0xff]
      %v2946 = vld [vmem:[#allocation2 + $0x18] sm:$0xff]
      %v2947 = vld [vmem:[#allocation2 + $0x20] sm:$0xff]
      %v2948 = vld [vmem:[#allocation2 + $0x30] sm:$0xff]
      %v2949 = vld [vmem:[#allocation2 + $0x38] sm:$0xff]
      %v2950 = vld [vmem:[#allocation2 + $0x48] sm:$0xff]
      %v2951 = vld [vmem:[#allocation2 + $0x50] sm:$0xff]
      %v2952 = vld [vmem:[#allocation2 + $0x60] sm:$0xff]
      %v2953 = vld [vmem:[#allocation2 + $0x68] sm:$0xff]
      %v2954 = vld [vmem:[#allocation2 + $0x78] sm:$0xff]
      %v2955 = vld [vmem:[#allocation2 + $0x80] sm:$0xff]
      %v2956 = vld [vmem:[#allocation2 + $0x90] sm:$0xff]
      %v2957 = vld [vmem:[#allocation2 + $0x98] sm:$0xff]
      %v2958 = vld [vmem:[#allocation2 + $0xa8] sm:$0xff]
      %v2959 = vld [vmem:[#allocation2 + $0xb0] sm:$0xff]
      %v2960 = vld [vmem:[#allocation2 + $0xc0] sm:$0xff]
      %v2961 = vld [vmem:[#allocation2 + $0xc8] sm:$0xff]
      %v2962 = vld [vmem:[#allocation2 + $0xd8] sm:$0xff]
      %v2963 = vld [vmem:[#allocation2 + $0xe0] sm:$0xff]
      %v2964 = vld [vmem:[#allocation2 + $0xf0] sm:$0xff]
      %v2965 = vld [vmem:[#allocation2 + $0xf8] sm:$0xff]
      %v2966 = vld [vmem:[#allocation2 + $0x108] sm:$0xff]
      %v2967 = vld [vmem:[#allocation2 + $0x110] sm:$0xff]
      %v2968 = vld [vmem:[#allocation2 + $0x120] sm:$0xff]
      %v2969 = vld [vmem:[#allocation2 + $0x128] sm:$0xff]
      %v2970 = vld [vmem:[#allocation2 + $0x138] sm:$0xff]
      %v2971 = vld [vmem:[#allocation2 + $0x140] sm:$0xff]
      %v2972 = vld [vmem:[#allocation2 + $0x150] sm:$0xff]
      %v2973 = vld [vmem:[#allocation2 + $0x158] sm:$0xff]
      %v2974 = vld [vmem:[#allocation2 + $0x168] sm:$0xff]
      %v2975 = vld [vmem:[#allocation2 + $0x170] sm:$0xff]
      %v2976 = vld [vmem:[#allocation2 + $0x1] sm:$0xff]
      %v2977 = vld [vmem:[#allocation2 + $0x9] sm:$0xff]
      %v2978 = vld [vmem:[#allocation2 + $0x19] sm:$0xff]
      %v2979 = vld [vmem:[#allocation2 + $0x21] sm:$0xff]
      %v2980 = vld [vmem:[#allocation2 + $0x31] sm:$0xff]
      %v2981 = vld [vmem:[#allocation2 + $0x39] sm:$0xff]
      %v2982 = vld [vmem:[#allocation2 + $0x49] sm:$0xff]
      %v2983 = vld [vmem:[#allocation2 + $0x51] sm:$0xff]
      %v2984 = vld [vmem:[#allocation2 + $0x61] sm:$0xff]
      %v2985 = vld [vmem:[#allocation2 + $0x69] sm:$0xff]
      %v2986 = vld [vmem:[#allocation2 + $0x79] sm:$0xff]
      %v2987 = vld [vmem:[#allocation2 + $0x81] sm:$0xff]
      %v2988 = vld [vmem:[#allocation2 + $0x91] sm:$0xff]
      %v2989 = vld [vmem:[#allocation2 + $0x99] sm:$0xff]
      %v2990 = vld [vmem:[#allocation2 + $0xa9] sm:$0xff]
      %v2991 = vld [vmem:[#allocation2 + $0xb1] sm:$0xff]
      %v2992 = vld [vmem:[#allocation2 + $0xc1] sm:$0xff]
      %v2993 = vld [vmem:[#allocation2 + $0xc9] sm:$0xff]
      %v2994 = vld [vmem:[#allocation2 + $0xd9] sm:$0xff]
      %v2995 = vld [vmem:[#allocation2 + $0xe1] sm:$0xff]
      %v2996 = vld [vmem:[#allocation2 + $0xf1] sm:$0xff]
      %v2997 = vld [vmem:[#allocation2 + $0xf9] sm:$0xff]
      %v2998 = vld [vmem:[#allocation2 + $0x109] sm:$0xff]
      %v2999 = vld [vmem:[#allocation2 + $0x111] sm:$0xff]
      %v3000 = vld [vmem:[#allocation2 + $0x121] sm:$0xff]
      %v3001 = vld [vmem:[#allocation2 + $0x129] sm:$0xff]
      %v3002 = vld [vmem:[#allocation2 + $0x139] sm:$0xff]
      %v3003 = vld [vmem:[#allocation2 + $0x141] sm:$0xff]
      %v3004 = vld [vmem:[#allocation2 + $0x151] sm:$0xff]
      %v3005 = vld [vmem:[#allocation2 + $0x159] sm:$0xff]
      %v3006 = vld [vmem:[#allocation2 + $0x169] sm:$0xff]
      %v3007 = vld [vmem:[#allocation2 + $0x171] sm:$0xff]
      %v3008 = vld [vmem:[#allocation2 + $0x2] sm:$0xff]
      %v3009 = vld [vmem:[#allocation2 + $0xa] sm:$0xff]
      %v3010 = vld [vmem:[#allocation2 + $0x1a] sm:$0xff]
      %v3011 = vld [vmem:[#allocation2 + $0x22] sm:$0xff]
      %v3012 = vld [vmem:[#allocation2 + $0x32] sm:$0xff]
      %v3013 = vld [vmem:[#allocation2 + $0x3a] sm:$0xff]
      %v3014 = vld [vmem:[#allocation2 + $0x4a] sm:$0xff]
      %v3015 = vld [vmem:[#allocation2 + $0x52] sm:$0xff]
      %v3016 = vld [vmem:[#allocation2 + $0x62] sm:$0xff]
      %v3017 = vld [vmem:[#allocation2 + $0x6a] sm:$0xff]
      %v3018 = vld [vmem:[#allocation2 + $0x7a] sm:$0xff]
      %v3019 = vld [vmem:[#allocation2 + $0x82] sm:$0xff]
      %v3020 = vld [vmem:[#allocation2 + $0x92] sm:$0xff]
      %v3021 = vld [vmem:[#allocation2 + $0x9a] sm:$0xff]
      %v3022 = vld [vmem:[#allocation2 + $0xaa] sm:$0xff]
      %v3023 = vld [vmem:[#allocation2 + $0xb2] sm:$0xff]
      %v3024 = vld [vmem:[#allocation2 + $0xc2] sm:$0xff]
      %v3025 = vld [vmem:[#allocation2 + $0xca] sm:$0xff]
      %v3026 = vld [vmem:[#allocation2 + $0xda] sm:$0xff]
      %v3027 = vld [vmem:[#allocation2 + $0xe2] sm:$0xff]
      %v3028 = vld [vmem:[#allocation2 + $0xf2] sm:$0xff]
      %v3029 = vld [vmem:[#allocation2 + $0xfa] sm:$0xff]
      %v3030 = vld [vmem:[#allocation2 + $0x10a] sm:$0xff]
      %v3031 = vld [vmem:[#allocation2 + $0x112] sm:$0xff]
      %v3032 = vld [vmem:[#allocation2 + $0x122] sm:$0xff]
      %v3033 = vld [vmem:[#allocation2 + $0x12a] sm:$0xff]
      %v3034 = vld [vmem:[#allocation2 + $0x13a] sm:$0xff]
      %v3035 = vld [vmem:[#allocation2 + $0x142] sm:$0xff]
      %v3036 = vld [vmem:[#allocation2 + $0x152] sm:$0xff]
      %v3037 = vld [vmem:[#allocation2 + $0x15a] sm:$0xff]
      %v3038 = vld [vmem:[#allocation2 + $0x16a] sm:$0xff]
      %v3039 = vld [vmem:[#allocation2 + $0x172] sm:$0xff]
      %v3040 = vld [vmem:[%s580] sm:$0xff]
      %v3041 = vld [vmem:[%s580 + $0x8] sm:$0xff]
      %v3042 = vld [vmem:[%s580 + $0x18] sm:$0xff]
      %v3043 = vld [vmem:[%s580 + $0x20] sm:$0xff]
      %v3044 = vld [vmem:[%s580 + $0x30] sm:$0xff]
      %v3045 = vld [vmem:[%s580 + $0x38] sm:$0xff]
      %v3046 = vld [vmem:[%s580 + $0x48] sm:$0xff]
      %v3047 = vld [vmem:[%s580 + $0x50] sm:$0xff]
      %v3048 = vld [vmem:[%s580 + $0x60] sm:$0xff]
      %v3049 = vld [vmem:[%s580 + $0x68] sm:$0xff]
      %v3050 = vld [vmem:[%s580 + $0x78] sm:$0xff]
      %v3051 = vld [vmem:[%s580 + $0x80] sm:$0xff]
      %v3052 = vld [vmem:[%s580 + $0x90] sm:$0xff]
      %v3053 = vld [vmem:[%s580 + $0x98] sm:$0xff]
      %v3054 = vld [vmem:[%s580 + $0xa8] sm:$0xff]
      %v3055 = vld [vmem:[%s580 + $0xb0] sm:$0xff]
      %v3056 = vld [vmem:[%s580 + $0xc0] sm:$0xff]
      %v3057 = vld [vmem:[%s580 + $0xc8] sm:$0xff]
      %v3058 = vld [vmem:[%s580 + $0xd8] sm:$0xff]
      %v3059 = vld [vmem:[%s580 + $0xe0] sm:$0xff]
      %v3060 = vld [vmem:[%s580 + $0xf0] sm:$0xff]
      %v3061 = vld [vmem:[%s580 + $0xf8] sm:$0xff]
      %v3062 = vld [vmem:[%s580 + $0x108] sm:$0xff]
      %v3063 = vld [vmem:[%s580 + $0x110] sm:$0xff]
      %v3064 = vld [vmem:[%s580 + $0x120] sm:$0xff]
      %v3065 = vld [vmem:[%s580 + $0x128] sm:$0xff]
      %v3066 = vld [vmem:[%s580 + $0x138] sm:$0xff]
      %v3067 = vld [vmem:[%s580 + $0x140] sm:$0xff]
      %v3068 = vld [vmem:[%s580 + $0x150] sm:$0xff]
      %v3069 = vld [vmem:[%s580 + $0x158] sm:$0xff]
      %v3070 = vld [vmem:[%s580 + $0x168] sm:$0xff]
      %v3071 = vld [vmem:[%s580 + $0x170] sm:$0xff]
      %v3072 = vld [vmem:[%s580 + $0x1] sm:$0xff]
      %v3073 = vld [vmem:[%s580 + $0x9] sm:$0xff]
      %v3074 = vld [vmem:[%s580 + $0x19] sm:$0xff]
      %v3075 = vld [vmem:[%s580 + $0x21] sm:$0xff]
      %v3076 = vld [vmem:[%s580 + $0x31] sm:$0xff]
      %v3077 = vld [vmem:[%s580 + $0x39] sm:$0xff]
      %v3078 = vld [vmem:[%s580 + $0x49] sm:$0xff]
      %v3079 = vld [vmem:[%s580 + $0x51] sm:$0xff]
      %v3080 = vld [vmem:[%s580 + $0x61] sm:$0xff]
      %v3081 = vld [vmem:[%s580 + $0x69] sm:$0xff]
      %v3082 = vld [vmem:[%s580 + $0x79] sm:$0xff]
      %v3083 = vld [vmem:[%s580 + $0x81] sm:$0xff]
      %v3084 = vld [vmem:[%s580 + $0x91] sm:$0xff]
      %v3085 = vld [vmem:[%s580 + $0x99] sm:$0xff]
      %v3086 = vld [vmem:[%s580 + $0xa9] sm:$0xff]
      %v3087 = vld [vmem:[%s580 + $0xb1] sm:$0xff]
      %v3088 = vld [vmem:[%s580 + $0xc1] sm:$0xff]
      %v3089 = vld [vmem:[%s580 + $0xc9] sm:$0xff]
      %v3090 = vld [vmem:[%s580 + $0xd9] sm:$0xff]
      %v3091 = vld [vmem:[%s580 + $0xe1] sm:$0xff]
      %v3092 = vld [vmem:[%s580 + $0xf1] sm:$0xff]
      %v3093 = vld [vmem:[%s580 + $0xf9] sm:$0xff]
      %v3094 = vld [vmem:[%s580 + $0x109] sm:$0xff]
      %v3095 = vld [vmem:[%s580 + $0x111] sm:$0xff]
      %v3096 = vld [vmem:[%s580 + $0x121] sm:$0xff]
      %v3097 = vld [vmem:[%s580 + $0x129] sm:$0xff]
      %v3098 = vld [vmem:[%s580 + $0x139] sm:$0xff]
      %v3099 = vld [vmem:[%s580 + $0x141] sm:$0xff]
      %v3100 = vld [vmem:[%s580 + $0x151] sm:$0xff]
      %v3101 = vld [vmem:[%s580 + $0x159] sm:$0xff]
      %v3102 = vld [vmem:[%s580 + $0x169] sm:$0xff]
      %v3103 = vld [vmem:[%s580 + $0x171] sm:$0xff]
      %v3104 = vld [vmem:[%s580 + $0x2] sm:$0xff]
      %v3105 = vld [vmem:[%s580 + $0xa] sm:$0xff]
      %v3106 = vld [vmem:[%s580 + $0x1a] sm:$0xff]
      %v3107 = vld [vmem:[%s580 + $0x22] sm:$0xff]
      %v3108 = vld [vmem:[%s580 + $0x32] sm:$0xff]
      %v3109 = vld [vmem:[%s580 + $0x3a] sm:$0xff]
      %v3110 = vld [vmem:[%s580 + $0x4a] sm:$0xff]
      %v3111 = vld [vmem:[%s580 + $0x52] sm:$0xff]
      %v3112 = vld [vmem:[%s580 + $0x62] sm:$0xff]
      %v3113 = vld [vmem:[%s580 + $0x6a] sm:$0xff]
      %v3114 = vld [vmem:[%s580 + $0x7a] sm:$0xff]
      %v3115 = vld [vmem:[%s580 + $0x82] sm:$0xff]
      %v3116 = vld [vmem:[%s580 + $0x92] sm:$0xff]
      %v3117 = vld [vmem:[%s580 + $0x9a] sm:$0xff]
      %v3118 = vld [vmem:[%s580 + $0xaa] sm:$0xff]
      %v3119 = vld [vmem:[%s580 + $0xb2] sm:$0xff]
      %v3120 = vld [vmem:[%s580 + $0xc2] sm:$0xff]
      %v3121 = vld [vmem:[%s580 + $0xca] sm:$0xff]
      %v3122 = vld [vmem:[%s580 + $0xda] sm:$0xff]
      %v3123 = vld [vmem:[%s580 + $0xe2] sm:$0xff]
      %v3124 = vld [vmem:[%s580 + $0xf2] sm:$0xff]
      %v3125 = vld [vmem:[%s580 + $0xfa] sm:$0xff]
      %v3126 = vld [vmem:[%s580 + $0x10a] sm:$0xff]
      %v3127 = vld [vmem:[%s580 + $0x112] sm:$0xff]
      %v3128 = vld [vmem:[%s580 + $0x122] sm:$0xff]
      %v3129 = vld [vmem:[%s580 + $0x12a] sm:$0xff]
      %v3130 = vld [vmem:[%s580 + $0x13a] sm:$0xff]
      %v3131 = vld [vmem:[%s580 + $0x142] sm:$0xff]
      %v3132 = vld [vmem:[%s580 + $0x152] sm:$0xff]
      %v3133 = vld [vmem:[%s580 + $0x15a] sm:$0xff]
      %v3134 = vld [vmem:[%s580 + $0x16a] sm:$0xff]
      %v3135 = vld [vmem:[%s580 + $0x172] sm:$0xff]
      %v3136 = vld [vmem:[%s677] sm:$0xff]
      %v3137 = vld [vmem:[%s677 + $0x8] sm:$0xff]
      %v3138 = vld [vmem:[%s677 + $0x18] sm:$0xff]
      %v3139 = vld [vmem:[%s677 + $0x20] sm:$0xff]
      %v3140 = vld [vmem:[%s677 + $0x30] sm:$0xff]
      %v3141 = vld [vmem:[%s677 + $0x38] sm:$0xff]
      %v3142 = vld [vmem:[%s677 + $0x48] sm:$0xff]
      %v3143 = vld [vmem:[%s677 + $0x50] sm:$0xff]
      %v3144 = vld [vmem:[%s677 + $0x60] sm:$0xff]
      %v3145 = vld [vmem:[%s677 + $0x68] sm:$0xff]
      %v3146 = vld [vmem:[%s677 + $0x78] sm:$0xff]
      %v3147 = vld [vmem:[%s677 + $0x80] sm:$0xff]
      %v3148 = vld [vmem:[%s677 + $0x90] sm:$0xff]
      %v3149 = vld [vmem:[%s677 + $0x98] sm:$0xff]
      %v3150 = vld [vmem:[%s677 + $0xa8] sm:$0xff]
      %v3151 = vld [vmem:[%s677 + $0xb0] sm:$0xff]
      %v3152 = vld [vmem:[%s677 + $0xc0] sm:$0xff]
      %v3153 = vld [vmem:[%s677 + $0xc8] sm:$0xff]
      %v3154 = vld [vmem:[%s677 + $0xd8] sm:$0xff]
      %v3155 = vld [vmem:[%s677 + $0xe0] sm:$0xff]
      %v3156 = vld [vmem:[%s677 + $0xf0] sm:$0xff]
      %v3157 = vld [vmem:[%s677 + $0xf8] sm:$0xff]
      %v3158 = vld [vmem:[%s677 + $0x108] sm:$0xff]
      %v3159 = vld [vmem:[%s677 + $0x110] sm:$0xff]
      %v3160 = vld [vmem:[%s677 + $0x120] sm:$0xff]
      %v3161 = vld [vmem:[%s677 + $0x128] sm:$0xff]
      %v3162 = vld [vmem:[%s677 + $0x138] sm:$0xff]
      %v3163 = vld [vmem:[%s677 + $0x140] sm:$0xff]
      %v3164 = vld [vmem:[%s677 + $0x150] sm:$0xff]
      %v3165 = vld [vmem:[%s677 + $0x158] sm:$0xff]
      %v3166 = vld [vmem:[%s677 + $0x168] sm:$0xff]
      %v3167 = vld [vmem:[%s677 + $0x170] sm:$0xff]
      %v3168 = vld [vmem:[%s677 + $0x1] sm:$0xff]
      %v3169 = vld [vmem:[%s677 + $0x9] sm:$0xff]
      %v3170 = vld [vmem:[%s677 + $0x19] sm:$0xff]
      %v3171 = vld [vmem:[%s677 + $0x21] sm:$0xff]
      %v3172 = vld [vmem:[%s677 + $0x31] sm:$0xff]
      %v3173 = vld [vmem:[%s677 + $0x39] sm:$0xff]
      %v3174 = vld [vmem:[%s677 + $0x49] sm:$0xff]
      %v3175 = vld [vmem:[%s677 + $0x51] sm:$0xff]
      %v3176 = vld [vmem:[%s677 + $0x61] sm:$0xff]
      %v3177 = vld [vmem:[%s677 + $0x69] sm:$0xff]
      %v3178 = vld [vmem:[%s677 + $0x79] sm:$0xff]
      %v3179 = vld [vmem:[%s677 + $0x81] sm:$0xff]
      %v3180 = vld [vmem:[%s677 + $0x91] sm:$0xff]
      %v3181 = vld [vmem:[%s677 + $0x99] sm:$0xff]
      %v3182 = vld [vmem:[%s677 + $0xa9] sm:$0xff]
      %v3183 = vld [vmem:[%s677 + $0xb1] sm:$0xff]
      %v3184 = vld [vmem:[%s677 + $0xc1] sm:$0xff]
      %v3185 = vld [vmem:[%s677 + $0xc9] sm:$0xff]
      %v3186 = vld [vmem:[%s677 + $0xd9] sm:$0xff]
      %v3187 = vld [vmem:[%s677 + $0xe1] sm:$0xff]
      %v3188 = vld [vmem:[%s677 + $0xf1] sm:$0xff]
      %v3189 = vld [vmem:[%s677 + $0xf9] sm:$0xff]
      %v3190 = vld [vmem:[%s677 + $0x109] sm:$0xff]
      %v3191 = vld [vmem:[%s677 + $0x111] sm:$0xff]
      %v3192 = vld [vmem:[%s677 + $0x121] sm:$0xff]
      %v3193 = vld [vmem:[%s677 + $0x129] sm:$0xff]
      %v3194 = vld [vmem:[%s677 + $0x139] sm:$0xff]
      %v3195 = vld [vmem:[%s677 + $0x141] sm:$0xff]
      %v3196 = vld [vmem:[%s677 + $0x151] sm:$0xff]
      %v3197 = vld [vmem:[%s677 + $0x159] sm:$0xff]
      %v3198 = vld [vmem:[%s677 + $0x169] sm:$0xff]
      %v3199 = vld [vmem:[%s677 + $0x171] sm:$0xff]
      %v3200 = vld [vmem:[%s677 + $0x2] sm:$0xff]
      %v3201 = vld [vmem:[%s677 + $0xa] sm:$0xff]
      %v3202 = vld [vmem:[%s677 + $0x1a] sm:$0xff]
      %v3203 = vld [vmem:[%s677 + $0x22] sm:$0xff]
      %v3204 = vld [vmem:[%s677 + $0x32] sm:$0xff]
      %v3205 = vld [vmem:[%s677 + $0x3a] sm:$0xff]
      %v3206 = vld [vmem:[%s677 + $0x4a] sm:$0xff]
      %v3207 = vld [vmem:[%s677 + $0x52] sm:$0xff]
      %v3208 = vld [vmem:[%s677 + $0x62] sm:$0xff]
      %v3209 = vld [vmem:[%s677 + $0x6a] sm:$0xff]
      %v3210 = vld [vmem:[%s677 + $0x7a] sm:$0xff]
      %v3211 = vld [vmem:[%s677 + $0x82] sm:$0xff]
      %v3212 = vld [vmem:[%s677 + $0x92] sm:$0xff]
      %v3213 = vld [vmem:[%s677 + $0x9a] sm:$0xff]
      %v3214 = vld [vmem:[%s677 + $0xaa] sm:$0xff]
      %v3215 = vld [vmem:[%s677 + $0xb2] sm:$0xff]
      %v3216 = vld [vmem:[%s677 + $0xc2] sm:$0xff]
      %v3217 = vld [vmem:[%s677 + $0xca] sm:$0xff]
      %v3218 = vld [vmem:[%s677 + $0xda] sm:$0xff]
      %v3219 = vld [vmem:[%s677 + $0xe2] sm:$0xff]
      %v3220 = vld [vmem:[%s677 + $0xf2] sm:$0xff]
      %v3221 = vld [vmem:[%s677 + $0xfa] sm:$0xff]
      %v3222 = vld [vmem:[%s677 + $0x10a] sm:$0xff]
      %v3223 = vld [vmem:[%s677 + $0x112] sm:$0xff]
      %v3224 = vld [vmem:[%s677 + $0x122] sm:$0xff]
      %v3225 = vld [vmem:[%s677 + $0x12a] sm:$0xff]
      %v3226 = vld [vmem:[%s677 + $0x13a] sm:$0xff]
      %v3227 = vld [vmem:[%s677 + $0x142] sm:$0xff]
      %v3228 = vld [vmem:[%s677 + $0x152] sm:$0xff]
      %v3229 = vld [vmem:[%s677 + $0x15a] sm:$0xff]
      %v3230 = vld [vmem:[%s677 + $0x16a] sm:$0xff]
      %v3231 = vld [vmem:[%s677 + $0x172] sm:$0xff]
      %3264 = vrot.lane.b32.xlu0 %v2976, 4
      %v3265 = vpop.permute.xlu0 %3264
      %3266 = vrot.lane.b32.xlu0 %v2977, 4
      %v3267 = vpop.permute.xlu0 %3266
      %3268 = vrot.lane.b32.xlu0 %v2978, 4
      %v3269 = vpop.permute.xlu0 %3268
      %3270 = vrot.lane.b32.xlu0 %v2979, 4
      %v3271 = vpop.permute.xlu0 %3270
      %3272 = vrot.lane.b32.xlu0 %v2980, 4
      %v3273 = vpop.permute.xlu0 %3272
      %3274 = vrot.lane.b32.xlu0 %v2981, 4
      %v3275 = vpop.permute.xlu0 %3274
      %3276 = vrot.lane.b32.xlu0 %v2982, 4
      %v3277 = vpop.permute.xlu0 %3276
      %3278 = vrot.lane.b32.xlu0 %v2983, 4
      %v3279 = vpop.permute.xlu0 %3278
      %3280 = vrot.lane.b32.xlu0 %v2984, 4
      %v3281 = vpop.permute.xlu0 %3280
      %3282 = vrot.lane.b32.xlu0 %v2985, 4
      %v3283 = vpop.permute.xlu0 %3282
      %3284 = vrot.lane.b32.xlu0 %v2986, 4
      %v3285 = vpop.permute.xlu0 %3284
      %3286 = vrot.lane.b32.xlu0 %v2987, 4
      %v3287 = vpop.permute.xlu0 %3286
      %3288 = vrot.lane.b32.xlu0 %v2988, 4
      %v3289 = vpop.permute.xlu0 %3288
      %3290 = vrot.lane.b32.xlu0 %v2989, 4
      %v3291 = vpop.permute.xlu0 %3290
      %3292 = vrot.lane.b32.xlu0 %v2990, 4
      %v3293 = vpop.permute.xlu0 %3292
      %3294 = vrot.lane.b32.xlu0 %v2991, 4
      %v3295 = vpop.permute.xlu0 %3294
      %3296 = vrot.lane.b32.xlu0 %v2992, 4
      %v3297 = vpop.permute.xlu0 %3296
      %3298 = vrot.lane.b32.xlu0 %v2993, 4
      %v3299 = vpop.permute.xlu0 %3298
      %3300 = vrot.lane.b32.xlu0 %v2994, 4
      %v3301 = vpop.permute.xlu0 %3300
      %3302 = vrot.lane.b32.xlu0 %v2995, 4
      %v3303 = vpop.permute.xlu0 %3302
      %3304 = vrot.lane.b32.xlu0 %v2996, 4
      %v3305 = vpop.permute.xlu0 %3304
      %3306 = vrot.lane.b32.xlu0 %v2997, 4
      %v3307 = vpop.permute.xlu0 %3306
      %3308 = vrot.lane.b32.xlu0 %v2998, 4
      %v3309 = vpop.permute.xlu0 %3308
      %3310 = vrot.lane.b32.xlu0 %v2999, 4
      %v3311 = vpop.permute.xlu0 %3310
      %3312 = vrot.lane.b32.xlu0 %v3000, 4
      %v3313 = vpop.permute.xlu0 %3312
      %3314 = vrot.lane.b32.xlu0 %v3001, 4
      %v3315 = vpop.permute.xlu0 %3314
      %3316 = vrot.lane.b32.xlu0 %v3002, 4
      %v3317 = vpop.permute.xlu0 %3316
      %3318 = vrot.lane.b32.xlu0 %v3003, 4
      %v3319 = vpop.permute.xlu0 %3318
      %3320 = vrot.lane.b32.xlu0 %v3004, 4
      %v3321 = vpop.permute.xlu0 %3320
      %3322 = vrot.lane.b32.xlu0 %v3005, 4
      %v3323 = vpop.permute.xlu0 %3322
      %3324 = vrot.lane.b32.xlu0 %v3006, 4
      %v3325 = vpop.permute.xlu0 %3324
      %3326 = vrot.lane.b32.xlu0 %v3007, 4
      %v3327 = vpop.permute.xlu0 %3326
      %3392 = vrot.lane.b32.xlu0 %v3008, 8
      %v3393 = vpop.permute.xlu0 %3392
      %3394 = vrot.lane.b32.xlu0 %v3009, 8
      %v3395 = vpop.permute.xlu0 %3394
      %3396 = vrot.lane.b32.xlu0 %v3010, 8
      %v3397 = vpop.permute.xlu0 %3396
      %3398 = vrot.lane.b32.xlu0 %v3011, 8
      %v3399 = vpop.permute.xlu0 %3398
      %3400 = vrot.lane.b32.xlu0 %v3012, 8
      %v3401 = vpop.permute.xlu0 %3400
      %3402 = vrot.lane.b32.xlu0 %v3013, 8
      %v3403 = vpop.permute.xlu0 %3402
      %3404 = vrot.lane.b32.xlu0 %v3014, 8
      %v3405 = vpop.permute.xlu0 %3404
      %3406 = vrot.lane.b32.xlu0 %v3015, 8
      %v3407 = vpop.permute.xlu0 %3406
      %3408 = vrot.lane.b32.xlu0 %v3016, 8
      %v3409 = vpop.permute.xlu0 %3408
      %3410 = vrot.lane.b32.xlu0 %v3017, 8
      %v3411 = vpop.permute.xlu0 %3410
      %3412 = vrot.lane.b32.xlu0 %v3018, 8
      %v3413 = vpop.permute.xlu0 %3412
      %3414 = vrot.lane.b32.xlu0 %v3019, 8
      %v3415 = vpop.permute.xlu0 %3414
      %3416 = vrot.lane.b32.xlu0 %v3020, 8
      %v3417 = vpop.permute.xlu0 %3416
      %3418 = vrot.lane.b32.xlu0 %v3021, 8
      %v3419 = vpop.permute.xlu0 %3418
      %3420 = vrot.lane.b32.xlu0 %v3022, 8
      %v3421 = vpop.permute.xlu0 %3420
      %3422 = vrot.lane.b32.xlu0 %v3023, 8
      %v3423 = vpop.permute.xlu0 %3422
      %3424 = vrot.lane.b32.xlu0 %v3024, 8
      %v3425 = vpop.permute.xlu0 %3424
      %3426 = vrot.lane.b32.xlu0 %v3025, 8
      %v3427 = vpop.permute.xlu0 %3426
      %3428 = vrot.lane.b32.xlu0 %v3026, 8
      %v3429 = vpop.permute.xlu0 %3428
      %3430 = vrot.lane.b32.xlu0 %v3027, 8
      %v3431 = vpop.permute.xlu0 %3430
      %3432 = vrot.lane.b32.xlu0 %v3028, 8
      %v3433 = vpop.permute.xlu0 %3432
      %3434 = vrot.lane.b32.xlu0 %v3029, 8
      %v3435 = vpop.permute.xlu0 %3434
      %3436 = vrot.lane.b32.xlu0 %v3030, 8
      %v3437 = vpop.permute.xlu0 %3436
      %3438 = vrot.lane.b32.xlu0 %v3031, 8
      %v3439 = vpop.permute.xlu0 %3438
      %3440 = vrot.lane.b32.xlu0 %v3032, 8
      %v3441 = vpop.permute.xlu0 %3440
      %3442 = vrot.lane.b32.xlu0 %v3033, 8
      %v3443 = vpop.permute.xlu0 %3442
      %3444 = vrot.lane.b32.xlu0 %v3034, 8
      %v3445 = vpop.permute.xlu0 %3444
      %3446 = vrot.lane.b32.xlu0 %v3035, 8
      %v3447 = vpop.permute.xlu0 %3446
      %3448 = vrot.lane.b32.xlu0 %v3036, 8
      %v3449 = vpop.permute.xlu0 %3448
      %3450 = vrot.lane.b32.xlu0 %v3037, 8
      %v3451 = vpop.permute.xlu0 %3450
      %3452 = vrot.lane.b32.xlu0 %v3038, 8
      %v3453 = vpop.permute.xlu0 %3452
      %3454 = vrot.lane.b32.xlu0 %v3039, 8
      %v3455 = vpop.permute.xlu0 %3454
      %3520 = vrot.lane.b32.xlu0 %v3040, 12
      %v3521 = vpop.permute.xlu0 %3520
      %3522 = vrot.lane.b32.xlu0 %v3041, 12
      %v3523 = vpop.permute.xlu0 %3522
      %3524 = vrot.lane.b32.xlu0 %v3042, 12
      %v3525 = vpop.permute.xlu0 %3524
      %3526 = vrot.lane.b32.xlu0 %v3043, 12
      %v3527 = vpop.permute.xlu0 %3526
      %3528 = vrot.lane.b32.xlu0 %v3044, 12
      %v3529 = vpop.permute.xlu0 %3528
      %3530 = vrot.lane.b32.xlu0 %v3045, 12
      %v3531 = vpop.permute.xlu0 %3530
      %3532 = vrot.lane.b32.xlu0 %v3046, 12
      %v3533 = vpop.permute.xlu0 %3532
      %3534 = vrot.lane.b32.xlu0 %v3047, 12
      %v3535 = vpop.permute.xlu0 %3534
      %3536 = vrot.lane.b32.xlu0 %v3048, 12
      %v3537 = vpop.permute.xlu0 %3536
      %3538 = vrot.lane.b32.xlu0 %v3049, 12
      %v3539 = vpop.permute.xlu0 %3538
      %3540 = vrot.lane.b32.xlu0 %v3050, 12
      %v3541 = vpop.permute.xlu0 %3540
      %3542 = vrot.lane.b32.xlu0 %v3051, 12
      %v3543 = vpop.permute.xlu0 %3542
      %3544 = vrot.lane.b32.xlu0 %v3052, 12
      %v3545 = vpop.permute.xlu0 %3544
      %3546 = vrot.lane.b32.xlu0 %v3053, 12
      %v3547 = vpop.permute.xlu0 %3546
      %3548 = vrot.lane.b32.xlu0 %v3054, 12
      %v3549 = vpop.permute.xlu0 %3548
      %3550 = vrot.lane.b32.xlu0 %v3055, 12
      %v3551 = vpop.permute.xlu0 %3550
      %3552 = vrot.lane.b32.xlu0 %v3056, 12
      %v3553 = vpop.permute.xlu0 %3552
      %3554 = vrot.lane.b32.xlu0 %v3057, 12
      %v3555 = vpop.permute.xlu0 %3554
      %3556 = vrot.lane.b32.xlu0 %v3058, 12
      %v3557 = vpop.permute.xlu0 %3556
      %3558 = vrot.lane.b32.xlu0 %v3059, 12
      %v3559 = vpop.permute.xlu0 %3558
      %3560 = vrot.lane.b32.xlu0 %v3060, 12
      %v3561 = vpop.permute.xlu0 %3560
      %3562 = vrot.lane.b32.xlu0 %v3061, 12
      %v3563 = vpop.permute.xlu0 %3562
      %3564 = vrot.lane.b32.xlu0 %v3062, 12
      %v3565 = vpop.permute.xlu0 %3564
      %3566 = vrot.lane.b32.xlu0 %v3063, 12
      %v3567 = vpop.permute.xlu0 %3566
      %3568 = vrot.lane.b32.xlu0 %v3064, 12
      %v3569 = vpop.permute.xlu0 %3568
      %3570 = vrot.lane.b32.xlu0 %v3065, 12
      %v3571 = vpop.permute.xlu0 %3570
      %3572 = vrot.lane.b32.xlu0 %v3066, 12
      %v3573 = vpop.permute.xlu0 %3572
      %3574 = vrot.lane.b32.xlu0 %v3067, 12
      %v3575 = vpop.permute.xlu0 %3574
      %3576 = vrot.lane.b32.xlu0 %v3068, 12
      %v3577 = vpop.permute.xlu0 %3576
      %3578 = vrot.lane.b32.xlu0 %v3069, 12
      %v3579 = vpop.permute.xlu0 %3578
      %3580 = vrot.lane.b32.xlu0 %v3070, 12
      %v3581 = vpop.permute.xlu0 %3580
      %3582 = vrot.lane.b32.xlu0 %v3071, 12
      %v3583 = vpop.permute.xlu0 %3582
      %3648 = vrot.lane.b32.xlu0 %v3072, 16
      %v3649 = vpop.permute.xlu0 %3648
      %3650 = vrot.lane.b32.xlu0 %v3073, 16
      %v3651 = vpop.permute.xlu0 %3650
      %3652 = vrot.lane.b32.xlu0 %v3074, 16
      %v3653 = vpop.permute.xlu0 %3652
      %3654 = vrot.lane.b32.xlu0 %v3075, 16
      %v3655 = vpop.permute.xlu0 %3654
      %3656 = vrot.lane.b32.xlu0 %v3076, 16
      %v3657 = vpop.permute.xlu0 %3656
      %3658 = vrot.lane.b32.xlu0 %v3077, 16
      %v3659 = vpop.permute.xlu0 %3658
      %3660 = vrot.lane.b32.xlu0 %v3078, 16
      %v3661 = vpop.permute.xlu0 %3660
      %3662 = vrot.lane.b32.xlu0 %v3079, 16
      %v3663 = vpop.permute.xlu0 %3662
      %3664 = vrot.lane.b32.xlu0 %v3080, 16
      %v3665 = vpop.permute.xlu0 %3664
      %3666 = vrot.lane.b32.xlu0 %v3081, 16
      %v3667 = vpop.permute.xlu0 %3666
      %3668 = vrot.lane.b32.xlu0 %v3082, 16
      %v3669 = vpop.permute.xlu0 %3668
      %3670 = vrot.lane.b32.xlu0 %v3083, 16
      %v3671 = vpop.permute.xlu0 %3670
      %3672 = vrot.lane.b32.xlu0 %v3084, 16
      %v3673 = vpop.permute.xlu0 %3672
      %3674 = vrot.lane.b32.xlu0 %v3085, 16
      %v3675 = vpop.permute.xlu0 %3674
      %3676 = vrot.lane.b32.xlu0 %v3086, 16
      %v3677 = vpop.permute.xlu0 %3676
      %3678 = vrot.lane.b32.xlu0 %v3087, 16
      %v3679 = vpop.permute.xlu0 %3678
      %3680 = vrot.lane.b32.xlu0 %v3088, 16
      %v3681 = vpop.permute.xlu0 %3680
      %3682 = vrot.lane.b32.xlu0 %v3089, 16
      %v3683 = vpop.permute.xlu0 %3682
      %3684 = vrot.lane.b32.xlu0 %v3090, 16
      %v3685 = vpop.permute.xlu0 %3684
      %3686 = vrot.lane.b32.xlu0 %v3091, 16
      %v3687 = vpop.permute.xlu0 %3686
      %3688 = vrot.lane.b32.xlu0 %v3092, 16
      %v3689 = vpop.permute.xlu0 %3688
      %3690 = vrot.lane.b32.xlu0 %v3093, 16
      %v3691 = vpop.permute.xlu0 %3690
      %3692 = vrot.lane.b32.xlu0 %v3094, 16
      %v3693 = vpop.permute.xlu0 %3692
      %3694 = vrot.lane.b32.xlu0 %v3095, 16
      %v3695 = vpop.permute.xlu0 %3694
      %3696 = vrot.lane.b32.xlu0 %v3096, 16
      %v3697 = vpop.permute.xlu0 %3696
      %3698 = vrot.lane.b32.xlu0 %v3097, 16
      %v3699 = vpop.permute.xlu0 %3698
      %3700 = vrot.lane.b32.xlu0 %v3098, 16
      %v3701 = vpop.permute.xlu0 %3700
      %3702 = vrot.lane.b32.xlu0 %v3099, 16
      %v3703 = vpop.permute.xlu0 %3702
      %3704 = vrot.lane.b32.xlu0 %v3100, 16
      %v3705 = vpop.permute.xlu0 %3704
      %3706 = vrot.lane.b32.xlu0 %v3101, 16
      %v3707 = vpop.permute.xlu0 %3706
      %3708 = vrot.lane.b32.xlu0 %v3102, 16
      %v3709 = vpop.permute.xlu0 %3708
      %3710 = vrot.lane.b32.xlu0 %v3103, 16
      %v3711 = vpop.permute.xlu0 %3710
      %3776 = vrot.lane.b32.xlu0 %v3104, 20
      %v3777 = vpop.permute.xlu0 %3776
      %3778 = vrot.lane.b32.xlu0 %v3105, 20
      %v3779 = vpop.permute.xlu0 %3778
      %3780 = vrot.lane.b32.xlu0 %v3106, 20
      %v3781 = vpop.permute.xlu0 %3780
      %3782 = vrot.lane.b32.xlu0 %v3107, 20
      %v3783 = vpop.permute.xlu0 %3782
      %3784 = vrot.lane.b32.xlu0 %v3108, 20
      %v3785 = vpop.permute.xlu0 %3784
      %3786 = vrot.lane.b32.xlu0 %v3109, 20
      %v3787 = vpop.permute.xlu0 %3786
      %3788 = vrot.lane.b32.xlu0 %v3110, 20
      %v3789 = vpop.permute.xlu0 %3788
      %3790 = vrot.lane.b32.xlu0 %v3111, 20
      %v3791 = vpop.permute.xlu0 %3790
      %3792 = vrot.lane.b32.xlu0 %v3112, 20
      %v3793 = vpop.permute.xlu0 %3792
      %3794 = vrot.lane.b32.xlu0 %v3113, 20
      %v3795 = vpop.permute.xlu0 %3794
      %3796 = vrot.lane.b32.xlu0 %v3114, 20
      %v3797 = vpop.permute.xlu0 %3796
      %3798 = vrot.lane.b32.xlu0 %v3115, 20
      %v3799 = vpop.permute.xlu0 %3798
      %3800 = vrot.lane.b32.xlu0 %v3116, 20
      %v3801 = vpop.permute.xlu0 %3800
      %3802 = vrot.lane.b32.xlu0 %v3117, 20
      %v3803 = vpop.permute.xlu0 %3802
      %3804 = vrot.lane.b32.xlu0 %v3118, 20
      %v3805 = vpop.permute.xlu0 %3804
      %3806 = vrot.lane.b32.xlu0 %v3119, 20
      %v3807 = vpop.permute.xlu0 %3806
      %3808 = vrot.lane.b32.xlu0 %v3120, 20
      %v3809 = vpop.permute.xlu0 %3808
      %3810 = vrot.lane.b32.xlu0 %v3121, 20
      %v3811 = vpop.permute.xlu0 %3810
      %3812 = vrot.lane.b32.xlu0 %v3122, 20
      %v3813 = vpop.permute.xlu0 %3812
      %3814 = vrot.lane.b32.xlu0 %v3123, 20
      %v3815 = vpop.permute.xlu0 %3814
      %3816 = vrot.lane.b32.xlu0 %v3124, 20
      %v3817 = vpop.permute.xlu0 %3816
      %3818 = vrot.lane.b32.xlu0 %v3125, 20
      %v3819 = vpop.permute.xlu0 %3818
      %3820 = vrot.lane.b32.xlu0 %v3126, 20
      %v3821 = vpop.permute.xlu0 %3820
      %3822 = vrot.lane.b32.xlu0 %v3127, 20
      %v3823 = vpop.permute.xlu0 %3822
      %3824 = vrot.lane.b32.xlu0 %v3128, 20
      %v3825 = vpop.permute.xlu0 %3824
      %3826 = vrot.lane.b32.xlu0 %v3129, 20
      %v3827 = vpop.permute.xlu0 %3826
      %3828 = vrot.lane.b32.xlu0 %v3130, 20
      %v3829 = vpop.permute.xlu0 %3828
      %3830 = vrot.lane.b32.xlu0 %v3131, 20
      %v3831 = vpop.permute.xlu0 %3830
      %3832 = vrot.lane.b32.xlu0 %v3132, 20
      %v3833 = vpop.permute.xlu0 %3832
      %3834 = vrot.lane.b32.xlu0 %v3133, 20
      %v3835 = vpop.permute.xlu0 %3834
      %3836 = vrot.lane.b32.xlu0 %v3134, 20
      %v3837 = vpop.permute.xlu0 %3836
      %3838 = vrot.lane.b32.xlu0 %v3135, 20
      %v3839 = vpop.permute.xlu0 %3838
      %3904 = vrot.lane.b32.xlu0 %v3136, 24
      %v3905 = vpop.permute.xlu0 %3904
      %3906 = vrot.lane.b32.xlu0 %v3137, 24
      %v3907 = vpop.permute.xlu0 %3906
      %3908 = vrot.lane.b32.xlu0 %v3138, 24
      %v3909 = vpop.permute.xlu0 %3908
      %3910 = vrot.lane.b32.xlu0 %v3139, 24
      %v3911 = vpop.permute.xlu0 %3910
      %3912 = vrot.lane.b32.xlu0 %v3140, 24
      %v3913 = vpop.permute.xlu0 %3912
      %3914 = vrot.lane.b32.xlu0 %v3141, 24
      %v3915 = vpop.permute.xlu0 %3914
      %3916 = vrot.lane.b32.xlu0 %v3142, 24
      %v3917 = vpop.permute.xlu0 %3916
      %3918 = vrot.lane.b32.xlu0 %v3143, 24
      %v3919 = vpop.permute.xlu0 %3918
      %3920 = vrot.lane.b32.xlu0 %v3144, 24
      %v3921 = vpop.permute.xlu0 %3920
      %3922 = vrot.lane.b32.xlu0 %v3145, 24
      %v3923 = vpop.permute.xlu0 %3922
      %3924 = vrot.lane.b32.xlu0 %v3146, 24
      %v3925 = vpop.permute.xlu0 %3924
      %3926 = vrot.lane.b32.xlu0 %v3147, 24
      %v3927 = vpop.permute.xlu0 %3926
      %3928 = vrot.lane.b32.xlu0 %v3148, 24
      %v3929 = vpop.permute.xlu0 %3928
      %3930 = vrot.lane.b32.xlu0 %v3149, 24
      %v3931 = vpop.permute.xlu0 %3930
      %3932 = vrot.lane.b32.xlu0 %v3150, 24
      %v3933 = vpop.permute.xlu0 %3932
      %3934 = vrot.lane.b32.xlu0 %v3151, 24
      %v3935 = vpop.permute.xlu0 %3934
      %3936 = vrot.lane.b32.xlu0 %v3152, 24
      %v3937 = vpop.permute.xlu0 %3936
      %3938 = vrot.lane.b32.xlu0 %v3153, 24
      %v3939 = vpop.permute.xlu0 %3938
      %3940 = vrot.lane.b32.xlu0 %v3154, 24
      %v3941 = vpop.permute.xlu0 %3940
      %3942 = vrot.lane.b32.xlu0 %v3155, 24
      %v3943 = vpop.permute.xlu0 %3942
      %3944 = vrot.lane.b32.xlu0 %v3156, 24
      %v3945 = vpop.permute.xlu0 %3944
      %3946 = vrot.lane.b32.xlu0 %v3157, 24
      %v3947 = vpop.permute.xlu0 %3946
      %3948 = vrot.lane.b32.xlu0 %v3158, 24
      %v3949 = vpop.permute.xlu0 %3948
      %3950 = vrot.lane.b32.xlu0 %v3159, 24
      %v3951 = vpop.permute.xlu0 %3950
      %3952 = vrot.lane.b32.xlu0 %v3160, 24
      %v3953 = vpop.permute.xlu0 %3952
      %3954 = vrot.lane.b32.xlu0 %v3161, 24
      %v3955 = vpop.permute.xlu0 %3954
      %3956 = vrot.lane.b32.xlu0 %v3162, 24
      %v3957 = vpop.permute.xlu0 %3956
      %3958 = vrot.lane.b32.xlu0 %v3163, 24
      %v3959 = vpop.permute.xlu0 %3958
      %3960 = vrot.lane.b32.xlu0 %v3164, 24
      %v3961 = vpop.permute.xlu0 %3960
      %3962 = vrot.lane.b32.xlu0 %v3165, 24
      %v3963 = vpop.permute.xlu0 %3962
      %3964 = vrot.lane.b32.xlu0 %v3166, 24
      %v3965 = vpop.permute.xlu0 %3964
      %3966 = vrot.lane.b32.xlu0 %v3167, 24
      %v3967 = vpop.permute.xlu0 %3966
      %4032 = vrot.lane.b32.xlu0 %v3168, 28
      %v4033 = vpop.permute.xlu0 %4032
      %4034 = vrot.lane.b32.xlu0 %v3169, 28
      %v4035 = vpop.permute.xlu0 %4034
      %4036 = vrot.lane.b32.xlu0 %v3170, 28
      %v4037 = vpop.permute.xlu0 %4036
      %4038 = vrot.lane.b32.xlu0 %v3171, 28
      %v4039 = vpop.permute.xlu0 %4038
      %4040 = vrot.lane.b32.xlu0 %v3172, 28
      %v4041 = vpop.permute.xlu0 %4040
      %4042 = vrot.lane.b32.xlu0 %v3173, 28
      %v4043 = vpop.permute.xlu0 %4042
      %4044 = vrot.lane.b32.xlu0 %v3174, 28
      %v4045 = vpop.permute.xlu0 %4044
      %4046 = vrot.lane.b32.xlu0 %v3175, 28
      %v4047 = vpop.permute.xlu0 %4046
      %4048 = vrot.lane.b32.xlu0 %v3176, 28
      %v4049 = vpop.permute.xlu0 %4048
      %4050 = vrot.lane.b32.xlu0 %v3177, 28
      %v4051 = vpop.permute.xlu0 %4050
      %4052 = vrot.lane.b32.xlu0 %v3178, 28
      %v4053 = vpop.permute.xlu0 %4052
      %4054 = vrot.lane.b32.xlu0 %v3179, 28
      %v4055 = vpop.permute.xlu0 %4054
      %4056 = vrot.lane.b32.xlu0 %v3180, 28
      %v4057 = vpop.permute.xlu0 %4056
      %4058 = vrot.lane.b32.xlu0 %v3181, 28
      %v4059 = vpop.permute.xlu0 %4058
      %4060 = vrot.lane.b32.xlu0 %v3182, 28
      %v4061 = vpop.permute.xlu0 %4060
      %4062 = vrot.lane.b32.xlu0 %v3183, 28
      %v4063 = vpop.permute.xlu0 %4062
      %4064 = vrot.lane.b32.xlu0 %v3184, 28
      %v4065 = vpop.permute.xlu0 %4064
      %4066 = vrot.lane.b32.xlu0 %v3185, 28
      %v4067 = vpop.permute.xlu0 %4066
      %4068 = vrot.lane.b32.xlu0 %v3186, 28
      %v4069 = vpop.permute.xlu0 %4068
      %4070 = vrot.lane.b32.xlu0 %v3187, 28
      %v4071 = vpop.permute.xlu0 %4070
      %4072 = vrot.lane.b32.xlu0 %v3188, 28
      %v4073 = vpop.permute.xlu0 %4072
      %4074 = vrot.lane.b32.xlu0 %v3189, 28
      %v4075 = vpop.permute.xlu0 %4074
      %4076 = vrot.lane.b32.xlu0 %v3190, 28
      %v4077 = vpop.permute.xlu0 %4076
      %4078 = vrot.lane.b32.xlu0 %v3191, 28
      %v4079 = vpop.permute.xlu0 %4078
      %4080 = vrot.lane.b32.xlu0 %v3192, 28
      %v4081 = vpop.permute.xlu0 %4080
      %4082 = vrot.lane.b32.xlu0 %v3193, 28
      %v4083 = vpop.permute.xlu0 %4082
      %4084 = vrot.lane.b32.xlu0 %v3194, 28
      %v4085 = vpop.permute.xlu0 %4084
      %4086 = vrot.lane.b32.xlu0 %v3195, 28
      %v4087 = vpop.permute.xlu0 %4086
      %4088 = vrot.lane.b32.xlu0 %v3196, 28
      %v4089 = vpop.permute.xlu0 %4088
      %4090 = vrot.lane.b32.xlu0 %v3197, 28
      %v4091 = vpop.permute.xlu0 %4090
      %4092 = vrot.lane.b32.xlu0 %v3198, 28
      %v4093 = vpop.permute.xlu0 %4092
      %4094 = vrot.lane.b32.xlu0 %v3199, 28
      %v4095 = vpop.permute.xlu0 %4094
      %4160 = vrot.lane.b32.xlu0 %v3200, 32
      %v4161 = vpop.permute.xlu0 %4160
      %4162 = vrot.lane.b32.xlu0 %v3201, 32
      %v4163 = vpop.permute.xlu0 %4162
      %4164 = vrot.lane.b32.xlu0 %v3202, 32
      %v4165 = vpop.permute.xlu0 %4164
      %4166 = vrot.lane.b32.xlu0 %v3203, 32
      %v4167 = vpop.permute.xlu0 %4166
      %4168 = vrot.lane.b32.xlu0 %v3204, 32
      %v4169 = vpop.permute.xlu0 %4168
      %4170 = vrot.lane.b32.xlu0 %v3205, 32
      %v4171 = vpop.permute.xlu0 %4170
      %4172 = vrot.lane.b32.xlu0 %v3206, 32
      %v4173 = vpop.permute.xlu0 %4172
      %4174 = vrot.lane.b32.xlu0 %v3207, 32
      %v4175 = vpop.permute.xlu0 %4174
      %4176 = vrot.lane.b32.xlu0 %v3208, 32
      %v4177 = vpop.permute.xlu0 %4176
      %4178 = vrot.lane.b32.xlu0 %v3209, 32
      %v4179 = vpop.permute.xlu0 %4178
      %4180 = vrot.lane.b32.xlu0 %v3210, 32
      %v4181 = vpop.permute.xlu0 %4180
      %4182 = vrot.lane.b32.xlu0 %v3211, 32
      %v4183 = vpop.permute.xlu0 %4182
      %4184 = vrot.lane.b32.xlu0 %v3212, 32
      %v4185 = vpop.permute.xlu0 %4184
      %4186 = vrot.lane.b32.xlu0 %v3213, 32
      %v4187 = vpop.permute.xlu0 %4186
      %4188 = vrot.lane.b32.xlu0 %v3214, 32
      %v4189 = vpop.permute.xlu0 %4188
      %4190 = vrot.lane.b32.xlu0 %v3215, 32
      %v4191 = vpop.permute.xlu0 %4190
      %4192 = vrot.lane.b32.xlu0 %v3216, 32
      %v4193 = vpop.permute.xlu0 %4192
      %4194 = vrot.lane.b32.xlu0 %v3217, 32
      %v4195 = vpop.permute.xlu0 %4194
      %4196 = vrot.lane.b32.xlu0 %v3218, 32
      %v4197 = vpop.permute.xlu0 %4196
      %4198 = vrot.lane.b32.xlu0 %v3219, 32
      %v4199 = vpop.permute.xlu0 %4198
      %4200 = vrot.lane.b32.xlu0 %v3220, 32
      %v4201 = vpop.permute.xlu0 %4200
      %4202 = vrot.lane.b32.xlu0 %v3221, 32
      %v4203 = vpop.permute.xlu0 %4202
      %4204 = vrot.lane.b32.xlu0 %v3222, 32
      %v4205 = vpop.permute.xlu0 %4204
      %4206 = vrot.lane.b32.xlu0 %v3223, 32
      %v4207 = vpop.permute.xlu0 %4206
      %4208 = vrot.lane.b32.xlu0 %v3224, 32
      %v4209 = vpop.permute.xlu0 %4208
      %4210 = vrot.lane.b32.xlu0 %v3225, 32
      %v4211 = vpop.permute.xlu0 %4210
      %4212 = vrot.lane.b32.xlu0 %v3226, 32
      %v4213 = vpop.permute.xlu0 %4212
      %4214 = vrot.lane.b32.xlu0 %v3227, 32
      %v4215 = vpop.permute.xlu0 %4214
      %4216 = vrot.lane.b32.xlu0 %v3228, 32
      %v4217 = vpop.permute.xlu0 %4216
      %4218 = vrot.lane.b32.xlu0 %v3229, 32
      %v4219 = vpop.permute.xlu0 %4218
      %4220 = vrot.lane.b32.xlu0 %v3230, 32
      %v4221 = vpop.permute.xlu0 %4220
      %4222 = vrot.lane.b32.xlu0 %v3231, 32
      %v4223 = vpop.permute.xlu0 %4222
      %v4256 = vsel %vm428, %v2944, %v3265
      %v4257 = vsel %vm428, %v2945, %v3267
      %v4258 = vsel %vm428, %v2946, %v3269
      %v4259 = vsel %vm428, %v2947, %v3271
      %v4260 = vsel %vm428, %v2948, %v3273
      %v4261 = vsel %vm428, %v2949, %v3275
      %v4262 = vsel %vm428, %v2950, %v3277
      %v4263 = vsel %vm428, %v2951, %v3279
      %v4264 = vsel %vm428, %v2952, %v3281
      %v4265 = vsel %vm428, %v2953, %v3283
      %v4266 = vsel %vm428, %v2954, %v3285
      %v4267 = vsel %vm428, %v2955, %v3287
      %v4268 = vsel %vm428, %v2956, %v3289
      %v4269 = vsel %vm428, %v2957, %v3291
      %v4270 = vsel %vm428, %v2958, %v3293
      %v4271 = vsel %vm428, %v2959, %v3295
      %v4272 = vsel %vm428, %v2960, %v3297
      %v4273 = vsel %vm428, %v2961, %v3299
      %v4274 = vsel %vm428, %v2962, %v3301
      %v4275 = vsel %vm428, %v2963, %v3303
      %v4276 = vsel %vm428, %v2964, %v3305
      %v4277 = vsel %vm428, %v2965, %v3307
      %v4278 = vsel %vm428, %v2966, %v3309
      %v4279 = vsel %vm428, %v2967, %v3311
      %v4280 = vsel %vm428, %v2968, %v3313
      %v4281 = vsel %vm428, %v2969, %v3315
      %v4282 = vsel %vm428, %v2970, %v3317
      %v4283 = vsel %vm428, %v2971, %v3319
      %v4284 = vsel %vm428, %v2972, %v3321
      %v4285 = vsel %vm428, %v2973, %v3323
      %v4286 = vsel %vm428, %v2974, %v3325
      %v4287 = vsel %vm428, %v2975, %v3327
      %v4288 = vsel %vm1830, %v4256, %v3393
      %v4289 = vsel %vm1830, %v4257, %v3395
      %v4290 = vsel %vm1830, %v4258, %v3397
      %v4291 = vsel %vm1830, %v4259, %v3399
      %v4292 = vsel %vm1830, %v4260, %v3401
      %v4293 = vsel %vm1830, %v4261, %v3403
      %v4294 = vsel %vm1830, %v4262, %v3405
      %v4295 = vsel %vm1830, %v4263, %v3407
      %v4296 = vsel %vm1830, %v4264, %v3409
      %v4297 = vsel %vm1830, %v4265, %v3411
      %v4298 = vsel %vm1830, %v4266, %v3413
      %v4299 = vsel %vm1830, %v4267, %v3415
      %v4300 = vsel %vm1830, %v4268, %v3417
      %v4301 = vsel %vm1830, %v4269, %v3419
      %v4302 = vsel %vm1830, %v4270, %v3421
      %v4303 = vsel %vm1830, %v4271, %v3423
      %v4304 = vsel %vm1830, %v4272, %v3425
      %v4305 = vsel %vm1830, %v4273, %v3427
      %v4306 = vsel %vm1830, %v4274, %v3429
      %v4307 = vsel %vm1830, %v4275, %v3431
      %v4308 = vsel %vm1830, %v4276, %v3433
      %v4309 = vsel %vm1830, %v4277, %v3435
      %v4310 = vsel %vm1830, %v4278, %v3437
      %v4311 = vsel %vm1830, %v4279, %v3439
      %v4312 = vsel %vm1830, %v4280, %v3441
      %v4313 = vsel %vm1830, %v4281, %v3443
      %v4314 = vsel %vm1830, %v4282, %v3445
      %v4315 = vsel %vm1830, %v4283, %v3447
      %v4316 = vsel %vm1830, %v4284, %v3449
      %v4317 = vsel %vm1830, %v4285, %v3451
      %v4318 = vsel %vm1830, %v4286, %v3453
      %v4319 = vsel %vm1830, %v4287, %v3455
      %v4320 = vsel %vm1863, %v4288, %v3521
      %v4321 = vsel %vm1863, %v4289, %v3523
      %v4322 = vsel %vm1863, %v4290, %v3525
      %v4323 = vsel %vm1863, %v4291, %v3527
      %v4324 = vsel %vm1863, %v4292, %v3529
      %v4325 = vsel %vm1863, %v4293, %v3531
      %v4326 = vsel %vm1863, %v4294, %v3533
      %v4327 = vsel %vm1863, %v4295, %v3535
      %v4328 = vsel %vm1863, %v4296, %v3537
      %v4329 = vsel %vm1863, %v4297, %v3539
      %v4330 = vsel %vm1863, %v4298, %v3541
      %v4331 = vsel %vm1863, %v4299, %v3543
      %v4332 = vsel %vm1863, %v4300, %v3545
      %v4333 = vsel %vm1863, %v4301, %v3547
      %v4334 = vsel %vm1863, %v4302, %v3549
      %v4335 = vsel %vm1863, %v4303, %v3551
      %v4336 = vsel %vm1863, %v4304, %v3553
      %v4337 = vsel %vm1863, %v4305, %v3555
      %v4338 = vsel %vm1863, %v4306, %v3557
      %v4339 = vsel %vm1863, %v4307, %v3559
      %v4340 = vsel %vm1863, %v4308, %v3561
      %v4341 = vsel %vm1863, %v4309, %v3563
      %v4342 = vsel %vm1863, %v4310, %v3565
      %v4343 = vsel %vm1863, %v4311, %v3567
      %v4344 = vsel %vm1863, %v4312, %v3569
      %v4345 = vsel %vm1863, %v4313, %v3571
      %v4346 = vsel %vm1863, %v4314, %v3573
      %v4347 = vsel %vm1863, %v4315, %v3575
      %v4348 = vsel %vm1863, %v4316, %v3577
      %v4349 = vsel %vm1863, %v4317, %v3579
      %v4350 = vsel %vm1863, %v4318, %v3581
      %v4351 = vsel %vm1863, %v4319, %v3583
      %v4352 = vsel %vm1896, %v4320, %v3649
      %v4353 = vsel %vm1896, %v4321, %v3651
      %v4354 = vsel %vm1896, %v4322, %v3653
      %v4355 = vsel %vm1896, %v4323, %v3655
      %v4356 = vsel %vm1896, %v4324, %v3657
      %v4357 = vsel %vm1896, %v4325, %v3659
      %v4358 = vsel %vm1896, %v4326, %v3661
      %v4359 = vsel %vm1896, %v4327, %v3663
      %v4360 = vsel %vm1896, %v4328, %v3665
      %v4361 = vsel %vm1896, %v4329, %v3667
      %v4362 = vsel %vm1896, %v4330, %v3669
      %v4363 = vsel %vm1896, %v4331, %v3671
      %v4364 = vsel %vm1896, %v4332, %v3673
      %v4365 = vsel %vm1896, %v4333, %v3675
      %v4366 = vsel %vm1896, %v4334, %v3677
      %v4367 = vsel %vm1896, %v4335, %v3679
      %v4368 = vsel %vm1896, %v4336, %v3681
      %v4369 = vsel %vm1896, %v4337, %v3683
      %v4370 = vsel %vm1896, %v4338, %v3685
      %v4371 = vsel %vm1896, %v4339, %v3687
      %v4372 = vsel %vm1896, %v4340, %v3689
      %v4373 = vsel %vm1896, %v4341, %v3691
      %v4374 = vsel %vm1896, %v4342, %v3693
      %v4375 = vsel %vm1896, %v4343, %v3695
      %v4376 = vsel %vm1896, %v4344, %v3697
      %v4377 = vsel %vm1896, %v4345, %v3699
      %v4378 = vsel %vm1896, %v4346, %v3701
      %v4379 = vsel %vm1896, %v4347, %v3703
      %v4380 = vsel %vm1896, %v4348, %v3705
      %v4381 = vsel %vm1896, %v4349, %v3707
      %v4382 = vsel %vm1896, %v4350, %v3709
      %v4383 = vsel %vm1896, %v4351, %v3711
      %v4384 = vsel %vm1929, %v4352, %v3777
      %v4385 = vsel %vm1929, %v4353, %v3779
      %v4386 = vsel %vm1929, %v4354, %v3781
      %v4387 = vsel %vm1929, %v4355, %v3783
      %v4388 = vsel %vm1929, %v4356, %v3785
      %v4389 = vsel %vm1929, %v4357, %v3787
      %v4390 = vsel %vm1929, %v4358, %v3789
      %v4391 = vsel %vm1929, %v4359, %v3791
      %v4392 = vsel %vm1929, %v4360, %v3793
      %v4393 = vsel %vm1929, %v4361, %v3795
      %v4394 = vsel %vm1929, %v4362, %v3797
      %v4395 = vsel %vm1929, %v4363, %v3799
      %v4396 = vsel %vm1929, %v4364, %v3801
      %v4397 = vsel %vm1929, %v4365, %v3803
      %v4398 = vsel %vm1929, %v4366, %v3805
      %v4399 = vsel %vm1929, %v4367, %v3807
      %v4400 = vsel %vm1929, %v4368, %v3809
      %v4401 = vsel %vm1929, %v4369, %v3811
      %v4402 = vsel %vm1929, %v4370, %v3813
      %v4403 = vsel %vm1929, %v4371, %v3815
      %v4404 = vsel %vm1929, %v4372, %v3817
      %v4405 = vsel %vm1929, %v4373, %v3819
      %v4406 = vsel %vm1929, %v4374, %v3821
      %v4407 = vsel %vm1929, %v4375, %v3823
      %v4408 = vsel %vm1929, %v4376, %v3825
      %v4409 = vsel %vm1929, %v4377, %v3827
      %v4410 = vsel %vm1929, %v4378, %v3829
      %v4411 = vsel %vm1929, %v4379, %v3831
      %v4412 = vsel %vm1929, %v4380, %v3833
      %v4413 = vsel %vm1929, %v4381, %v3835
      %v4414 = vsel %vm1929, %v4382, %v3837
      %v4415 = vsel %vm1929, %v4383, %v3839
      %v4416 = vsel %vm1962, %v4384, %v3905
      %v4417 = vsel %vm1962, %v4385, %v3907
      %v4418 = vsel %vm1962, %v4386, %v3909
      %v4419 = vsel %vm1962, %v4387, %v3911
      %v4420 = vsel %vm1962, %v4388, %v3913
      %v4421 = vsel %vm1962, %v4389, %v3915
      %v4422 = vsel %vm1962, %v4390, %v3917
      %v4423 = vsel %vm1962, %v4391, %v3919
      %v4424 = vsel %vm1962, %v4392, %v3921
      %v4425 = vsel %vm1962, %v4393, %v3923
      %v4426 = vsel %vm1962, %v4394, %v3925
      %v4427 = vsel %vm1962, %v4395, %v3927
      %v4428 = vsel %vm1962, %v4396, %v3929
      %v4429 = vsel %vm1962, %v4397, %v3931
      %v4430 = vsel %vm1962, %v4398, %v3933
      %v4431 = vsel %vm1962, %v4399, %v3935
      %v4432 = vsel %vm1962, %v4400, %v3937
      %v4433 = vsel %vm1962, %v4401, %v3939
      %v4434 = vsel %vm1962, %v4402, %v3941
      %v4435 = vsel %vm1962, %v4403, %v3943
      %v4436 = vsel %vm1962, %v4404, %v3945
      %v4437 = vsel %vm1962, %v4405, %v3947
      %v4438 = vsel %vm1962, %v4406, %v3949
      %v4439 = vsel %vm1962, %v4407, %v3951
      %v4440 = vsel %vm1962, %v4408, %v3953
      %v4441 = vsel %vm1962, %v4409, %v3955
      %v4442 = vsel %vm1962, %v4410, %v3957
      %v4443 = vsel %vm1962, %v4411, %v3959
      %v4444 = vsel %vm1962, %v4412, %v3961
      %v4445 = vsel %vm1962, %v4413, %v3963
      %v4446 = vsel %vm1962, %v4414, %v3965
      %v4447 = vsel %vm1962, %v4415, %v3967
      %v4448 = vsel %vm1995, %v4416, %v4033
      %v4449 = vsel %vm1995, %v4417, %v4035
      %v4450 = vsel %vm1995, %v4418, %v4037
      %v4451 = vsel %vm1995, %v4419, %v4039
      %v4452 = vsel %vm1995, %v4420, %v4041
      %v4453 = vsel %vm1995, %v4421, %v4043
      %v4454 = vsel %vm1995, %v4422, %v4045
      %v4455 = vsel %vm1995, %v4423, %v4047
      %v4456 = vsel %vm1995, %v4424, %v4049
      %v4457 = vsel %vm1995, %v4425, %v4051
      %v4458 = vsel %vm1995, %v4426, %v4053
      %v4459 = vsel %vm1995, %v4427, %v4055
      %v4460 = vsel %vm1995, %v4428, %v4057
      %v4461 = vsel %vm1995, %v4429, %v4059
      %v4462 = vsel %vm1995, %v4430, %v4061
      %v4463 = vsel %vm1995, %v4431, %v4063
      %v4464 = vsel %vm1995, %v4432, %v4065
      %v4465 = vsel %vm1995, %v4433, %v4067
      %v4466 = vsel %vm1995, %v4434, %v4069
      %v4467 = vsel %vm1995, %v4435, %v4071
      %v4468 = vsel %vm1995, %v4436, %v4073
      %v4469 = vsel %vm1995, %v4437, %v4075
      %v4470 = vsel %vm1995, %v4438, %v4077
      %v4471 = vsel %vm1995, %v4439, %v4079
      %v4472 = vsel %vm1995, %v4440, %v4081
      %v4473 = vsel %vm1995, %v4441, %v4083
      %v4474 = vsel %vm1995, %v4442, %v4085
      %v4475 = vsel %vm1995, %v4443, %v4087
      %v4476 = vsel %vm1995, %v4444, %v4089
      %v4477 = vsel %vm1995, %v4445, %v4091
      %v4478 = vsel %vm1995, %v4446, %v4093
      %v4479 = vsel %vm1995, %v4447, %v4095
      %v4480 = vsel %vm2028, %v4448, %v4161
      %v4481 = vsel %vm2028, %v4449, %v4163
      %v4482 = vsel %vm2028, %v4450, %v4165
      %v4483 = vsel %vm2028, %v4451, %v4167
      %v4484 = vsel %vm2028, %v4452, %v4169
      %v4485 = vsel %vm2028, %v4453, %v4171
      %v4486 = vsel %vm2028, %v4454, %v4173
      %v4487 = vsel %vm2028, %v4455, %v4175
      %v4488 = vsel %vm2028, %v4456, %v4177
      %v4489 = vsel %vm2028, %v4457, %v4179
      %v4490 = vsel %vm2028, %v4458, %v4181
      %v4491 = vsel %vm2028, %v4459, %v4183
      %v4492 = vsel %vm2028, %v4460, %v4185
      %v4493 = vsel %vm2028, %v4461, %v4187
      %v4494 = vsel %vm2028, %v4462, %v4189
      %v4495 = vsel %vm2028, %v4463, %v4191
      %v4496 = vsel %vm2028, %v4464, %v4193
      %v4497 = vsel %vm2028, %v4465, %v4195
      %v4498 = vsel %vm2028, %v4466, %v4197
      %v4499 = vsel %vm2028, %v4467, %v4199
      %v4500 = vsel %vm2028, %v4468, %v4201
      %v4501 = vsel %vm2028, %v4469, %v4203
      %v4502 = vsel %vm2028, %v4470, %v4205
      %v4503 = vsel %vm2028, %v4471, %v4207
      %v4504 = vsel %vm2028, %v4472, %v4209
      %v4505 = vsel %vm2028, %v4473, %v4211
      %v4506 = vsel %vm2028, %v4474, %v4213
      %v4507 = vsel %vm2028, %v4475, %v4215
      %v4508 = vsel %vm2028, %v4476, %v4217
      %v4509 = vsel %vm2028, %v4477, %v4219
      %v4510 = vsel %vm2028, %v4478, %v4221
      %v4511 = vsel %vm2028, %v4479, %v4223
      %v4512 = vld [vmem:[%s2] sm:$0xff]
      %v4513 = vld [vmem:[%s2 + $0x8] sm:$0xff]
      %v4514 = vld [vmem:[%s2 + $0x10] sm:$0xff]
      %v4515 = vld [vmem:[%s2 + $0x18] sm:$0xff]
      %v4516 = vld [vmem:[%s2 + $0x20] sm:$0xf]
      %v4518 = vsel %vm2066, %v4480, 0
      %v4521 = vsel %vm2066, %v4481, 0
      %v4524 = vsel %vm2066, %v4482, 0
      %v4527 = vsel %vm2066, %v4483, 0
      %v4530 = vsel %vm2066, %v4484, 0
      %v4533 = vsel %vm2066, %v4485, 0
      %v4536 = vsel %vm2066, %v4486, 0
      %v4539 = vsel %vm2066, %v4487, 0
      %v4542 = vsel %vm2066, %v4488, 0
      %v4545 = vsel %vm2066, %v4489, 0
      %v4548 = vsel %vm2066, %v4490, 0
      %v4551 = vsel %vm2066, %v4491, 0
      %v4554 = vsel %vm2066, %v4492, 0
      %v4557 = vsel %vm2066, %v4493, 0
      %v4560 = vsel %vm2066, %v4494, 0
      %v4563 = vsel %vm2066, %v4495, 0
      %v4566 = vsel %vm2066, %v4496, 0
      %v4569 = vsel %vm2066, %v4497, 0
      %v4572 = vsel %vm2066, %v4498, 0
      %v4575 = vsel %vm2066, %v4499, 0
      %v4578 = vsel %vm2066, %v4500, 0
      %v4581 = vsel %vm2066, %v4501, 0
      %v4584 = vsel %vm2066, %v4502, 0
      %v4587 = vsel %vm2066, %v4503, 0
      %v4590 = vsel %vm2066, %v4504, 0
      %v4593 = vsel %vm2066, %v4505, 0
      %v4596 = vsel %vm2066, %v4506, 0
      %v4599 = vsel %vm2066, %v4507, 0
      %v4602 = vsel %vm2066, %v4508, 0
      %v4605 = vsel %vm2066, %v4509, 0
      %v4608 = vsel %vm2066, %v4510, 0
      %v4611 = vsel %vm2066, %v4511, 0
      %v4614 = vsel %vm2163, %v4516, 0
      %4616 = vmatprep.subr.mxu0 0.0
      %4617 = vmatpush1.msra.mxu0 %v4512
      %4618 = vmatprep.subr.mxu0 0.0
      %4619 = vmatpush1.msra.mxu0 %v4513
      %4620 = vmatprep.subr.mxu0 0.0
      %4621 = vmatpush1.msra.mxu0 %v4514
      %4622 = vmatprep.subr.mxu0 0.0
      %4623 = vmatpush1.msra.mxu0 %v4515
      %4624 = vmatprep.subr.mxu0 0.0
      %4625 = vmatpush1.msra.mxu0 %v4614
      %4626 = vmatprep.subr.mxu0 0.0
      %4627 = vmatpush1.msra.mxu0 0.0
      %4628 = vmatprep.subr.mxu0 0.0
      %4629 = vmatpush1.msra.mxu0 0.0
      %4630 = vmatprep.subr.mxu0 0.0
      %4631 = vmatpush1.msra.mxu0 0.0
      %4632 = vmatprep.subr.mxu0 0.0
      %4633 = vmatpush1.msra.mxu0 0.0
      %4634 = vmatprep.subr.mxu0 0.0
      %4635 = vmatpush1.msra.mxu0 0.0
      %4636 = vmatprep.subr.mxu0 0.0
      %4637 = vmatpush1.msra.mxu0 0.0
      %4638 = vmatprep.subr.mxu0 0.0
      %4639 = vmatpush1.msra.mxu0 0.0
      %4640 = vmatprep.subr.mxu0 0.0
      %4641 = vmatpush1.msra.mxu0 0.0
      %4642 = vmatprep.subr.mxu0 0.0
      %4643 = vmatpush1.msra.mxu0 0.0
      %4644 = vmatprep.subr.mxu0 0.0
      %4645 = vmatpush1.msra.mxu0 0.0
      %4646 = vmatprep.subr.mxu0 0.0
      %4647 = vmatpush1.msra.mxu0 0.0
      %4648 = vmatprep.subr.mxu0 0.0
      %4649 = vmatpush1.msra.mxu0 0.0
      %4650 = vmatprep.subr.mxu0 0.0
      %4651 = vmatpush1.msra.mxu0 0.0
      %4652 = vmatprep.subr.mxu0 0.0
      %4653 = vmatpush1.msra.mxu0 0.0
      %4654 = vmatprep.subr.mxu0 0.0
      %4655 = vmatpush1.msra.mxu0 0.0
      %4656 = vmatprep.subr.mxu0 0.0
      %4657 = vmatpush1.msra.mxu0 0.0
      %4658 = vmatprep.subr.mxu0 0.0
      %4659 = vmatpush1.msra.mxu0 0.0
      %4660 = vmatprep.subr.mxu0 0.0
      %4661 = vmatpush1.msra.mxu0 0.0
      %4662 = vmatprep.subr.mxu0 0.0
      %4663 = vmatpush1.msra.mxu0 0.0
      %4664 = vmatprep.subr.mxu0 0.0
      %4665 = vmatpush1.msra.mxu0 0.0
      %4666 = vmatprep.subr.mxu0 0.0
      %4667 = vmatpush1.msra.mxu0 0.0
      %4668 = vmatprep.subr.mxu0 0.0
      %4669 = vmatpush1.msra.mxu0 0.0
      %4670 = vmatprep.subr.mxu0 0.0
      %4671 = vmatpush1.msra.mxu0 0.0
      %4672 = vmatprep.subr.mxu0 0.0
      %4673 = vmatpush1.msra.mxu0 0.0
      %4674 = vmatprep.subr.mxu0 0.0
      %4675 = vmatpush1.msra.mxu0 0.0
      %4676 = vmatprep.subr.mxu0 0.0
      %4677 = vmatpush1.msra.mxu0 0.0
      %4678 = vmatprep.subr.mxu0 0.0
      %4679 = vmatpush1.msra.mxu0 0.0
      %4680 = vmatprep.mubr.f32.mxu0 0.0
      %4681 = vmatmul.mubr.f32.gmra.mrb[0].mxu0 %v4518
      %v4682 = vpop.f32.mrb[0].mxu0
      %v4683 = vadd.f32 0.0, %v4682
      %v4684 = vpop.f32.mrb[0].mxu0
      %4685 = vmatprep.mubr.f32.mxu0 0.0
      %4686 = vmatmul.mubr.f32.gmra.mrb[0].mxu0 %v4521
      %v4687 = vpop.f32.mrb[0].mxu0
      %v4688 = vadd.f32 0.0, %v4687
      %v4689 = vpop.f32.mrb[0].mxu0
      %4690 = vmatprep.mubr.f32.mxu0 0.0
      %4691 = vmatmul.mubr.f32.gmra.mrb[0].mxu0 %v4524
      %v4692 = vpop.f32.mrb[0].mxu0
      %v4693 = vadd.f32 0.0, %v4692
      %v4694 = vpop.f32.mrb[0].mxu0
      %4695 = vmatprep.mubr.f32.mxu0 0.0
      %4696 = vmatmul.mubr.f32.gmra.mrb[0].mxu0 %v4527
      %v4697 = vpop.f32.mrb[0].mxu0
      %v4698 = vadd.f32 0.0, %v4697
      %v4699 = vpop.f32.mrb[0].mxu0
      %4700 = vmatprep.mubr.f32.mxu0 0.0
      %4701 = vmatmul.mubr.f32.gmra.mrb[0].mxu0 %v4530
      %v4702 = vpop.f32.mrb[0].mxu0
      %v4703 = vadd.f32 0.0, %v4702
      %v4704 = vpop.f32.mrb[0].mxu0
      %4705 = vmatprep.mubr.f32.mxu0 0.0
      %4706 = vmatmul.mubr.f32.gmra.mrb[0].mxu0 %v4533
      %v4707 = vpop.f32.mrb[0].mxu0
      %v4708 = vadd.f32 0.0, %v4707
      %v4709 = vpop.f32.mrb[0].mxu0
      %4710 = vmatprep.mubr.f32.mxu0 0.0
      %4711 = vmatmul.mubr.f32.gmra.mrb[0].mxu0 %v4536
      %v4712 = vpop.f32.mrb[0].mxu0
      %v4713 = vadd.f32 0.0, %v4712
      %v4714 = vpop.f32.mrb[0].mxu0
      %4715 = vmatprep.mubr.f32.mxu0 0.0
      %4716 = vmatmul.mubr.f32.gmra.mrb[0].mxu0 %v4539
      %v4717 = vpop.f32.mrb[0].mxu0
      %v4718 = vadd.f32 0.0, %v4717
      %v4719 = vpop.f32.mrb[0].mxu0
      %4720 = vmatprep.mubr.f32.mxu0 0.0
      %4721 = vmatmul.mubr.f32.gmra.mrb[0].mxu0 %v4542
      %v4722 = vpop.f32.mrb[0].mxu0
      %v4723 = vadd.f32 0.0, %v4722
      %v4724 = vpop.f32.mrb[0].mxu0
      %4725 = vmatprep.mubr.f32.mxu0 0.0
      %4726 = vmatmul.mubr.f32.gmra.mrb[0].mxu0 %v4545
      %v4727 = vpop.f32.mrb[0].mxu0
      %v4728 = vadd.f32 0.0, %v4727
      %v4729 = vpop.f32.mrb[0].mxu0
      %4730 = vmatprep.mubr.f32.mxu0 0.0
      %4731 = vmatmul.mubr.f32.gmra.mrb[0].mxu0 %v4548
      %v4732 = vpop.f32.mrb[0].mxu0
      %v4733 = vadd.f32 0.0, %v4732
      %v4734 = vpop.f32.mrb[0].mxu0
      %4735 = vmatprep.mubr.f32.mxu0 0.0
      %4736 = vmatmul.mubr.f32.gmra.mrb[0].mxu0 %v4551
      %v4737 = vpop.f32.mrb[0].mxu0
      %v4738 = vadd.f32 0.0, %v4737
      %v4739 = vpop.f32.mrb[0].mxu0
      %4740 = vmatprep.mubr.f32.mxu0 0.0
      %4741 = vmatmul.mubr.f32.gmra.mrb[0].mxu0 %v4554
      %v4742 = vpop.f32.mrb[0].mxu0
      %v4743 = vadd.f32 0.0, %v4742
      %v4744 = vpop.f32.mrb[0].mxu0
      %4745 = vmatprep.mubr.f32.mxu0 0.0
      %4746 = vmatmul.mubr.f32.gmra.mrb[0].mxu0 %v4557
      %v4747 = vpop.f32.mrb[0].mxu0
      %v4748 = vadd.f32 0.0, %v4747
      %v4749 = vpop.f32.mrb[0].mxu0
      %4750 = vmatprep.mubr.f32.mxu0 0.0
      %4751 = vmatmul.mubr.f32.gmra.mrb[0].mxu0 %v4560
      %v4752 = vpop.f32.mrb[0].mxu0
      %v4753 = vadd.f32 0.0, %v4752
      %v4754 = vpop.f32.mrb[0].mxu0
      %4755 = vmatprep.mubr.f32.mxu0 0.0
      %4756 = vmatmul.mubr.f32.gmra.mrb[0].mxu0 %v4563
      %v4757 = vpop.f32.mrb[0].mxu0
      %v4758 = vadd.f32 0.0, %v4757
      %v4759 = vpop.f32.mrb[0].mxu0
      %4760 = vmatprep.mubr.f32.mxu0 0.0
      %4761 = vmatmul.mubr.f32.gmra.mrb[0].mxu0 %v4566
      %v4762 = vpop.f32.mrb[0].mxu0
      %v4763 = vadd.f32 0.0, %v4762
      %v4764 = vpop.f32.mrb[0].mxu0
      %4765 = vmatprep.mubr.f32.mxu0 0.0
      %4766 = vmatmul.mubr.f32.gmra.mrb[0].mxu0 %v4569
      %v4767 = vpop.f32.mrb[0].mxu0
      %v4768 = vadd.f32 0.0, %v4767
      %v4769 = vpop.f32.mrb[0].mxu0
      %4770 = vmatprep.mubr.f32.mxu0 0.0
      %4771 = vmatmul.mubr.f32.gmra.mrb[0].mxu0 %v4572
      %v4772 = vpop.f32.mrb[0].mxu0
      %v4773 = vadd.f32 0.0, %v4772
      %v4774 = vpop.f32.mrb[0].mxu0
      %4775 = vmatprep.mubr.f32.mxu0 0.0
      %4776 = vmatmul.mubr.f32.gmra.mrb[0].mxu0 %v4575
      %v4777 = vpop.f32.mrb[0].mxu0
      %v4778 = vadd.f32 0.0, %v4777
      %v4779 = vpop.f32.mrb[0].mxu0
      %4780 = vmatprep.mubr.f32.mxu0 0.0
      %4781 = vmatmul.mubr.f32.gmra.mrb[0].mxu0 %v4578
      %v4782 = vpop.f32.mrb[0].mxu0
      %v4783 = vadd.f32 0.0, %v4782
      %v4784 = vpop.f32.mrb[0].mxu0
      %4785 = vmatprep.mubr.f32.mxu0 0.0
      %4786 = vmatmul.mubr.f32.gmra.mrb[0].mxu0 %v4581
      %v4787 = vpop.f32.mrb[0].mxu0
      %v4788 = vadd.f32 0.0, %v4787
      %v4789 = vpop.f32.mrb[0].mxu0
      %4790 = vmatprep.mubr.f32.mxu0 0.0
      %4791 = vmatmul.mubr.f32.gmra.mrb[0].mxu0 %v4584
      %v4792 = vpop.f32.mrb[0].mxu0
      %v4793 = vadd.f32 0.0, %v4792
      %v4794 = vpop.f32.mrb[0].mxu0
      %4795 = vmatprep.mubr.f32.mxu0 0.0
      %4796 = vmatmul.mubr.f32.gmra.mrb[0].mxu0 %v4587
      %v4797 = vpop.f32.mrb[0].mxu0
      %v4798 = vadd.f32 0.0, %v4797
      %v4799 = vpop.f32.mrb[0].mxu0
      %4800 = vmatprep.mubr.f32.mxu0 0.0
      %4801 = vmatmul.mubr.f32.gmra.mrb[0].mxu0 %v4590
      %v4802 = vpop.f32.mrb[0].mxu0
      %v4803 = vadd.f32 0.0, %v4802
      %v4804 = vpop.f32.mrb[0].mxu0
      %4805 = vmatprep.mubr.f32.mxu0 0.0
      %4806 = vmatmul.mubr.f32.gmra.mrb[0].mxu0 %v4593
      %v4807 = vpop.f32.mrb[0].mxu0
      %v4808 = vadd.f32 0.0, %v4807
      %v4809 = vpop.f32.mrb[0].mxu0
      %4810 = vmatprep.mubr.f32.mxu0 0.0
      %4811 = vmatmul.mubr.f32.gmra.mrb[0].mxu0 %v4596
      %v4812 = vpop.f32.mrb[0].mxu0
      %v4813 = vadd.f32 0.0, %v4812
      %v4814 = vpop.f32.mrb[0].mxu0
      %4815 = vmatprep.mubr.f32.mxu0 0.0
      %4816 = vmatmul.mubr.f32.gmra.mrb[0].mxu0 %v4599
      %v4817 = vpop.f32.mrb[0].mxu0
      %v4818 = vadd.f32 0.0, %v4817
      %v4819 = vpop.f32.mrb[0].mxu0
      %4820 = vmatprep.mubr.f32.mxu0 0.0
      %4821 = vmatmul.mubr.f32.gmra.mrb[0].mxu0 %v4602
      %v4822 = vpop.f32.mrb[0].mxu0
      %v4823 = vadd.f32 0.0, %v4822
      %v4824 = vpop.f32.mrb[0].mxu0
      %4825 = vmatprep.mubr.f32.mxu0 0.0
      %4826 = vmatmul.mubr.f32.gmra.mrb[0].mxu0 %v4605
      %v4827 = vpop.f32.mrb[0].mxu0
      %v4828 = vadd.f32 0.0, %v4827
      %v4829 = vpop.f32.mrb[0].mxu0
      %4830 = vmatprep.mubr.f32.mxu0 0.0
      %4831 = vmatmul.mubr.f32.gmra.mrb[0].mxu0 %v4608
      %v4832 = vpop.f32.mrb[0].mxu0
      %v4833 = vadd.f32 0.0, %v4832
      %v4834 = vpop.f32.mrb[0].mxu0
      %4835 = vmatprep.mubr.f32.mxu0 0.0
      %4836 = vmatmul.mubr.f32.gmra.mrb[0].mxu0 %v4611
      %v4837 = vpop.f32.mrb[0].mxu0
      %v4838 = vadd.f32 0.0, %v4837
      %v4839 = vpop.f32.mrb[0].mxu0
      %4840 = vdwg.mxu0
      %v4841 = vsel %vm428, %v4683, 0.0
      %v4842 = vsel %vm428, %v4688, 0.0
      %v4843 = vadd.f32 %v4841, %v4842
      %v4844 = vsel %vm428, %v4693, 0.0
      %v4845 = vadd.f32 %v4843, %v4844
      %v4846 = vsel %vm428, %v4698, 0.0
      %v4847 = vadd.f32 %v4845, %v4846
      %v4848 = vsel %vm428, %v4703, 0.0
      %v4849 = vadd.f32 %v4847, %v4848
      %v4850 = vsel %vm428, %v4708, 0.0
      %v4851 = vadd.f32 %v4849, %v4850
      %v4852 = vsel %vm428, %v4713, 0.0
      %v4853 = vadd.f32 %v4851, %v4852
      %v4854 = vsel %vm428, %v4718, 0.0
      %v4855 = vadd.f32 %v4853, %v4854
      %v4856 = vsel %vm428, %v4723, 0.0
      %v4857 = vadd.f32 %v4855, %v4856
      %v4858 = vsel %vm428, %v4728, 0.0
      %v4859 = vadd.f32 %v4857, %v4858
      %v4860 = vsel %vm428, %v4733, 0.0
      %v4861 = vadd.f32 %v4859, %v4860
      %v4862 = vsel %vm428, %v4738, 0.0
      %v4863 = vadd.f32 %v4861, %v4862
      %v4864 = vsel %vm428, %v4743, 0.0
      %v4865 = vadd.f32 %v4863, %v4864
      %v4866 = vsel %vm428, %v4748, 0.0
      %v4867 = vadd.f32 %v4865, %v4866
      %v4868 = vsel %vm428, %v4753, 0.0
      %v4869 = vadd.f32 %v4867, %v4868
      %v4870 = vsel %vm428, %v4758, 0.0
      %v4871 = vadd.f32 %v4869, %v4870
      %v4872 = vsel %vm428, %v4763, 0.0
      %v4873 = vadd.f32 %v4871, %v4872
      %v4874 = vsel %vm428, %v4768, 0.0
      %v4875 = vadd.f32 %v4873, %v4874
      %v4876 = vsel %vm428, %v4773, 0.0
      %v4877 = vadd.f32 %v4875, %v4876
      %v4878 = vsel %vm428, %v4778, 0.0
      %v4879 = vadd.f32 %v4877, %v4878
      %v4880 = vsel %vm428, %v4783, 0.0
      %v4881 = vadd.f32 %v4879, %v4880
      %v4882 = vsel %vm428, %v4788, 0.0
      %v4883 = vadd.f32 %v4881, %v4882
      %v4884 = vsel %vm428, %v4793, 0.0
      %v4885 = vadd.f32 %v4883, %v4884
      %v4886 = vsel %vm428, %v4798, 0.0
      %v4887 = vadd.f32 %v4885, %v4886
      %v4888 = vsel %vm428, %v4803, 0.0
      %v4889 = vadd.f32 %v4887, %v4888
      %v4890 = vsel %vm428, %v4808, 0.0
      %v4891 = vadd.f32 %v4889, %v4890
      %v4892 = vsel %vm428, %v4813, 0.0
      %v4893 = vadd.f32 %v4891, %v4892
      %v4894 = vsel %vm428, %v4818, 0.0
      %v4895 = vadd.f32 %v4893, %v4894
      %v4896 = vsel %vm428, %v4823, 0.0
      %v4897 = vadd.f32 %v4895, %v4896
      %v4898 = vsel %vm428, %v4828, 0.0
      %v4899 = vadd.f32 %v4897, %v4898
      %v4900 = vsel %vm428, %v4833, 0.0
      %v4901 = vadd.f32 %v4899, %v4900
      %v4902 = vsel %vm428, %v4838, 0.0
      %v4903 = vadd.f32 %v4901, %v4902
      %v4904 = vrot.slane %v4903, 4
      %v4905 = vadd.f32 %v4903, %v4904
      %v4906 = vrot.slane %v4905, 2
      %v4907 = vadd.f32 %v4905, %v4906
      %v4908 = vrot.slane %v4907, 1
      %v4909 = vadd.f32 %v4907, %v4908
      %v4910 = vmul.f32 %v4683, %v4683
      %v4911 = vmul.f32 %v4688, %v4688
      %v4912 = vmul.f32 %v4693, %v4693
      %v4913 = vmul.f32 %v4698, %v4698
      %v4914 = vmul.f32 %v4703, %v4703
      %v4915 = vmul.f32 %v4708, %v4708
      %v4916 = vmul.f32 %v4713, %v4713
      %v4917 = vmul.f32 %v4718, %v4718
      %v4918 = vmul.f32 %v4723, %v4723
      %v4919 = vmul.f32 %v4728, %v4728
      %v4920 = vmul.f32 %v4733, %v4733
      %v4921 = vmul.f32 %v4738, %v4738
      %v4922 = vmul.f32 %v4743, %v4743
      %v4923 = vmul.f32 %v4748, %v4748
      %v4924 = vmul.f32 %v4753, %v4753
      %v4925 = vmul.f32 %v4758, %v4758
      %v4926 = vmul.f32 %v4763, %v4763
      %v4927 = vmul.f32 %v4768, %v4768
      %v4928 = vmul.f32 %v4773, %v4773
      %v4929 = vmul.f32 %v4778, %v4778
      %v4930 = vmul.f32 %v4783, %v4783
      %v4931 = vmul.f32 %v4788, %v4788
      %v4932 = vmul.f32 %v4793, %v4793
      %v4933 = vmul.f32 %v4798, %v4798
      %v4934 = vmul.f32 %v4803, %v4803
      %v4935 = vmul.f32 %v4808, %v4808
      %v4936 = vmul.f32 %v4813, %v4813
      %v4937 = vmul.f32 %v4818, %v4818
      %v4938 = vmul.f32 %v4823, %v4823
      %v4939 = vmul.f32 %v4828, %v4828
      %v4940 = vmul.f32 %v4833, %v4833
      %v4941 = vmul.f32 %v4838, %v4838
      %v4942 = vsel %vm428, %v4910, 0.0
      %v4943 = vsel %vm428, %v4911, 0.0
      %v4944 = vadd.f32 %v4942, %v4943
      %v4945 = vsel %vm428, %v4912, 0.0
      %v4946 = vadd.f32 %v4944, %v4945
      %v4947 = vsel %vm428, %v4913, 0.0
      %v4948 = vadd.f32 %v4946, %v4947
      %v4949 = vsel %vm428, %v4914, 0.0
      %v4950 = vadd.f32 %v4948, %v4949
      %v4951 = vsel %vm428, %v4915, 0.0
      %v4952 = vadd.f32 %v4950, %v4951
      %v4953 = vsel %vm428, %v4916, 0.0
      %v4954 = vadd.f32 %v4952, %v4953
      %v4955 = vsel %vm428, %v4917, 0.0
      %v4956 = vadd.f32 %v4954, %v4955
      %v4957 = vsel %vm428, %v4918, 0.0
      %v4958 = vadd.f32 %v4956, %v4957
      %v4959 = vsel %vm428, %v4919, 0.0
      %v4960 = vadd.f32 %v4958, %v4959
      %v4961 = vsel %vm428, %v4920, 0.0
      %v4962 = vadd.f32 %v4960, %v4961
      %v4963 = vsel %vm428, %v4921, 0.0
      %v4964 = vadd.f32 %v4962, %v4963
      %v4965 = vsel %vm428, %v4922, 0.0
      %v4966 = vadd.f32 %v4964, %v4965
      %v4967 = vsel %vm428, %v4923, 0.0
      %v4968 = vadd.f32 %v4966, %v4967
      %v4969 = vsel %vm428, %v4924, 0.0
      %v4970 = vadd.f32 %v4968, %v4969
      %v4971 = vsel %vm428, %v4925, 0.0
      %v4972 = vadd.f32 %v4970, %v4971
      %v4973 = vsel %vm428, %v4926, 0.0
      %v4974 = vadd.f32 %v4972, %v4973
      %v4975 = vsel %vm428, %v4927, 0.0
      %v4976 = vadd.f32 %v4974, %v4975
      %v4977 = vsel %vm428, %v4928, 0.0
      %v4978 = vadd.f32 %v4976, %v4977
      %v4979 = vsel %vm428, %v4929, 0.0
      %v4980 = vadd.f32 %v4978, %v4979
      %v4981 = vsel %vm428, %v4930, 0.0
      %v4982 = vadd.f32 %v4980, %v4981
      %v4983 = vsel %vm428, %v4931, 0.0
      %v4984 = vadd.f32 %v4982, %v4983
      %v4985 = vsel %vm428, %v4932, 0.0
      %v4986 = vadd.f32 %v4984, %v4985
      %v4987 = vsel %vm428, %v4933, 0.0
      %v4988 = vadd.f32 %v4986, %v4987
      %v4989 = vsel %vm428, %v4934, 0.0
      %v4990 = vadd.f32 %v4988, %v4989
      %v4991 = vsel %vm428, %v4935, 0.0
      %v4992 = vadd.f32 %v4990, %v4991
      %v4993 = vsel %vm428, %v4936, 0.0
      %v4994 = vadd.f32 %v4992, %v4993
      %v4995 = vsel %vm428, %v4937, 0.0
      %v4996 = vadd.f32 %v4994, %v4995
      %v4997 = vsel %vm428, %v4938, 0.0
      %v4998 = vadd.f32 %v4996, %v4997
      %v4999 = vsel %vm428, %v4939, 0.0
      %v5000 = vadd.f32 %v4998, %v4999
      %v5001 = vsel %vm428, %v4940, 0.0
      %v5002 = vadd.f32 %v5000, %v5001
      %v5003 = vsel %vm428, %v4941, 0.0
      %v5004 = vadd.f32 %v5002, %v5003
      %v5005 = vrot.slane %v5004, 4
      %v5006 = vadd.f32 %v5004, %v5005
      %v5007 = vrot.slane %v5006, 2
      %v5008 = vadd.f32 %v5006, %v5007
      %v5009 = vrot.slane %v5008, 1
      %v5010 = vadd.f32 %v5008, %v5009
      %v5011 = vmul.f32 %v4909, 0.00390625
      %v5012 = vmul.f32 %v5010, 0.00390625
      %v5013 = vmul.f32 %v5011, %v5011
      %v5014 = vsub.f32 %v5012, %v5013
      %v5015 = vadd.f32 %v5014, 1e-05
      %v5016 = vrsqrt.pop %v5015
      %v5017 = vsub.f32 0.0, %v5011
      %v5018 = vmul.f32 %v5017, %v5016
      %v5019 = vmul.f32 %v4683, %v5016
      %v5020 = vmul.f32 %v4688, %v5016
      %v5021 = vmul.f32 %v4693, %v5016
      %v5022 = vmul.f32 %v4698, %v5016
      %v5023 = vmul.f32 %v4703, %v5016
      %v5024 = vmul.f32 %v4708, %v5016
      %v5025 = vmul.f32 %v4713, %v5016
      %v5026 = vmul.f32 %v4718, %v5016
      %v5027 = vmul.f32 %v4723, %v5016
      %v5028 = vmul.f32 %v4728, %v5016
      %v5029 = vmul.f32 %v4733, %v5016
      %v5030 = vmul.f32 %v4738, %v5016
      %v5031 = vmul.f32 %v4743, %v5016
      %v5032 = vmul.f32 %v4748, %v5016
      %v5033 = vmul.f32 %v4753, %v5016
      %v5034 = vmul.f32 %v4758, %v5016
      %v5035 = vmul.f32 %v4763, %v5016
      %v5036 = vmul.f32 %v4768, %v5016
      %v5037 = vmul.f32 %v4773, %v5016
      %v5038 = vmul.f32 %v4778, %v5016
      %v5039 = vmul.f32 %v4783, %v5016
      %v5040 = vmul.f32 %v4788, %v5016
      %v5041 = vmul.f32 %v4793, %v5016
      %v5042 = vmul.f32 %v4798, %v5016
      %v5043 = vmul.f32 %v4803, %v5016
      %v5044 = vmul.f32 %v4808, %v5016
      %v5045 = vmul.f32 %v4813, %v5016
      %v5046 = vmul.f32 %v4818, %v5016
      %v5047 = vmul.f32 %v4823, %v5016
      %v5048 = vmul.f32 %v4828, %v5016
      %v5049 = vmul.f32 %v4833, %v5016
      %v5050 = vmul.f32 %v4838, %v5016
      %v5051 = vadd.f32 %v5019, %v5018
      %v5052 = vadd.f32 %v5020, %v5018
      %v5053 = vadd.f32 %v5021, %v5018
      %v5054 = vadd.f32 %v5022, %v5018
      %v5055 = vadd.f32 %v5023, %v5018
      %v5056 = vadd.f32 %v5024, %v5018
      %v5057 = vadd.f32 %v5025, %v5018
      %v5058 = vadd.f32 %v5026, %v5018
      %v5059 = vadd.f32 %v5027, %v5018
      %v5060 = vadd.f32 %v5028, %v5018
      %v5061 = vadd.f32 %v5029, %v5018
      %v5062 = vadd.f32 %v5030, %v5018
      %v5063 = vadd.f32 %v5031, %v5018
      %v5064 = vadd.f32 %v5032, %v5018
      %v5065 = vadd.f32 %v5033, %v5018
      %v5066 = vadd.f32 %v5034, %v5018
      %v5067 = vadd.f32 %v5035, %v5018
      %v5068 = vadd.f32 %v5036, %v5018
      %v5069 = vadd.f32 %v5037, %v5018
      %v5070 = vadd.f32 %v5038, %v5018
      %v5071 = vadd.f32 %v5039, %v5018
      %v5072 = vadd.f32 %v5040, %v5018
      %v5073 = vadd.f32 %v5041, %v5018
      %v5074 = vadd.f32 %v5042, %v5018
      %v5075 = vadd.f32 %v5043, %v5018
      %v5076 = vadd.f32 %v5044, %v5018
      %v5077 = vadd.f32 %v5045, %v5018
      %v5078 = vadd.f32 %v5046, %v5018
      %v5079 = vadd.f32 %v5047, %v5018
      %v5080 = vadd.f32 %v5048, %v5018
      %v5081 = vadd.f32 %v5049, %v5018
      %v5082 = vadd.f32 %v5050, %v5018
      %v5083 = vadd.f32 %v5051, %v171
      %v5084 = vadd.f32 %v5052, %v172
      %v5085 = vadd.f32 %v5053, %v173
      %v5086 = vadd.f32 %v5054, %v174
      %v5087 = vadd.f32 %v5055, %v175
      %v5088 = vadd.f32 %v5056, %v176
      %v5089 = vadd.f32 %v5057, %v177
      %v5090 = vadd.f32 %v5058, %v178
      %v5091 = vadd.f32 %v5059, %v179
      %v5092 = vadd.f32 %v5060, %v180
      %v5093 = vadd.f32 %v5061, %v181
      %v5094 = vadd.f32 %v5062, %v182
      %v5095 = vadd.f32 %v5063, %v183
      %v5096 = vadd.f32 %v5064, %v184
      %v5097 = vadd.f32 %v5065, %v185
      %v5098 = vadd.f32 %v5066, %v186
      %v5099 = vadd.f32 %v5067, %v187
      %v5100 = vadd.f32 %v5068, %v188
      %v5101 = vadd.f32 %v5069, %v189
      %v5102 = vadd.f32 %v5070, %v190
      %v5103 = vadd.f32 %v5071, %v191
      %v5104 = vadd.f32 %v5072, %v192
      %v5105 = vadd.f32 %v5073, %v193
      %v5106 = vadd.f32 %v5074, %v194
      %v5107 = vadd.f32 %v5075, %v195
      %v5108 = vadd.f32 %v5076, %v196
      %v5109 = vadd.f32 %v5077, %v197
      %v5110 = vadd.f32 %v5078, %v198
      %v5111 = vadd.f32 %v5079, %v199
      %v5112 = vadd.f32 %v5080, %v200
      %v5113 = vadd.f32 %v5081, %v201
      %v5114 = vadd.f32 %v5082, %v202
      %5115 = vst.msk [vmem:[%s170] sm:$0xff] %vm428, %v5083
      %5116 = vst.msk [vmem:[%s170 + $0x8] sm:$0xff] %vm428, %v5084
      %5117 = vst.msk [vmem:[%s170 + $0x10] sm:$0xff] %vm428, %v5085
      %5118 = vst.msk [vmem:[%s170 + $0x18] sm:$0xff] %vm428, %v5086
      %5119 = vst.msk [vmem:[%s170 + $0x20] sm:$0xff] %vm428, %v5087
      %5120 = vst.msk [vmem:[%s170 + $0x28] sm:$0xff] %vm428, %v5088
      %5121 = vst.msk [vmem:[%s170 + $0x30] sm:$0xff] %vm428, %v5089
      %5122 = vst.msk [vmem:[%s170 + $0x38] sm:$0xff] %vm428, %v5090
      %5123 = vst.msk [vmem:[%s170 + $0x40] sm:$0xff] %vm428, %v5091
      %5124 = vst.msk [vmem:[%s170 + $0x48] sm:$0xff] %vm428, %v5092
      %5125 = vst.msk [vmem:[%s170 + $0x50] sm:$0xff] %vm428, %v5093
      %5126 = vst.msk [vmem:[%s170 + $0x58] sm:$0xff] %vm428, %v5094
      %5127 = vst.msk [vmem:[%s170 + $0x60] sm:$0xff] %vm428, %v5095
      %5128 = vst.msk [vmem:[%s170 + $0x68] sm:$0xff] %vm428, %v5096
      %5129 = vst.msk [vmem:[%s170 + $0x70] sm:$0xff] %vm428, %v5097
      %5130 = vst.msk [vmem:[%s170 + $0x78] sm:$0xff] %vm428, %v5098
      %5131 = vst.msk [vmem:[%s170 + $0x80] sm:$0xff] %vm428, %v5099
      %5132 = vst.msk [vmem:[%s170 + $0x88] sm:$0xff] %vm428, %v5100
      %5133 = vst.msk [vmem:[%s170 + $0x90] sm:$0xff] %vm428, %v5101
      %5134 = vst.msk [vmem:[%s170 + $0x98] sm:$0xff] %vm428, %v5102
      %5135 = vst.msk [vmem:[%s170 + $0xa0] sm:$0xff] %vm428, %v5103
      %5136 = vst.msk [vmem:[%s170 + $0xa8] sm:$0xff] %vm428, %v5104
      %5137 = vst.msk [vmem:[%s170 + $0xb0] sm:$0xff] %vm428, %v5105
      %5138 = vst.msk [vmem:[%s170 + $0xb8] sm:$0xff] %vm428, %v5106
      %5139 = vst.msk [vmem:[%s170 + $0xc0] sm:$0xff] %vm428, %v5107
      %5140 = vst.msk [vmem:[%s170 + $0xc8] sm:$0xff] %vm428, %v5108
      %5141 = vst.msk [vmem:[%s170 + $0xd0] sm:$0xff] %vm428, %v5109
      %5142 = vst.msk [vmem:[%s170 + $0xd8] sm:$0xff] %vm428, %v5110
      %5143 = vst.msk [vmem:[%s170 + $0xe0] sm:$0xff] %vm428, %v5111
      %5144 = vst.msk [vmem:[%s170 + $0xe8] sm:$0xff] %vm428, %v5112
      %5145 = vst.msk [vmem:[%s170 + $0xf0] sm:$0xff] %vm428, %v5113
      %5146 = vst.msk [vmem:[%s170 + $0xf8] sm:$0xff] %vm428, %v5114
      %p5147 = scmp.lt.s32.totalorder %s14, 1
      %s5148 = scalar_select %p5147, %s14, 1
      %s5149 = smul.addr %s5148, 32
      %s5150 = smul.addr %s5149, 8
      %s5151 = scalar_lea.vmem %s3, %s5150
      // Predicated region
      $region33: #{tpu_custom_call.1} parent=31 // pred_check
        %p5152 = pneg %p100
      $region34: #{tpu_custom_call.1} parent=31 // pred_check_branch
        %5154 = sbr.rel (%p5152) target = $region36
      $region35: #{tpu_custom_call.1} parent=31 // pred_region
        _
      $region36: #{tpu_custom_call.1} parent=31 // pred_fallthru
        _
    $region32: #{tpu_custom_call.1} parent=5 // pred_fallthru
      _
    %p5155 = scmp.le.s32.totalorder 2, %s9
    // Predicated region
    $region37: #{tpu_custom_call.1} parent=5 // pred_check
      %p5156 = pneg %p5155
    $region38: #{tpu_custom_call.1} parent=5 // pred_check_branch
      %5158 = sbr.rel (%p5156) target = $region40
    $region39: #{tpu_custom_call.1} parent=5 // pred_region
      %s5159 = ssub.s32 %s9, 2
      // Predicated region
      $region41: #{tpu_custom_call.1} parent=39 // pred_check
        %p5160 = pneg %p106
      $region42: #{tpu_custom_call.1} parent=39 // pred_check_branch
        %5162 = sbr.rel (%p5160) target = $region44
      $region43: #{tpu_custom_call.1} parent=39 // pred_region
        %p5163 = scmp.lt.s32.totalorder %s15, 1
        %s5164 = scalar_select %p5163, %s15, 1
        %s5165 = smul.addr %s5164, 32
        %s5166 = smul.addr %s5165, 8
        %s5167 = scalar_lea.vmem %s3, %s5166
      $region44: #{tpu_custom_call.1} parent=39 // pred_fallthru
        _
    $region40: #{tpu_custom_call.1} parent=5 // pred_fallthru
      _
  $region6: #{tpu_custom_call.1} parent=0 // loop_footer
    %s13 = sadd.s32 1, %s9
  $region7: #{tpu_custom_call.1} parent=0 // loop_footer_branch
    %8 = sbr.rel target = $region3
  $region8: #{tpu_custom_call.1} parent=0 // loop_exit
    _

</llo_original>
